<compile_context>
chip_gen: v7x
topology: tpu7x:2x2x1
jax: 0.10.0
libtpu: 0.0.40
codegen_flags: <defaults>
</compile_context>

<pallas_src>
import jax
import jax.numpy as jnp
from jax.experimental import pallas as pl
from jax.experimental.pallas import tpu as pltpu

DIMS = [8, 72, 136, 200, 264, 328, 392, 456, 512]
N_LAYERS = len(DIMS) - 1
NEG_SLOPE = 0.01  # PyTorch nn.LeakyReLU default


def _round_up(v, m):
    return ((v + m - 1) // m) * m


# Lane-dense (128-multiple) widths for all hidden/output activations.
PAD_DIMS = [DIMS[0]] + [_round_up(d, 128) for d in DIMS[1:]]
# -> [8, 128, 256, 256, 384, 384, 512, 512, 512]


def mlp_kernel(x_ref, *refs):
    """refs = (w0, b0, w1, b1, ..., w7, b7, out_ref)."""
    out_ref = refs[-1]
    params = refs[:-1]
    h = x_ref[...]  # (tm, 8) f32
    for layer in range(N_LAYERS):
        w = params[2 * layer][...]        # (pad_in, pad_out), matmul dtype (bf16)
        b = params[2 * layer + 1][...]    # (1, pad_out), f32
        h = jnp.dot(h.astype(w.dtype), w,
                    preferred_element_type=jnp.float32) + b
        if layer < N_LAYERS - 1:
            # LeakyReLU(negative_slope=0.01), in f32 on the VPU.
            h = jnp.where(h > 0, h, NEG_SLOPE * h)
    out_ref[...] = h.astype(out_ref.dtype)


def _pad_params(weights, biases, matmul_dtype):
    """Zero-pad weights/biases to lane-dense (128-multiple) widths."""
    ws, bs = [], []
    for l in range(N_LAYERS):
        d_in, d_out = DIMS[l], DIMS[l + 1]
        p_in, p_out = PAD_DIMS[l], PAD_DIMS[l + 1]
        w = jnp.zeros((p_in, p_out), matmul_dtype)
        w = w.at[:d_in, :d_out].set(weights[l].astype(matmul_dtype))
        b = jnp.zeros((1, p_out), jnp.float32)
        b = b.at[:, :d_out].set(biases[l].reshape(1, -1).astype(jnp.float32))
        ws.append(w)
        bs.append(b)
    return ws, bs


def onehot_to_chemnet_encoder(x, weights, biases, *, tm=256,
                              matmul_dtype=jnp.bfloat16):
    """x: (N, 8) f32.  weights[l]: (DIMS[l], DIMS[l+1]).  biases[l]: (DIMS[l+1],)."""
    N, d_in = x.shape
    assert d_in == DIMS[0]

    # Shrink the row tile for tiny batches; keep it a multiple of 8.
    tm = min(tm, max(8, _round_up(N, 8)))
    n_pad = (-N) % tm
    x_p = jnp.pad(x.astype(jnp.float32), ((0, n_pad), (0, 0))) if n_pad else x
    n_rows = N + n_pad

    w_pad, b_pad = _pad_params(weights, biases, matmul_dtype)

    # x / out: pipelined row tiles.  Params: whole-array VMEM residents
    # (constant across the grid -> no double-buffering needed).
    param_spec = pl.BlockSpec(memory_space=pltpu.MemorySpace.VMEM)
    in_specs = [pl.BlockSpec((tm, DIMS[0]), lambda i: (i, 0))]
    args = [x_p]
    for l in range(N_LAYERS):
        in_specs += [param_spec, param_spec]
        args += [w_pad[l], b_pad[l]]
    out_spec = pl.BlockSpec((tm, DIMS[-1]), lambda i: (i, 0))

    out = pl.pallas_call(
        mlp_kernel,
        out_shape=jax.ShapeDtypeStruct((n_rows, DIMS[-1]), jnp.float32),
        grid=(n_rows // tm,),
        in_specs=in_specs,
        out_specs=out_spec,
        compiler_params=pltpu.CompilerParams(
            dimension_semantics=("parallel",)),
    )(*args)
    return out[:N]


def init_params(key):
    """PyTorch-style default init U(-1/sqrt(in), 1/sqrt(in))."""
    weights, biases = [], []
    for l in range(N_LAYERS):
        d_in, d_out = DIMS[l], DIMS[l + 1]
        key, kw, kb = jax.random.split(key, 3)
        bound = 1.0 / (d_in ** 0.5)
        weights.append(jax.random.uniform(kw, (d_in, d_out), jnp.float32,
                                          -bound, bound))
        biases.append(jax.random.uniform(kb, (d_out,), jnp.float32,
                                         -bound, bound))
    return weights, biases


def reference_forward(x, weights, biases, matmul_dtype=jnp.float32):
    """Pure-JAX reference; matmul_dtype lets us match the kernel's bf16 matmuls."""
    h = x.astype(jnp.float32)
    for l in range(N_LAYERS):
        h = jnp.dot(h.astype(matmul_dtype), weights[l].astype(matmul_dtype),
                    preferred_element_type=jnp.float32) + biases[l]
        if l < N_LAYERS - 1:
            h = jnp.where(h > 0, h, NEG_SLOPE * h)
    return h


if __name__ == "__main__":
    key = jax.random.PRNGKey(0)
    key, kx = jax.random.split(key)

    N = 16  # small batch for the example run (tile auto-shrinks to 16)
    x = jax.random.normal(kx, (N, DIMS[0]), jnp.float32)
    weights, biases = init_params(key)

    out = onehot_to_chemnet_encoder(x, weights, biases)
    out = jax.block_until_ready(out)
    assert out.shape == (N, DIMS[-1])

    # Reference using the same bf16-input / f32-accumulate matmuls (tight check).
    ref_bf16 = reference_forward(x, weights, biases, matmul_dtype=jnp.bfloat16)
    assert jnp.allclose(out, ref_bf16, atol=1e-2, rtol=1e-2), \
        "mismatch vs bf16-matched reference"

    # Full-f32 reference (loose check: confirms module semantics preserved).
    ref_f32 = reference_forward(x, weights, biases, matmul_dtype=jnp.float32)
    assert jnp.allclose(out, ref_f32, atol=5e-2, rtol=5e-2), \
        "mismatch vs f32 reference"

    print("KERNEL_OK")
</pallas_src>

<mosaic_0001>
module attributes {stable_mosaic.version = 11 : i64} {
  func.func @mlp_kernel(%arg0: i32, %arg1: memref<16x8xf32, #tpu.memory_space<vmem>>, %arg2: memref<8x128xbf16, #tpu.memory_space<vmem>>, %arg3: memref<1x128xf32, #tpu.memory_space<vmem>>, %arg4: memref<128x256xbf16, #tpu.memory_space<vmem>>, %arg5: memref<1x256xf32, #tpu.memory_space<vmem>>, %arg6: memref<256x256xbf16, #tpu.memory_space<vmem>>, %arg7: memref<1x256xf32, #tpu.memory_space<vmem>>, %arg8: memref<256x384xbf16, #tpu.memory_space<vmem>>, %arg9: memref<1x384xf32, #tpu.memory_space<vmem>>, %arg10: memref<384x384xbf16, #tpu.memory_space<vmem>>, %arg11: memref<1x384xf32, #tpu.memory_space<vmem>>, %arg12: memref<384x512xbf16, #tpu.memory_space<vmem>>, %arg13: memref<1x512xf32, #tpu.memory_space<vmem>>, %arg14: memref<512x512xbf16, #tpu.memory_space<vmem>>, %arg15: memref<1x512xf32, #tpu.memory_space<vmem>>, %arg16: memref<512x512xbf16, #tpu.memory_space<vmem>>, %arg17: memref<1x512xf32, #tpu.memory_space<vmem>>, %arg18: memref<16x512xf32, #tpu.memory_space<vmem>>) attributes {dimension_semantics = [#tpu.dimension_semantics<parallel>], iteration_bounds = array<i64: 1>, scalar_prefetch = 0 : i64, scratch_operands = 0 : i64, tpu.core_type = #tpu.core_type<tc>, window_params = [{transform_indices = @transform_0, window_bounds = array<i64: 16, 8>}, {pipeline_mode = #tpu.pipeline_mode<synchronous>, transform_indices = @transform_1, window_bounds = array<i64: 8, 128>}, {pipeline_mode = #tpu.pipeline_mode<synchronous>, transform_indices = @transform_2, window_bounds = array<i64: 1, 128>}, {pipeline_mode = #tpu.pipeline_mode<synchronous>, transform_indices = @transform_3, window_bounds = array<i64: 128, 256>}, {pipeline_mode = #tpu.pipeline_mode<synchronous>, transform_indices = @transform_4, window_bounds = array<i64: 1, 256>}, {pipeline_mode = #tpu.pipeline_mode<synchronous>, transform_indices = @transform_5, window_bounds = array<i64: 256, 256>}, {pipeline_mode = #tpu.pipeline_mode<synchronous>, transform_indices = @transform_6, window_bounds = array<i64: 1, 256>}, {pipeline_mode = #tpu.pipeline_mode<synchronous>, transform_indices = @transform_7, window_bounds = array<i64: 256, 384>}, {pipeline_mode = #tpu.pipeline_mode<synchronous>, transform_indices = @transform_8, window_bounds = array<i64: 1, 384>}, {pipeline_mode = #tpu.pipeline_mode<synchronous>, transform_indices = @transform_9, window_bounds = array<i64: 384, 384>}, {pipeline_mode = #tpu.pipeline_mode<synchronous>, transform_indices = @transform_10, window_bounds = array<i64: 1, 384>}, {pipeline_mode = #tpu.pipeline_mode<synchronous>, transform_indices = @transform_11, window_bounds = array<i64: 384, 512>}, {pipeline_mode = #tpu.pipeline_mode<synchronous>, transform_indices = @transform_12, window_bounds = array<i64: 1, 512>}, {pipeline_mode = #tpu.pipeline_mode<synchronous>, transform_indices = @transform_13, window_bounds = array<i64: 512, 512>}, {pipeline_mode = #tpu.pipeline_mode<synchronous>, transform_indices = @transform_14, window_bounds = array<i64: 1, 512>}, {pipeline_mode = #tpu.pipeline_mode<synchronous>, transform_indices = @transform_15, window_bounds = array<i64: 512, 512>}, {pipeline_mode = #tpu.pipeline_mode<synchronous>, transform_indices = @transform_16, window_bounds = array<i64: 1, 512>}, {transform_indices = @transform_17, window_bounds = array<i64: 16, 512>}]} {
    %c0 = arith.constant 0 : index
    %c0_0 = arith.constant 0 : index
    %0 = vector.load %arg1[%c0, %c0_0] : memref<16x8xf32, #tpu.memory_space<vmem>>, vector<16x8xf32>
    %c0_1 = arith.constant 0 : index
    %c0_2 = arith.constant 0 : index
    %1 = vector.load %arg2[%c0_1, %c0_2] : memref<8x128xbf16, #tpu.memory_space<vmem>>, vector<8x128xbf16>
    %c0_3 = arith.constant 0 : index
    %c0_4 = arith.constant 0 : index
    %2 = vector.load %arg3[%c0_3, %c0_4] : memref<1x128xf32, #tpu.memory_space<vmem>>, vector<1x128xf32>
    %3 = arith.truncf %0 : vector<16x8xf32> to vector<16x8xbf16>
    %cst = arith.constant dense<0.000000e+00> : vector<16x128xf32>
    %4 = tpu.matmul %3, %1, %cst {dimension_numbers = #tpu.dot_dimension_numbers<[1], [0], [0], [1], [0, 0, 1, 1], [], []>} : vector<16x8xbf16>, vector<8x128xbf16>, vector<16x128xf32> -> vector<16x128xf32>
    %5 = vector.broadcast %2 : vector<1x128xf32> to vector<16x128xf32>
    %6 = arith.addf %4, %5 : vector<16x128xf32>
    %cst_5 = arith.constant 0.000000e+00 : f32
    %7 = vector.broadcast %cst_5 : f32 to vector<16x128xf32>
    %8 = arith.cmpf ogt, %6, %7 : vector<16x128xf32>
    %cst_6 = arith.constant 0.00999999977 : f32
    %9 = vector.broadcast %cst_6 : f32 to vector<16x128xf32>
    %10 = arith.mulf %9, %6 : vector<16x128xf32>
    %11 = arith.select %8, %6, %10 : vector<16x128xi1>, vector<16x128xf32>
    %c0_7 = arith.constant 0 : index
    %c0_8 = arith.constant 0 : index
    %12 = vector.load %arg4[%c0_7, %c0_8] : memref<128x256xbf16, #tpu.memory_space<vmem>>, vector<128x256xbf16>
    %c0_9 = arith.constant 0 : index
    %c0_10 = arith.constant 0 : index
    %13 = vector.load %arg5[%c0_9, %c0_10] : memref<1x256xf32, #tpu.memory_space<vmem>>, vector<1x256xf32>
    %14 = arith.truncf %11 : vector<16x128xf32> to vector<16x128xbf16>
    %cst_11 = arith.constant dense<0.000000e+00> : vector<16x256xf32>
    %15 = tpu.matmul %14, %12, %cst_11 {dimension_numbers = #tpu.dot_dimension_numbers<[1], [0], [0], [1], [0, 0, 1, 1], [], []>} : vector<16x128xbf16>, vector<128x256xbf16>, vector<16x256xf32> -> vector<16x256xf32>
    %16 = vector.broadcast %13 : vector<1x256xf32> to vector<16x256xf32>
    %17 = arith.addf %15, %16 : vector<16x256xf32>
    %cst_12 = arith.constant 0.000000e+00 : f32
    %18 = vector.broadcast %cst_12 : f32 to vector<16x256xf32>
    %19 = arith.cmpf ogt, %17, %18 : vector<16x256xf32>
    %cst_13 = arith.constant 0.00999999977 : f32
    %20 = vector.broadcast %cst_13 : f32 to vector<16x256xf32>
    %21 = arith.mulf %20, %17 : vector<16x256xf32>
    %22 = arith.select %19, %17, %21 : vector<16x256xi1>, vector<16x256xf32>
    %c0_14 = arith.constant 0 : index
    %c0_15 = arith.constant 0 : index
    %23 = vector.load %arg6[%c0_14, %c0_15] : memref<256x256xbf16, #tpu.memory_space<vmem>>, vector<256x256xbf16>
    %c0_16 = arith.constant 0 : index
    %c0_17 = arith.constant 0 : index
    %24 = vector.load %arg7[%c0_16, %c0_17] : memref<1x256xf32, #tpu.memory_space<vmem>>, vector<1x256xf32>
    %25 = arith.truncf %22 : vector<16x256xf32> to vector<16x256xbf16>
    %cst_18 = arith.constant dense<0.000000e+00> : vector<16x256xf32>
    %26 = tpu.matmul %25, %23, %cst_18 {dimension_numbers = #tpu.dot_dimension_numbers<[1], [0], [0], [1], [0, 0, 1, 1], [], []>} : vector<16x256xbf16>, vector<256x256xbf16>, vector<16x256xf32> -> vector<16x256xf32>
    %27 = vector.broadcast %24 : vector<1x256xf32> to vector<16x256xf32>
    %28 = arith.addf %26, %27 : vector<16x256xf32>
    %cst_19 = arith.constant 0.000000e+00 : f32
    %29 = vector.broadcast %cst_19 : f32 to vector<16x256xf32>
    %30 = arith.cmpf ogt, %28, %29 : vector<16x256xf32>
    %cst_20 = arith.constant 0.00999999977 : f32
    %31 = vector.broadcast %cst_20 : f32 to vector<16x256xf32>
    %32 = arith.mulf %31, %28 : vector<16x256xf32>
    %33 = arith.select %30, %28, %32 : vector<16x256xi1>, vector<16x256xf32>
    %c0_21 = arith.constant 0 : index
    %c0_22 = arith.constant 0 : index
    %34 = vector.load %arg8[%c0_21, %c0_22] : memref<256x384xbf16, #tpu.memory_space<vmem>>, vector<256x384xbf16>
    %c0_23 = arith.constant 0 : index
    %c0_24 = arith.constant 0 : index
    %35 = vector.load %arg9[%c0_23, %c0_24] : memref<1x384xf32, #tpu.memory_space<vmem>>, vector<1x384xf32>
    %36 = arith.truncf %33 : vector<16x256xf32> to vector<16x256xbf16>
    %cst_25 = arith.constant dense<0.000000e+00> : vector<16x384xf32>
    %37 = tpu.matmul %36, %34, %cst_25 {dimension_numbers = #tpu.dot_dimension_numbers<[1], [0], [0], [1], [0, 0, 1, 1], [], []>} : vector<16x256xbf16>, vector<256x384xbf16>, vector<16x384xf32> -> vector<16x384xf32>
    %38 = vector.broadcast %35 : vector<1x384xf32> to vector<16x384xf32>
    %39 = arith.addf %37, %38 : vector<16x384xf32>
    %cst_26 = arith.constant 0.000000e+00 : f32
    %40 = vector.broadcast %cst_26 : f32 to vector<16x384xf32>
    %41 = arith.cmpf ogt, %39, %40 : vector<16x384xf32>
    %cst_27 = arith.constant 0.00999999977 : f32
    %42 = vector.broadcast %cst_27 : f32 to vector<16x384xf32>
    %43 = arith.mulf %42, %39 : vector<16x384xf32>
    %44 = arith.select %41, %39, %43 : vector<16x384xi1>, vector<16x384xf32>
    %c0_28 = arith.constant 0 : index
    %c0_29 = arith.constant 0 : index
    %45 = vector.load %arg10[%c0_28, %c0_29] : memref<384x384xbf16, #tpu.memory_space<vmem>>, vector<384x384xbf16>
    %c0_30 = arith.constant 0 : index
    %c0_31 = arith.constant 0 : index
    %46 = vector.load %arg11[%c0_30, %c0_31] : memref<1x384xf32, #tpu.memory_space<vmem>>, vector<1x384xf32>
    %47 = arith.truncf %44 : vector<16x384xf32> to vector<16x384xbf16>
    %cst_32 = arith.constant dense<0.000000e+00> : vector<16x384xf32>
    %48 = tpu.matmul %47, %45, %cst_32 {dimension_numbers = #tpu.dot_dimension_numbers<[1], [0], [0], [1], [0, 0, 1, 1], [], []>} : vector<16x384xbf16>, vector<384x384xbf16>, vector<16x384xf32> -> vector<16x384xf32>
    %49 = vector.broadcast %46 : vector<1x384xf32> to vector<16x384xf32>
    %50 = arith.addf %48, %49 : vector<16x384xf32>
    %cst_33 = arith.constant 0.000000e+00 : f32
    %51 = vector.broadcast %cst_33 : f32 to vector<16x384xf32>
    %52 = arith.cmpf ogt, %50, %51 : vector<16x384xf32>
    %cst_34 = arith.constant 0.00999999977 : f32
    %53 = vector.broadcast %cst_34 : f32 to vector<16x384xf32>
    %54 = arith.mulf %53, %50 : vector<16x384xf32>
    %55 = arith.select %52, %50, %54 : vector<16x384xi1>, vector<16x384xf32>
    %c0_35 = arith.constant 0 : index
    %c0_36 = arith.constant 0 : index
    %56 = vector.load %arg12[%c0_35, %c0_36] : memref<384x512xbf16, #tpu.memory_space<vmem>>, vector<384x512xbf16>
    %c0_37 = arith.constant 0 : index
    %c0_38 = arith.constant 0 : index
    %57 = vector.load %arg13[%c0_37, %c0_38] : memref<1x512xf32, #tpu.memory_space<vmem>>, vector<1x512xf32>
    %58 = arith.truncf %55 : vector<16x384xf32> to vector<16x384xbf16>
    %cst_39 = arith.constant dense<0.000000e+00> : vector<16x512xf32>
    %59 = tpu.matmul %58, %56, %cst_39 {dimension_numbers = #tpu.dot_dimension_numbers<[1], [0], [0], [1], [0, 0, 1, 1], [], []>} : vector<16x384xbf16>, vector<384x512xbf16>, vector<16x512xf32> -> vector<16x512xf32>
    %60 = vector.broadcast %57 : vector<1x512xf32> to vector<16x512xf32>
    %61 = arith.addf %59, %60 : vector<16x512xf32>
    %cst_40 = arith.constant 0.000000e+00 : f32
    %62 = vector.broadcast %cst_40 : f32 to vector<16x512xf32>
    %63 = arith.cmpf ogt, %61, %62 : vector<16x512xf32>
    %cst_41 = arith.constant 0.00999999977 : f32
    %64 = vector.broadcast %cst_41 : f32 to vector<16x512xf32>
    %65 = arith.mulf %64, %61 : vector<16x512xf32>
    %66 = arith.select %63, %61, %65 : vector<16x512xi1>, vector<16x512xf32>
    %c0_42 = arith.constant 0 : index
    %c0_43 = arith.constant 0 : index
    %67 = vector.load %arg14[%c0_42, %c0_43] : memref<512x512xbf16, #tpu.memory_space<vmem>>, vector<512x512xbf16>
    %c0_44 = arith.constant 0 : index
    %c0_45 = arith.constant 0 : index
    %68 = vector.load %arg15[%c0_44, %c0_45] : memref<1x512xf32, #tpu.memory_space<vmem>>, vector<1x512xf32>
    %69 = arith.truncf %66 : vector<16x512xf32> to vector<16x512xbf16>
    %cst_46 = arith.constant dense<0.000000e+00> : vector<16x512xf32>
    %70 = tpu.matmul %69, %67, %cst_46 {dimension_numbers = #tpu.dot_dimension_numbers<[1], [0], [0], [1], [0, 0, 1, 1], [], []>} : vector<16x512xbf16>, vector<512x512xbf16>, vector<16x512xf32> -> vector<16x512xf32>
    %71 = vector.broadcast %68 : vector<1x512xf32> to vector<16x512xf32>
    %72 = arith.addf %70, %71 : vector<16x512xf32>
    %cst_47 = arith.constant 0.000000e+00 : f32
    %73 = vector.broadcast %cst_47 : f32 to vector<16x512xf32>
    %74 = arith.cmpf ogt, %72, %73 : vector<16x512xf32>
    %cst_48 = arith.constant 0.00999999977 : f32
    %75 = vector.broadcast %cst_48 : f32 to vector<16x512xf32>
    %76 = arith.mulf %75, %72 : vector<16x512xf32>
    %77 = arith.select %74, %72, %76 : vector<16x512xi1>, vector<16x512xf32>
    %c0_49 = arith.constant 0 : index
    %c0_50 = arith.constant 0 : index
    %78 = vector.load %arg16[%c0_49, %c0_50] : memref<512x512xbf16, #tpu.memory_space<vmem>>, vector<512x512xbf16>
    %c0_51 = arith.constant 0 : index
    %c0_52 = arith.constant 0 : index
    %79 = vector.load %arg17[%c0_51, %c0_52] : memref<1x512xf32, #tpu.memory_space<vmem>>, vector<1x512xf32>
    %80 = arith.truncf %77 : vector<16x512xf32> to vector<16x512xbf16>
    %cst_53 = arith.constant dense<0.000000e+00> : vector<16x512xf32>
    %81 = tpu.matmul %80, %78, %cst_53 {dimension_numbers = #tpu.dot_dimension_numbers<[1], [0], [0], [1], [0, 0, 1, 1], [], []>} : vector<16x512xbf16>, vector<512x512xbf16>, vector<16x512xf32> -> vector<16x512xf32>
    %82 = vector.broadcast %79 : vector<1x512xf32> to vector<16x512xf32>
    %83 = arith.addf %81, %82 : vector<16x512xf32>
    %c0_54 = arith.constant 0 : index
    %c0_55 = arith.constant 0 : index
    %84 = vector.load %arg18[%c0_54, %c0_55] : memref<16x512xf32, #tpu.memory_space<vmem>>, vector<16x512xf32>
    tpu.vector_store %arg18[%c0_54, %c0_55], %83 {strides = array<i32>} : memref<16x512xf32, #tpu.memory_space<vmem>>, vector<16x512xf32>,
    return
  }
  func.func @transform_0(%arg0: i32) -> (i32, i32) {
    %c0_i32 = arith.constant 0 : i32
    %c0_i32_0 = arith.constant 0 : i32
    return %arg0, %c0_i32 : i32, i32
  }
  func.func @transform_1(%arg0: i32) -> (i32, i32) {
    %c0_i32 = arith.constant 0 : i32
    %c0_i32_0 = arith.constant 0 : i32
    %c0_i32_1 = arith.constant 0 : i32
    return %c0_i32, %c0_i32_0 : i32, i32
  }
  func.func @transform_2(%arg0: i32) -> (i32, i32) {
    %c0_i32 = arith.constant 0 : i32
    %c0_i32_0 = arith.constant 0 : i32
    %c0_i32_1 = arith.constant 0 : i32
    return %c0_i32, %c0_i32_0 : i32, i32
  }
  func.func @transform_3(%arg0: i32) -> (i32, i32) {
    %c0_i32 = arith.constant 0 : i32
    %c0_i32_0 = arith.constant 0 : i32
    %c0_i32_1 = arith.constant 0 : i32
    return %c0_i32, %c0_i32_0 : i32, i32
  }
  func.func @transform_4(%arg0: i32) -> (i32, i32) {
    %c0_i32 = arith.constant 0 : i32
    %c0_i32_0 = arith.constant 0 : i32
    %c0_i32_1 = arith.constant 0 : i32
    return %c0_i32, %c0_i32_0 : i32, i32
  }
  func.func @transform_5(%arg0: i32) -> (i32, i32) {
    %c0_i32 = arith.constant 0 : i32
    %c0_i32_0 = arith.constant 0 : i32
    %c0_i32_1 = arith.constant 0 : i32
    return %c0_i32, %c0_i32_0 : i32, i32
  }
  func.func @transform_6(%arg0: i32) -> (i32, i32) {
    %c0_i32 = arith.constant 0 : i32
    %c0_i32_0 = arith.constant 0 : i32
    %c0_i32_1 = arith.constant 0 : i32
    return %c0_i32, %c0_i32_0 : i32, i32
  }
  func.func @transform_7(%arg0: i32) -> (i32, i32) {
    %c0_i32 = arith.constant 0 : i32
    %c0_i32_0 = arith.constant 0 : i32
    %c0_i32_1 = arith.constant 0 : i32
    return %c0_i32, %c0_i32_0 : i32, i32
  }
  func.func @transform_8(%arg0: i32) -> (i32, i32) {
    %c0_i32 = arith.constant 0 : i32
    %c0_i32_0 = arith.constant 0 : i32
    %c0_i32_1 = arith.constant 0 : i32
    return %c0_i32, %c0_i32_0 : i32, i32
  }
  func.func @transform_9(%arg0: i32) -> (i32, i32) {
    %c0_i32 = arith.constant 0 : i32
    %c0_i32_0 = arith.constant 0 : i32
    %c0_i32_1 = arith.constant 0 : i32
    return %c0_i32, %c0_i32_0 : i32, i32
  }
  func.func @transform_10(%arg0: i32) -> (i32, i32) {
    %c0_i32 = arith.constant 0 : i32
    %c0_i32_0 = arith.constant 0 : i32
    %c0_i32_1 = arith.constant 0 : i32
    return %c0_i32, %c0_i32_0 : i32, i32
  }
  func.func @transform_11(%arg0: i32) -> (i32, i32) {
    %c0_i32 = arith.constant 0 : i32
    %c0_i32_0 = arith.constant 0 : i32
    %c0_i32_1 = arith.constant 0 : i32
    return %c0_i32, %c0_i32_0 : i32, i32
  }
  func.func @transform_12(%arg0: i32) -> (i32, i32) {
    %c0_i32 = arith.constant 0 : i32
    %c0_i32_0 = arith.constant 0 : i32
    %c0_i32_1 = arith.constant 0 : i32
    return %c0_i32, %c0_i32_0 : i32, i32
  }
  func.func @transform_13(%arg0: i32) -> (i32, i32) {
    %c0_i32 = arith.constant 0 : i32
    %c0_i32_0 = arith.constant 0 : i32
    %c0_i32_1 = arith.constant 0 : i32
    return %c0_i32, %c0_i32_0 : i32, i32
  }
  func.func @transform_14(%arg0: i32) -> (i32, i32) {
    %c0_i32 = arith.constant 0 : i32
    %c0_i32_0 = arith.constant 0 : i32
    %c0_i32_1 = arith.constant 0 : i32
    return %c0_i32, %c0_i32_0 : i32, i32
  }
  func.func @transform_15(%arg0: i32) -> (i32, i32) {
    %c0_i32 = arith.constant 0 : i32
    %c0_i32_0 = arith.constant 0 : i32
    %c0_i32_1 = arith.constant 0 : i32
    return %c0_i32, %c0_i32_0 : i32, i32
  }
  func.func @transform_16(%arg0: i32) -> (i32, i32) {
    %c0_i32 = arith.constant 0 : i32
    %c0_i32_0 = arith.constant 0 : i32
    %c0_i32_1 = arith.constant 0 : i32
    return %c0_i32, %c0_i32_0 : i32, i32
  }
  func.func @transform_17(%arg0: i32) -> (i32, i32) {
    %c0_i32 = arith.constant 0 : i32
    %c0_i32_0 = arith.constant 0 : i32
    return %arg0, %c0_i32 : i32, i32
  }
}

</mosaic_0001>

<llo_original>
// kernel: tpu_custom_call.1
$region0: #{tpu_custom_call.1}
  #allocation0 [shape = 'u32[]', space=smem, size = 0x4, offset = 0x4, fixed_abs, tag = 'smem constant byte address 0x4 - core index']
  #allocation1 [shape = 'u32[144,128]{1,0:T(1,128)}', space=vmem, size = 0x12000, scoped, tag = 'internal scratch']
  %s0 = inlined_call_operand.vmem [shape: f32[16,8], index: 0, kind: input, shape index: {}]
  %s1 = inlined_call_operand.vmem [shape: bf16[8,128], index: 1, kind: input, shape index: {}]
  %s2 = inlined_call_operand.vmem [shape: f32[1,128], index: 2, kind: input, shape index: {}]
  %s3 = inlined_call_operand.hbm [shape: bf16[128,256], index: 3, kind: input, shape index: {}]
  %s4 = inlined_call_operand.vmem [shape: f32[1,256], index: 4, kind: input, shape index: {}]
  %s5 = inlined_call_operand.hbm [shape: bf16[256,256], index: 5, kind: input, shape index: {}]
  %s6 = inlined_call_operand.vmem [shape: f32[1,256], index: 6, kind: input, shape index: {}]
  %s7 = inlined_call_operand.hbm [shape: bf16[256,384], index: 7, kind: input, shape index: {}]
  %s8 = inlined_call_operand.vmem [shape: f32[1,384], index: 8, kind: input, shape index: {}]
  %s9 = inlined_call_operand.hbm [shape: bf16[384,384], index: 9, kind: input, shape index: {}]
  %s10 = inlined_call_operand.vmem [shape: f32[1,384], index: 10, kind: input, shape index: {}]
  %s11 = inlined_call_operand.hbm [shape: bf16[384,512], index: 11, kind: input, shape index: {}]
  %s12 = inlined_call_operand.vmem [shape: f32[1,512], index: 12, kind: input, shape index: {}]
  %s13 = inlined_call_operand.hbm [shape: bf16[512,512], index: 13, kind: input, shape index: {}]
  %s14 = inlined_call_operand.vmem [shape: f32[1,512], index: 14, kind: input, shape index: {}]
  %s15 = inlined_call_operand.hbm [shape: bf16[512,512], index: 15, kind: input, shape index: {}]
  %s16 = inlined_call_operand.vmem [shape: f32[1,512], index: 16, kind: input, shape index: {}]
  %s17 = inlined_call_operand.hbm [shape: f32[16,512], index: 17, kind: output, shape index: {}]
  %s18 = sld [smem:[#allocation0]]
  $region106: #{tpu_custom_call.1} parent=0
    _
  %s20 = ssub.s32 1, %s18
  %s21 = scalar_select 0, %s20, %s18
  $region1: #{tpu_custom_call.1} parent=0
    #allocation2 [shape = 'u8[65536]{0}', space=vmem, size = 0x10000, scoped, tag = 'input window, operand 3, single buffered']
    #allocation3 [shape = 's32[1]{0}', space=sflag, size = 0x4, scoped, tag = 'scoped memory for tpu_custom_call.1']
    #allocation4 [shape = 's32[1]{0}', space=sflag, size = 0x4, scoped, tag = 'scoped memory for tpu_custom_call.1']
    #allocation5 [shape = 'u8[131072]{0}', space=vmem, size = 0x20000, scoped, tag = 'input window, operand 5, single buffered']
    #allocation6 [shape = 's32[1]{0}', space=sflag, size = 0x4, scoped, tag = 'scoped memory for tpu_custom_call.1']
    #allocation7 [shape = 'u8[196608]{0}', space=vmem, size = 0x30000, scoped, tag = 'input window, operand 7, single buffered']
    #allocation8 [shape = 'u8[294912]{0}', space=vmem, size = 0x48000, scoped, tag = 'input window, operand 9, single buffered']
    #allocation9 [shape = 's32[1]{0}', space=sflag, size = 0x4, scoped, tag = 'scoped memory for tpu_custom_call.1']
    #allocation10 [shape = 'u8[393216]{0}', space=vmem, size = 0x60000, scoped, tag = 'input window, operand 11, single buffered']
    #allocation11 [shape = 'u8[524288]{0}', space=vmem, size = 0x80000, scoped, tag = 'input window, operand 13, single buffered']
    #allocation12 [shape = 's32[1]{0}', space=sflag, size = 0x4, scoped, tag = 'scoped memory for tpu_custom_call.1']
    #allocation13 [shape = 'u8[524288]{0}', space=vmem, size = 0x80000, scoped, tag = 'input window, operand 15, single buffered']
    #allocation14 [shape = 'u8[32768]{0}', space=vmem, size = 0x8000, scoped, tag = 'output window, operand 0, single buffered']
    %22 = vsyncpa [#allocation3], 0
    %23 = vsyncpa [#allocation6], 0
    %24 = vsyncpa [#allocation9], 0
    %25 = vsyncpa [#allocation12], 0
    %26 = vsyncpa [#allocation4], 0
    // Predicated region
    $region2: #{tpu_custom_call.1} parent=1 // pred_check
      _
    $region3: #{tpu_custom_call.1} parent=1 // pred_check_branch
      %28 = sbr.rel (0) target = $region5
    $region4: #{tpu_custom_call.1} parent=1 // pred_region
      _
    $region5: #{tpu_custom_call.1} parent=1 // pred_fallthru
      _
    // Predicated region
    $region6: #{tpu_custom_call.1} parent=1 // pred_check
      _
    $region7: #{tpu_custom_call.1} parent=1 // pred_check_branch
      %30 = sbr.rel (0) target = $region9
    $region8: #{tpu_custom_call.1} parent=1 // pred_region
      _
    $region9: #{tpu_custom_call.1} parent=1 // pred_fallthru
      _
    // Predicated region
    $region10: #{tpu_custom_call.1} parent=1 // pred_check
      _
    $region11: #{tpu_custom_call.1} parent=1 // pred_check_branch
      %32 = sbr.rel (0) target = $region13
    $region12: #{tpu_custom_call.1} parent=1 // pred_region
      _
    $region13: #{tpu_custom_call.1} parent=1 // pred_fallthru
      _
    // Predicated region
    $region14: #{tpu_custom_call.1} parent=1 // pred_check
      _
    $region15: #{tpu_custom_call.1} parent=1 // pred_check_branch
      %34 = sbr.rel (0) target = $region17
    $region16: #{tpu_custom_call.1} parent=1 // pred_region
      %s36 = ssub.s32 2048, 2048
      %37 = vsyncadd [#allocation3], %s36
      %s38 = sshll.u32 [#allocation2], 4
      %s39 = int_to_ptr.vmem [resolvable:$true] %s38
      %44 = dma.hbm_to_vmem [thread:$0]  %s3, 2048, %s39, [#allocation3], 128, 128, 8
    $region17: #{tpu_custom_call.1} parent=1 // pred_fallthru
      _
    // Predicated region
    $region18: #{tpu_custom_call.1} parent=1 // pred_check
      _
    $region19: #{tpu_custom_call.1} parent=1 // pred_check_branch
      %46 = sbr.rel (0) target = $region21
    $region20: #{tpu_custom_call.1} parent=1 // pred_region
      _
    $region21: #{tpu_custom_call.1} parent=1 // pred_fallthru
      _
    // Predicated region
    $region22: #{tpu_custom_call.1} parent=1 // pred_check
      _
    $region23: #{tpu_custom_call.1} parent=1 // pred_check_branch
      %48 = sbr.rel (0) target = $region25
    $region24: #{tpu_custom_call.1} parent=1 // pred_region
      %s50 = ssub.s32 4096, 4096
      %51 = vsyncadd [#allocation6], %s50
      %s52 = sshll.u32 [#allocation5], 4
      %s53 = int_to_ptr.vmem [resolvable:$true] %s52
      %58 = dma.hbm_to_vmem [thread:$0]  %s5, 4096, %s53, [#allocation6], 128, 128, 8
    $region25: #{tpu_custom_call.1} parent=1 // pred_fallthru
      _
    // Predicated region
    $region26: #{tpu_custom_call.1} parent=1 // pred_check
      _
    $region27: #{tpu_custom_call.1} parent=1 // pred_check_branch
      %60 = sbr.rel (0) target = $region29
    $region28: #{tpu_custom_call.1} parent=1 // pred_region
      _
    $region29: #{tpu_custom_call.1} parent=1 // pred_fallthru
      _
    // Predicated region
    $region30: #{tpu_custom_call.1} parent=1 // pred_check
      _
    $region31: #{tpu_custom_call.1} parent=1 // pred_check_branch
      %62 = sbr.rel (0) target = $region33
    $region32: #{tpu_custom_call.1} parent=1 // pred_region
      %s64 = ssub.s32 6144, 6144
      %65 = vsyncadd [#allocation6], %s64
      %s66 = sshll.u32 [#allocation7], 4
      %s67 = int_to_ptr.vmem [resolvable:$true] %s66
      %72 = dma.hbm_to_vmem [thread:$0]  %s7, 6144, %s67, [#allocation6], 192, 192, 12
    $region33: #{tpu_custom_call.1} parent=1 // pred_fallthru
      _
    // Predicated region
    $region34: #{tpu_custom_call.1} parent=1 // pred_check
      _
    $region35: #{tpu_custom_call.1} parent=1 // pred_check_branch
      %74 = sbr.rel (0) target = $region37
    $region36: #{tpu_custom_call.1} parent=1 // pred_region
      _
    $region37: #{tpu_custom_call.1} parent=1 // pred_fallthru
      _
    // Predicated region
    $region38: #{tpu_custom_call.1} parent=1 // pred_check
      _
    $region39: #{tpu_custom_call.1} parent=1 // pred_check_branch
      %76 = sbr.rel (0) target = $region41
    $region40: #{tpu_custom_call.1} parent=1 // pred_region
      %s78 = ssub.s32 9216, 9216
      %79 = vsyncadd [#allocation9], %s78
      %s80 = sshll.u32 [#allocation8], 4
      %s81 = int_to_ptr.vmem [resolvable:$true] %s80
      %86 = dma.hbm_to_vmem [thread:$0]  %s9, 9216, %s81, [#allocation9], 192, 192, 12
    $region41: #{tpu_custom_call.1} parent=1 // pred_fallthru
      _
    // Predicated region
    $region42: #{tpu_custom_call.1} parent=1 // pred_check
      _
    $region43: #{tpu_custom_call.1} parent=1 // pred_check_branch
      %88 = sbr.rel (0) target = $region45
    $region44: #{tpu_custom_call.1} parent=1 // pred_region
      _
    $region45: #{tpu_custom_call.1} parent=1 // pred_fallthru
      _
    // Predicated region
    $region46: #{tpu_custom_call.1} parent=1 // pred_check
      _
    $region47: #{tpu_custom_call.1} parent=1 // pred_check_branch
      %90 = sbr.rel (0) target = $region49
    $region48: #{tpu_custom_call.1} parent=1 // pred_region
      %s92 = ssub.s32 12288, 12288
      %93 = vsyncadd [#allocation9], %s92
      %s94 = sshll.u32 [#allocation10], 4
      %s95 = int_to_ptr.vmem [resolvable:$true] %s94
      %100 = dma.hbm_to_vmem [thread:$0]  %s11, 12288, %s95, [#allocation9], 256, 256, 16
    $region49: #{tpu_custom_call.1} parent=1 // pred_fallthru
      _
    // Predicated region
    $region50: #{tpu_custom_call.1} parent=1 // pred_check
      _
    $region51: #{tpu_custom_call.1} parent=1 // pred_check_branch
      %102 = sbr.rel (0) target = $region53
    $region52: #{tpu_custom_call.1} parent=1 // pred_region
      _
    $region53: #{tpu_custom_call.1} parent=1 // pred_fallthru
      _
    // Predicated region
    $region54: #{tpu_custom_call.1} parent=1 // pred_check
      _
    $region55: #{tpu_custom_call.1} parent=1 // pred_check_branch
      %104 = sbr.rel (0) target = $region57
    $region56: #{tpu_custom_call.1} parent=1 // pred_region
      %s106 = ssub.s32 16384, 16384
      %107 = vsyncadd [#allocation12], %s106
      %s108 = sshll.u32 [#allocation11], 4
      %s109 = int_to_ptr.vmem [resolvable:$true] %s108
      %114 = dma.hbm_to_vmem [thread:$0]  %s13, 16384, %s109, [#allocation12], 256, 256, 16
    $region57: #{tpu_custom_call.1} parent=1 // pred_fallthru
      _
    // Predicated region
    $region58: #{tpu_custom_call.1} parent=1 // pred_check
      _
    $region59: #{tpu_custom_call.1} parent=1 // pred_check_branch
      %116 = sbr.rel (0) target = $region61
    $region60: #{tpu_custom_call.1} parent=1 // pred_region
      _
    $region61: #{tpu_custom_call.1} parent=1 // pred_fallthru
      _
    // Predicated region
    $region62: #{tpu_custom_call.1} parent=1 // pred_check
      _
    $region63: #{tpu_custom_call.1} parent=1 // pred_check_branch
      %118 = sbr.rel (0) target = $region65
    $region64: #{tpu_custom_call.1} parent=1 // pred_region
      %s120 = ssub.s32 16384, 16384
      %121 = vsyncadd [#allocation12], %s120
      %s122 = sshll.u32 [#allocation13], 4
      %s123 = int_to_ptr.vmem [resolvable:$true] %s122
      %128 = dma.hbm_to_vmem [thread:$0]  %s15, 16384, %s123, [#allocation12], 256, 256, 16
    $region65: #{tpu_custom_call.1} parent=1 // pred_fallthru
      _
    // Predicated region
    $region66: #{tpu_custom_call.1} parent=1 // pred_check
      _
    $region67: #{tpu_custom_call.1} parent=1 // pred_check_branch
      %130 = sbr.rel (0) target = $region69
    $region68: #{tpu_custom_call.1} parent=1 // pred_region
      _
    $region69: #{tpu_custom_call.1} parent=1 // pred_fallthru
      _
    // Predicated region
    $region70: #{tpu_custom_call.1} parent=1 // pred_check
      _
    $region71: #{tpu_custom_call.1} parent=1 // pred_check_branch
      %132 = sbr.rel (0) target = $region73
    $region72: #{tpu_custom_call.1} parent=1 // pred_region
      %133 = dma.done [#allocation3], 2048
    $region73: #{tpu_custom_call.1} parent=1 // pred_fallthru
      _
    // Predicated region
    $region74: #{tpu_custom_call.1} parent=1 // pred_check
      _
    $region75: #{tpu_custom_call.1} parent=1 // pred_check_branch
      %135 = sbr.rel (0) target = $region77
    $region76: #{tpu_custom_call.1} parent=1 // pred_region
      %136 = dma.done [#allocation6], 4096
    $region77: #{tpu_custom_call.1} parent=1 // pred_fallthru
      _
    // Predicated region
    $region78: #{tpu_custom_call.1} parent=1 // pred_check
      _
    $region79: #{tpu_custom_call.1} parent=1 // pred_check_branch
      %138 = sbr.rel (0) target = $region81
    $region80: #{tpu_custom_call.1} parent=1 // pred_region
      %139 = dma.done [#allocation6], 6144
    $region81: #{tpu_custom_call.1} parent=1 // pred_fallthru
      _
    // Predicated region
    $region82: #{tpu_custom_call.1} parent=1 // pred_check
      _
    $region83: #{tpu_custom_call.1} parent=1 // pred_check_branch
      %141 = sbr.rel (0) target = $region85
    $region84: #{tpu_custom_call.1} parent=1 // pred_region
      %142 = dma.done [#allocation9], 9216
    $region85: #{tpu_custom_call.1} parent=1 // pred_fallthru
      _
    // Predicated region
    $region86: #{tpu_custom_call.1} parent=1 // pred_check
      _
    $region87: #{tpu_custom_call.1} parent=1 // pred_check_branch
      %144 = sbr.rel (0) target = $region89
    $region88: #{tpu_custom_call.1} parent=1 // pred_region
      %145 = dma.done [#allocation9], 12288
    $region89: #{tpu_custom_call.1} parent=1 // pred_fallthru
      _
    // Predicated region
    $region90: #{tpu_custom_call.1} parent=1 // pred_check
      _
    $region91: #{tpu_custom_call.1} parent=1 // pred_check_branch
      %147 = sbr.rel (0) target = $region93
    $region92: #{tpu_custom_call.1} parent=1 // pred_region
      %148 = dma.done [#allocation12], 16384
    $region93: #{tpu_custom_call.1} parent=1 // pred_fallthru
      _
    // Predicated region
    $region94: #{tpu_custom_call.1} parent=1 // pred_check
      _
    $region95: #{tpu_custom_call.1} parent=1 // pred_check_branch
      %150 = sbr.rel (0) target = $region97
    $region96: #{tpu_custom_call.1} parent=1 // pred_region
      %151 = dma.done [#allocation12], 16384
    $region97: #{tpu_custom_call.1} parent=1 // pred_fallthru
      _
    %v153 = vld [vmem:[%s0] sm:$0xff]
    %v154 = vld [vmem:[%s0 + $0x8] sm:$0xff]
    %v155 = vld [vmem:[%s1] sm:$0xf]
    %v156 = vld [vmem:[%s2] sm:$0x1]
    %v157 = vpack.c.bf16 %v154, %v153
    %v159 = vlaneseq
    %v160 = vshrl.u32 %v159, 7
    %v161 = vsub.s32 0, %v160
    %v162 = vrot.slane %v156, %v161
    %vm164 = vcmask 64512
    %v166 = vsel %vm164, %v157, 0
    %vm168 = vcmask 1043456
    %v170 = vsel %vm168, %v155, 0
    %172 = vmatprep.subr.bf16.mxu0 0
    %173 = vmatpush1.bf16.msra.mxu0 %v170
    %174 = vmatprep.subr.bf16.mxu0 0
    %175 = vmatpush1.bf16.msra.mxu0 0
    %176 = vmatprep.subr.bf16.mxu0 0
    %177 = vmatpush1.bf16.msra.mxu0 0
    %178 = vmatprep.subr.bf16.mxu0 0
    %179 = vmatpush1.bf16.msra.mxu0 0
    %180 = vmatprep.subr.bf16.mxu0 0
    %181 = vmatpush1.bf16.msra.mxu0 0
    %182 = vmatprep.subr.bf16.mxu0 0
    %183 = vmatpush1.bf16.msra.mxu0 0
    %184 = vmatprep.subr.bf16.mxu0 0
    %185 = vmatpush1.bf16.msra.mxu0 0
    %186 = vmatprep.subr.bf16.mxu0 0
    %187 = vmatpush1.bf16.msra.mxu0 0
    %188 = vmatprep.subr.bf16.mxu0 0
    %189 = vmatpush1.bf16.msra.mxu0 0
    %190 = vmatprep.subr.bf16.mxu0 0
    %191 = vmatpush1.bf16.msra.mxu0 0
    %192 = vmatprep.subr.bf16.mxu0 0
    %193 = vmatpush1.bf16.msra.mxu0 0
    %194 = vmatprep.subr.bf16.mxu0 0
    %195 = vmatpush1.bf16.msra.mxu0 0
    %196 = vmatprep.subr.bf16.mxu0 0
    %197 = vmatpush1.bf16.msra.mxu0 0
    %198 = vmatprep.subr.bf16.mxu0 0
    %199 = vmatpush1.bf16.msra.mxu0 0
    %200 = vmatprep.subr.bf16.mxu0 0
    %201 = vmatpush1.bf16.msra.mxu0 0
    %202 = vmatprep.subr.bf16.mxu0 0
    %203 = vmatpush1.bf16.msra.mxu0 0
    %204 = vmatprep.mubr.bf16.mxu0 0
    %205 = vmatmul.mubr.bf16.gmra.mrb[0].mxu0 %v166
    %v206 = vpop.f32.mrb[0].mxu0
    %v207 = vadd.f32 %v162, %v206
    %v208 = vpop.f32.mrb[0].mxu0
    %v209 = vpop.f32.mrb[0].mxu0
    %v210 = vadd.f32 %v162, %v209
    %v211 = vpop.f32.mrb[0].mxu0
    %212 = vdwg.mxu0
    %vm213 = vcmp.gt.f32.partialorder %v207, 0.0
    %vm214 = vcmp.gt.f32.partialorder %v210, 0.0
    %v215 = vmul.f32 %v207, 0.01
    %v216 = vmul.f32 %v210, 0.01
    %v217 = vsel %vm213, %v207, %v215
    %v218 = vsel %vm214, %v210, %v216
    %v219 = vld [vmem:[#allocation2] sm:$0xff]
    %v220 = vld [vmem:[#allocation2 + $0x8] sm:$0xff]
    %v221 = vld [vmem:[#allocation2 + $0x10] sm:$0xff]
    %v222 = vld [vmem:[#allocation2 + $0x18] sm:$0xff]
    %v223 = vld [vmem:[#allocation2 + $0x20] sm:$0xff]
    %v224 = vld [vmem:[#allocation2 + $0x28] sm:$0xff]
    %v225 = vld [vmem:[#allocation2 + $0x30] sm:$0xff]
    %v226 = vld [vmem:[#allocation2 + $0x38] sm:$0xff]
    %v227 = vld [vmem:[#allocation2 + $0x40] sm:$0xff]
    %v228 = vld [vmem:[#allocation2 + $0x48] sm:$0xff]
    %v229 = vld [vmem:[#allocation2 + $0x50] sm:$0xff]
    %v230 = vld [vmem:[#allocation2 + $0x58] sm:$0xff]
    %v231 = vld [vmem:[#allocation2 + $0x60] sm:$0xff]
    %v232 = vld [vmem:[#allocation2 + $0x68] sm:$0xff]
    %v233 = vld [vmem:[#allocation2 + $0x70] sm:$0xff]
    %v234 = vld [vmem:[#allocation2 + $0x78] sm:$0xff]
    %v235 = vld [vmem:[%s4] sm:$0x3]
    %v236 = vpack.c.bf16 %v218, %v217
    %v238 = vlaneseq
    %v239 = vshrl.u32 %v238, 7
    %v240 = vsub.s32 0, %v239
    %v241 = vrot.slane %v235, %v240
    %v242 = vlaneseq
    %v243 = vshrl.u32 %v242, 7
    %v244 = vsub.s32 1, %v243
    %v245 = vrot.slane %v235, %v244
    %v264 = vunpack.c.l.b16 %v219
    %v265 = vunpack.c.h.b16 %v219
    %v266 = vunpack.c.l.b16 %v220
    %v267 = vunpack.c.h.b16 %v220
    %v268 = vunpack.c.l.b16 %v221
    %v269 = vunpack.c.h.b16 %v221
    %v270 = vunpack.c.l.b16 %v222
    %v271 = vunpack.c.h.b16 %v222
    %v272 = vunpack.c.l.b16 %v223
    %v273 = vunpack.c.h.b16 %v223
    %v274 = vunpack.c.l.b16 %v224
    %v275 = vunpack.c.h.b16 %v224
    %v276 = vunpack.c.l.b16 %v225
    %v277 = vunpack.c.h.b16 %v225
    %v278 = vunpack.c.l.b16 %v226
    %v279 = vunpack.c.h.b16 %v226
    %v280 = vunpack.c.l.b16 %v227
    %v281 = vunpack.c.h.b16 %v227
    %v282 = vunpack.c.l.b16 %v228
    %v283 = vunpack.c.h.b16 %v228
    %v284 = vunpack.c.l.b16 %v229
    %v285 = vunpack.c.h.b16 %v229
    %v286 = vunpack.c.l.b16 %v230
    %v287 = vunpack.c.h.b16 %v230
    %v288 = vunpack.c.l.b16 %v231
    %v289 = vunpack.c.h.b16 %v231
    %v290 = vunpack.c.l.b16 %v232
    %v291 = vunpack.c.h.b16 %v232
    %v292 = vunpack.c.l.b16 %v233
    %v293 = vunpack.c.h.b16 %v233
    %v294 = vunpack.c.l.b16 %v234
    %v295 = vunpack.c.h.b16 %v234
    %v296 = vpack.c.b16 %v266, %v264
    %v297 = vpack.c.b16 %v267, %v265
    %v298 = vpack.c.b16 %v270, %v268
    %v299 = vpack.c.b16 %v271, %v269
    %v300 = vpack.c.b16 %v274, %v272
    %v301 = vpack.c.b16 %v275, %v273
    %v302 = vpack.c.b16 %v278, %v276
    %v303 = vpack.c.b16 %v279, %v277
    %v304 = vpack.c.b16 %v282, %v280
    %v305 = vpack.c.b16 %v283, %v281
    %v306 = vpack.c.b16 %v286, %v284
    %v307 = vpack.c.b16 %v287, %v285
    %v308 = vpack.c.b16 %v290, %v288
    %v309 = vpack.c.b16 %v291, %v289
    %v310 = vpack.c.b16 %v294, %v292
    %v311 = vpack.c.b16 %v295, %v293
    %328 = vmatprep.subr.bf16.mxu0 %v297
    %329 = vmatpush1.bf16.msra.mxu0 %v296
    %330 = vmatprep.subr.bf16.mxu0 %v299
    %331 = vmatpush1.bf16.msra.mxu0 %v298
    %332 = vmatprep.subr.bf16.mxu0 %v301
    %333 = vmatpush1.bf16.msra.mxu0 %v300
    %334 = vmatprep.subr.bf16.mxu0 %v303
    %335 = vmatpush1.bf16.msra.mxu0 %v302
    %336 = vmatprep.subr.bf16.mxu0 %v305
    %337 = vmatpush1.bf16.msra.mxu0 %v304
    %338 = vmatprep.subr.bf16.mxu0 %v307
    %339 = vmatpush1.bf16.msra.mxu0 %v306
    %340 = vmatprep.subr.bf16.mxu0 %v309
    %341 = vmatpush1.bf16.msra.mxu0 %v308
    %342 = vmatprep.subr.bf16.mxu0 %v311
    %343 = vmatpush1.bf16.msra.mxu0 %v310
    %344 = vmatprep.subr.bf16.mxu0 0
    %345 = vmatpush1.bf16.msra.mxu0 0
    %346 = vmatprep.subr.bf16.mxu0 0
    %347 = vmatpush1.bf16.msra.mxu0 0
    %348 = vmatprep.subr.bf16.mxu0 0
    %349 = vmatpush1.bf16.msra.mxu0 0
    %350 = vmatprep.subr.bf16.mxu0 0
    %351 = vmatpush1.bf16.msra.mxu0 0
    %352 = vmatprep.subr.bf16.mxu0 0
    %353 = vmatpush1.bf16.msra.mxu0 0
    %354 = vmatprep.subr.bf16.mxu0 0
    %355 = vmatpush1.bf16.msra.mxu0 0
    %356 = vmatprep.subr.bf16.mxu0 0
    %357 = vmatpush1.bf16.msra.mxu0 0
    %358 = vmatprep.subr.bf16.mxu0 0
    %359 = vmatpush1.bf16.msra.mxu0 0
    %360 = vmatprep.mubr.bf16.mxu0 0
    %361 = vmatmul.mubr.bf16.gmra.mrb[0].mxu0 %v236
    %v362 = vpop.f32.mrb[0].mxu0
    %v363 = vadd.f32 %v241, %v362
    %v364 = vpop.f32.mrb[0].mxu0
    %v365 = vadd.f32 %v245, %v364
    %v366 = vpop.f32.mrb[0].mxu0
    %v367 = vadd.f32 %v241, %v366
    %v368 = vpop.f32.mrb[0].mxu0
    %v369 = vadd.f32 %v245, %v368
    %370 = vdwg.mxu0
    %vm371 = vcmp.gt.f32.partialorder %v363, 0.0
    %vm372 = vcmp.gt.f32.partialorder %v365, 0.0
    %vm373 = vcmp.gt.f32.partialorder %v367, 0.0
    %vm374 = vcmp.gt.f32.partialorder %v369, 0.0
    %v375 = vmul.f32 %v363, 0.01
    %v376 = vmul.f32 %v365, 0.01
    %v377 = vmul.f32 %v367, 0.01
    %v378 = vmul.f32 %v369, 0.01
    %v379 = vsel %vm371, %v363, %v375
    %v380 = vsel %vm372, %v365, %v376
    %v381 = vsel %vm373, %v367, %v377
    %v382 = vsel %vm374, %v369, %v378
    %v383 = vld [vmem:[#allocation5] sm:$0xff]
    %v384 = vld [vmem:[#allocation5 + $0x8] sm:$0xff]
    %v385 = vld [vmem:[#allocation5 + $0x10] sm:$0xff]
    %v386 = vld [vmem:[#allocation5 + $0x18] sm:$0xff]
    %v387 = vld [vmem:[#allocation5 + $0x20] sm:$0xff]
    %v388 = vld [vmem:[#allocation5 + $0x28] sm:$0xff]
    %v389 = vld [vmem:[#allocation5 + $0x30] sm:$0xff]
    %v390 = vld [vmem:[#allocation5 + $0x38] sm:$0xff]
    %v391 = vld [vmem:[#allocation5 + $0x40] sm:$0xff]
    %v392 = vld [vmem:[#allocation5 + $0x48] sm:$0xff]
    %v393 = vld [vmem:[#allocation5 + $0x50] sm:$0xff]
    %v394 = vld [vmem:[#allocation5 + $0x58] sm:$0xff]
    %v395 = vld [vmem:[#allocation5 + $0x60] sm:$0xff]
    %v396 = vld [vmem:[#allocation5 + $0x68] sm:$0xff]
    %v397 = vld [vmem:[#allocation5 + $0x70] sm:$0xff]
    %v398 = vld [vmem:[#allocation5 + $0x78] sm:$0xff]
    %v399 = vld [vmem:[#allocation5 + $0x80] sm:$0xff]
    %v400 = vld [vmem:[#allocation5 + $0x88] sm:$0xff]
    %v401 = vld [vmem:[#allocation5 + $0x90] sm:$0xff]
    %v402 = vld [vmem:[#allocation5 + $0x98] sm:$0xff]
    %v403 = vld [vmem:[#allocation5 + $0xa0] sm:$0xff]
    %v404 = vld [vmem:[#allocation5 + $0xa8] sm:$0xff]
    %v405 = vld [vmem:[#allocation5 + $0xb0] sm:$0xff]
    %v406 = vld [vmem:[#allocation5 + $0xb8] sm:$0xff]
    %v407 = vld [vmem:[#allocation5 + $0xc0] sm:$0xff]
    %v408 = vld [vmem:[#allocation5 + $0xc8] sm:$0xff]
    %v409 = vld [vmem:[#allocation5 + $0xd0] sm:$0xff]
    %v410 = vld [vmem:[#allocation5 + $0xd8] sm:$0xff]
    %v411 = vld [vmem:[#allocation5 + $0xe0] sm:$0xff]
    %v412 = vld [vmem:[#allocation5 + $0xe8] sm:$0xff]
    %v413 = vld [vmem:[#allocation5 + $0xf0] sm:$0xff]
    %v414 = vld [vmem:[#allocation5 + $0xf8] sm:$0xff]
    %v415 = vld [vmem:[%s6] sm:$0x3]
    %v416 = vpack.c.bf16 %v381, %v379
    %v417 = vpack.c.bf16 %v382, %v380
    %v419 = vlaneseq
    %v420 = vshrl.u32 %v419, 7
    %v421 = vsub.s32 0, %v420
    %v422 = vrot.slane %v415, %v421
    %v423 = vlaneseq
    %v424 = vshrl.u32 %v423, 7
    %v425 = vsub.s32 1, %v424
    %v426 = vrot.slane %v415, %v425
    %v461 = vunpack.c.l.b16 %v383
    %v462 = vunpack.c.h.b16 %v383
    %v463 = vunpack.c.l.b16 %v384
    %v464 = vunpack.c.h.b16 %v384
    %v465 = vunpack.c.l.b16 %v385
    %v466 = vunpack.c.h.b16 %v385
    %v467 = vunpack.c.l.b16 %v386
    %v468 = vunpack.c.h.b16 %v386
    %v469 = vunpack.c.l.b16 %v387
    %v470 = vunpack.c.h.b16 %v387
    %v471 = vunpack.c.l.b16 %v388
    %v472 = vunpack.c.h.b16 %v388
    %v473 = vunpack.c.l.b16 %v389
    %v474 = vunpack.c.h.b16 %v389
    %v475 = vunpack.c.l.b16 %v390
    %v476 = vunpack.c.h.b16 %v390
    %v477 = vunpack.c.l.b16 %v391
    %v478 = vunpack.c.h.b16 %v391
    %v479 = vunpack.c.l.b16 %v392
    %v480 = vunpack.c.h.b16 %v392
    %v481 = vunpack.c.l.b16 %v393
    %v482 = vunpack.c.h.b16 %v393
    %v483 = vunpack.c.l.b16 %v394
    %v484 = vunpack.c.h.b16 %v394
    %v485 = vunpack.c.l.b16 %v395
    %v486 = vunpack.c.h.b16 %v395
    %v487 = vunpack.c.l.b16 %v396
    %v488 = vunpack.c.h.b16 %v396
    %v489 = vunpack.c.l.b16 %v397
    %v490 = vunpack.c.h.b16 %v397
    %v491 = vunpack.c.l.b16 %v398
    %v492 = vunpack.c.h.b16 %v398
    %v493 = vunpack.c.l.b16 %v399
    %v494 = vunpack.c.h.b16 %v399
    %v495 = vunpack.c.l.b16 %v400
    %v496 = vunpack.c.h.b16 %v400
    %v497 = vunpack.c.l.b16 %v401
    %v498 = vunpack.c.h.b16 %v401
    %v499 = vunpack.c.l.b16 %v402
    %v500 = vunpack.c.h.b16 %v402
    %v501 = vunpack.c.l.b16 %v403
    %v502 = vunpack.c.h.b16 %v403
    %v503 = vunpack.c.l.b16 %v404
    %v504 = vunpack.c.h.b16 %v404
    %v505 = vunpack.c.l.b16 %v405
    %v506 = vunpack.c.h.b16 %v405
    %v507 = vunpack.c.l.b16 %v406
    %v508 = vunpack.c.h.b16 %v406
    %v509 = vunpack.c.l.b16 %v407
    %v510 = vunpack.c.h.b16 %v407
    %v511 = vunpack.c.l.b16 %v408
    %v512 = vunpack.c.h.b16 %v408
    %v513 = vunpack.c.l.b16 %v409
    %v514 = vunpack.c.h.b16 %v409
    %v515 = vunpack.c.l.b16 %v410
    %v516 = vunpack.c.h.b16 %v410
    %v517 = vunpack.c.l.b16 %v411
    %v518 = vunpack.c.h.b16 %v411
    %v519 = vunpack.c.l.b16 %v412
    %v520 = vunpack.c.h.b16 %v412
    %v521 = vunpack.c.l.b16 %v413
    %v522 = vunpack.c.h.b16 %v413
    %v523 = vunpack.c.l.b16 %v414
    %v524 = vunpack.c.h.b16 %v414
    %v525 = vpack.c.b16 %v463, %v461
    %v526 = vpack.c.b16 %v464, %v462
    %v527 = vpack.c.b16 %v467, %v465
    %v528 = vpack.c.b16 %v468, %v466
    %v529 = vpack.c.b16 %v471, %v469
    %v530 = vpack.c.b16 %v472, %v470
    %v531 = vpack.c.b16 %v475, %v473
    %v532 = vpack.c.b16 %v476, %v474
    %v533 = vpack.c.b16 %v479, %v477
    %v534 = vpack.c.b16 %v480, %v478
    %v535 = vpack.c.b16 %v483, %v481
    %v536 = vpack.c.b16 %v484, %v482
    %v537 = vpack.c.b16 %v487, %v485
    %v538 = vpack.c.b16 %v488, %v486
    %v539 = vpack.c.b16 %v491, %v489
    %v540 = vpack.c.b16 %v492, %v490
    %v541 = vpack.c.b16 %v495, %v493
    %v542 = vpack.c.b16 %v496, %v494
    %v543 = vpack.c.b16 %v499, %v497
    %v544 = vpack.c.b16 %v500, %v498
    %v545 = vpack.c.b16 %v503, %v501
    %v546 = vpack.c.b16 %v504, %v502
    %v547 = vpack.c.b16 %v507, %v505
    %v548 = vpack.c.b16 %v508, %v506
    %v549 = vpack.c.b16 %v511, %v509
    %v550 = vpack.c.b16 %v512, %v510
    %v551 = vpack.c.b16 %v515, %v513
    %v552 = vpack.c.b16 %v516, %v514
    %v553 = vpack.c.b16 %v519, %v517
    %v554 = vpack.c.b16 %v520, %v518
    %v555 = vpack.c.b16 %v523, %v521
    %v556 = vpack.c.b16 %v524, %v522
    %589 = vmatprep.subr.bf16.mxu0 %v526
    %590 = vmatpush1.bf16.msra.mxu0 %v525
    %591 = vmatprep.subr.bf16.mxu0 %v528
    %592 = vmatpush1.bf16.msra.mxu0 %v527
    %593 = vmatprep.subr.bf16.mxu0 %v530
    %594 = vmatpush1.bf16.msra.mxu0 %v529
    %595 = vmatprep.subr.bf16.mxu0 %v532
    %596 = vmatpush1.bf16.msra.mxu0 %v531
    %597 = vmatprep.subr.bf16.mxu0 %v534
    %598 = vmatpush1.bf16.msra.mxu0 %v533
    %599 = vmatprep.subr.bf16.mxu0 %v536
    %600 = vmatpush1.bf16.msra.mxu0 %v535
    %601 = vmatprep.subr.bf16.mxu0 %v538
    %602 = vmatpush1.bf16.msra.mxu0 %v537
    %603 = vmatprep.subr.bf16.mxu0 %v540
    %604 = vmatpush1.bf16.msra.mxu0 %v539
    %605 = vmatprep.subr.bf16.mxu0 %v542
    %606 = vmatpush1.bf16.msra.mxu0 %v541
    %607 = vmatprep.subr.bf16.mxu0 %v544
    %608 = vmatpush1.bf16.msra.mxu0 %v543
    %609 = vmatprep.subr.bf16.mxu0 %v546
    %610 = vmatpush1.bf16.msra.mxu0 %v545
    %611 = vmatprep.subr.bf16.mxu0 %v548
    %612 = vmatpush1.bf16.msra.mxu0 %v547
    %613 = vmatprep.subr.bf16.mxu0 %v550
    %614 = vmatpush1.bf16.msra.mxu0 %v549
    %615 = vmatprep.subr.bf16.mxu0 %v552
    %616 = vmatpush1.bf16.msra.mxu0 %v551
    %617 = vmatprep.subr.bf16.mxu0 %v554
    %618 = vmatpush1.bf16.msra.mxu0 %v553
    %619 = vmatprep.subr.bf16.mxu0 %v556
    %620 = vmatpush1.bf16.msra.mxu0 %v555
    %621 = vmatprep.mubr.bf16.mxu0 %v417
    %622 = vmatmul.mubr.bf16.gmra.mrb[0].mxu0 %v416
    %v623 = vpop.f32.mrb[0].mxu0
    %v624 = vadd.f32 %v422, %v623
    %v625 = vpop.f32.mrb[0].mxu0
    %v626 = vadd.f32 %v426, %v625
    %v627 = vpop.f32.mrb[0].mxu0
    %v628 = vadd.f32 %v422, %v627
    %v629 = vpop.f32.mrb[0].mxu0
    %v630 = vadd.f32 %v426, %v629
    %631 = vdwg.mxu0
    %vm632 = vcmp.gt.f32.partialorder %v624, 0.0
    %vm633 = vcmp.gt.f32.partialorder %v626, 0.0
    %vm634 = vcmp.gt.f32.partialorder %v628, 0.0
    %vm635 = vcmp.gt.f32.partialorder %v630, 0.0
    %v636 = vmul.f32 %v624, 0.01
    %v637 = vmul.f32 %v626, 0.01
    %v638 = vmul.f32 %v628, 0.01
    %v639 = vmul.f32 %v630, 0.01
    %v640 = vsel %vm632, %v624, %v636
    %v641 = vsel %vm633, %v626, %v637
    %v642 = vsel %vm634, %v628, %v638
    %v643 = vsel %vm635, %v630, %v639
    %v644 = vld [vmem:[#allocation7] sm:$0xff]
    %v645 = vld [vmem:[#allocation7 + $0x8] sm:$0xf]
    %v646 = vld [vmem:[#allocation7 + $0xc] sm:$0xff]
    %v647 = vld [vmem:[#allocation7 + $0x14] sm:$0xf]
    %v648 = vld [vmem:[#allocation7 + $0x18] sm:$0xff]
    %v649 = vld [vmem:[#allocation7 + $0x20] sm:$0xf]
    %v650 = vld [vmem:[#allocation7 + $0x24] sm:$0xff]
    %v651 = vld [vmem:[#allocation7 + $0x2c] sm:$0xf]
    %v652 = vld [vmem:[#allocation7 + $0x30] sm:$0xff]
    %v653 = vld [vmem:[#allocation7 + $0x38] sm:$0xf]
    %v654 = vld [vmem:[#allocation7 + $0x3c] sm:$0xff]
    %v655 = vld [vmem:[#allocation7 + $0x44] sm:$0xf]
    %v656 = vld [vmem:[#allocation7 + $0x48] sm:$0xff]
    %v657 = vld [vmem:[#allocation7 + $0x50] sm:$0xf]
    %v658 = vld [vmem:[#allocation7 + $0x54] sm:$0xff]
    %v659 = vld [vmem:[#allocation7 + $0x5c] sm:$0xf]
    %v660 = vld [vmem:[#allocation7 + $0x60] sm:$0xff]
    %v661 = vld [vmem:[#allocation7 + $0x68] sm:$0xf]
    %v662 = vld [vmem:[#allocation7 + $0x6c] sm:$0xff]
    %v663 = vld [vmem:[#allocation7 + $0x74] sm:$0xf]
    %v664 = vld [vmem:[#allocation7 + $0x78] sm:$0xff]
    %v665 = vld [vmem:[#allocation7 + $0x80] sm:$0xf]
    %v666 = vld [vmem:[#allocation7 + $0x84] sm:$0xff]
    %v667 = vld [vmem:[#allocation7 + $0x8c] sm:$0xf]
    %v668 = vld [vmem:[#allocation7 + $0x90] sm:$0xff]
    %v669 = vld [vmem:[#allocation7 + $0x98] sm:$0xf]
    %v670 = vld [vmem:[#allocation7 + $0x9c] sm:$0xff]
    %v671 = vld [vmem:[#allocation7 + $0xa4] sm:$0xf]
    %v672 = vld [vmem:[#allocation7 + $0xa8] sm:$0xff]
    %v673 = vld [vmem:[#allocation7 + $0xb0] sm:$0xf]
    %v674 = vld [vmem:[#allocation7 + $0xb4] sm:$0xff]
    %v675 = vld [vmem:[#allocation7 + $0xbc] sm:$0xf]
    %v676 = vld [vmem:[#allocation7 + $0xc0] sm:$0xff]
    %v677 = vld [vmem:[#allocation7 + $0xc8] sm:$0xf]
    %v678 = vld [vmem:[#allocation7 + $0xcc] sm:$0xff]
    %v679 = vld [vmem:[#allocation7 + $0xd4] sm:$0xf]
    %v680 = vld [vmem:[#allocation7 + $0xd8] sm:$0xff]
    %v681 = vld [vmem:[#allocation7 + $0xe0] sm:$0xf]
    %v682 = vld [vmem:[#allocation7 + $0xe4] sm:$0xff]
    %v683 = vld [vmem:[#allocation7 + $0xec] sm:$0xf]
    %v684 = vld [vmem:[#allocation7 + $0xf0] sm:$0xff]
    %v685 = vld [vmem:[#allocation7 + $0xf8] sm:$0xf]
    %v686 = vld [vmem:[#allocation7 + $0xfc] sm:$0xff]
    %v687 = vld [vmem:[#allocation7 + $0x104] sm:$0xf]
    %v688 = vld [vmem:[#allocation7 + $0x108] sm:$0xff]
    %v689 = vld [vmem:[#allocation7 + $0x110] sm:$0xf]
    %v690 = vld [vmem:[#allocation7 + $0x114] sm:$0xff]
    %v691 = vld [vmem:[#allocation7 + $0x11c] sm:$0xf]
    %v692 = vld [vmem:[#allocation7 + $0x120] sm:$0xff]
    %v693 = vld [vmem:[#allocation7 + $0x128] sm:$0xf]
    %v694 = vld [vmem:[#allocation7 + $0x12c] sm:$0xff]
    %v695 = vld [vmem:[#allocation7 + $0x134] sm:$0xf]
    %v696 = vld [vmem:[#allocation7 + $0x138] sm:$0xff]
    %v697 = vld [vmem:[#allocation7 + $0x140] sm:$0xf]
    %v698 = vld [vmem:[#allocation7 + $0x144] sm:$0xff]
    %v699 = vld [vmem:[#allocation7 + $0x14c] sm:$0xf]
    %v700 = vld [vmem:[#allocation7 + $0x150] sm:$0xff]
    %v701 = vld [vmem:[#allocation7 + $0x158] sm:$0xf]
    %v702 = vld [vmem:[#allocation7 + $0x15c] sm:$0xff]
    %v703 = vld [vmem:[#allocation7 + $0x164] sm:$0xf]
    %v704 = vld [vmem:[#allocation7 + $0x168] sm:$0xff]
    %v705 = vld [vmem:[#allocation7 + $0x170] sm:$0xf]
    %v706 = vld [vmem:[#allocation7 + $0x174] sm:$0xff]
    %v707 = vld [vmem:[#allocation7 + $0x17c] sm:$0xf]
    %v708 = vld [vmem:[%s8] sm:$0x7]
    %v709 = vpack.c.bf16 %v642, %v640
    %v710 = vpack.c.bf16 %v643, %v641
    %v712 = vlaneseq
    %v713 = vshrl.u32 %v712, 7
    %v714 = vsub.s32 0, %v713
    %v715 = vrot.slane %v708, %v714
    %v716 = vlaneseq
    %v717 = vshrl.u32 %v716, 7
    %v718 = vsub.s32 1, %v717
    %v719 = vrot.slane %v708, %v718
    %v720 = vlaneseq
    %v721 = vshrl.u32 %v720, 7
    %v722 = vsub.s32 2, %v721
    %v723 = vrot.slane %v708, %v722
    %v791 = vunpack.c.l.b16 %v644
    %v792 = vunpack.c.h.b16 %v644
    %v793 = vunpack.c.l.b16 %v645
    %v794 = vunpack.c.l.b16 %v646
    %v795 = vunpack.c.h.b16 %v646
    %v796 = vunpack.c.l.b16 %v647
    %v797 = vunpack.c.l.b16 %v648
    %v798 = vunpack.c.h.b16 %v648
    %v799 = vunpack.c.l.b16 %v649
    %v800 = vunpack.c.l.b16 %v650
    %v801 = vunpack.c.h.b16 %v650
    %v802 = vunpack.c.l.b16 %v651
    %v803 = vunpack.c.l.b16 %v652
    %v804 = vunpack.c.h.b16 %v652
    %v805 = vunpack.c.l.b16 %v653
    %v806 = vunpack.c.l.b16 %v654
    %v807 = vunpack.c.h.b16 %v654
    %v808 = vunpack.c.l.b16 %v655
    %v809 = vunpack.c.l.b16 %v656
    %v810 = vunpack.c.h.b16 %v656
    %v811 = vunpack.c.l.b16 %v657
    %v812 = vunpack.c.l.b16 %v658
    %v813 = vunpack.c.h.b16 %v658
    %v814 = vunpack.c.l.b16 %v659
    %v815 = vunpack.c.l.b16 %v660
    %v816 = vunpack.c.h.b16 %v660
    %v817 = vunpack.c.l.b16 %v661
    %v818 = vunpack.c.l.b16 %v662
    %v819 = vunpack.c.h.b16 %v662
    %v820 = vunpack.c.l.b16 %v663
    %v821 = vunpack.c.l.b16 %v664
    %v822 = vunpack.c.h.b16 %v664
    %v823 = vunpack.c.l.b16 %v665
    %v824 = vunpack.c.l.b16 %v666
    %v825 = vunpack.c.h.b16 %v666
    %v826 = vunpack.c.l.b16 %v667
    %v827 = vunpack.c.l.b16 %v668
    %v828 = vunpack.c.h.b16 %v668
    %v829 = vunpack.c.l.b16 %v669
    %v830 = vunpack.c.l.b16 %v670
    %v831 = vunpack.c.h.b16 %v670
    %v832 = vunpack.c.l.b16 %v671
    %v833 = vunpack.c.l.b16 %v672
    %v834 = vunpack.c.h.b16 %v672
    %v835 = vunpack.c.l.b16 %v673
    %v836 = vunpack.c.l.b16 %v674
    %v837 = vunpack.c.h.b16 %v674
    %v838 = vunpack.c.l.b16 %v675
    %v839 = vunpack.c.l.b16 %v676
    %v840 = vunpack.c.h.b16 %v676
    %v841 = vunpack.c.l.b16 %v677
    %v842 = vunpack.c.l.b16 %v678
    %v843 = vunpack.c.h.b16 %v678
    %v844 = vunpack.c.l.b16 %v679
    %v845 = vunpack.c.l.b16 %v680
    %v846 = vunpack.c.h.b16 %v680
    %v847 = vunpack.c.l.b16 %v681
    %v848 = vunpack.c.l.b16 %v682
    %v849 = vunpack.c.h.b16 %v682
    %v850 = vunpack.c.l.b16 %v683
    %v851 = vunpack.c.l.b16 %v684
    %v852 = vunpack.c.h.b16 %v684
    %v853 = vunpack.c.l.b16 %v685
    %v854 = vunpack.c.l.b16 %v686
    %v855 = vunpack.c.h.b16 %v686
    %v856 = vunpack.c.l.b16 %v687
    %v857 = vunpack.c.l.b16 %v688
    %v858 = vunpack.c.h.b16 %v688
    %v859 = vunpack.c.l.b16 %v689
    %v860 = vunpack.c.l.b16 %v690
    %v861 = vunpack.c.h.b16 %v690
    %v862 = vunpack.c.l.b16 %v691
    %v863 = vunpack.c.l.b16 %v692
    %v864 = vunpack.c.h.b16 %v692
    %v865 = vunpack.c.l.b16 %v693
    %v866 = vunpack.c.l.b16 %v694
    %v867 = vunpack.c.h.b16 %v694
    %v868 = vunpack.c.l.b16 %v695
    %v869 = vunpack.c.l.b16 %v696
    %v870 = vunpack.c.h.b16 %v696
    %v871 = vunpack.c.l.b16 %v697
    %v872 = vunpack.c.l.b16 %v698
    %v873 = vunpack.c.h.b16 %v698
    %v874 = vunpack.c.l.b16 %v699
    %v875 = vunpack.c.l.b16 %v700
    %v876 = vunpack.c.h.b16 %v700
    %v877 = vunpack.c.l.b16 %v701
    %v878 = vunpack.c.l.b16 %v702
    %v879 = vunpack.c.h.b16 %v702
    %v880 = vunpack.c.l.b16 %v703
    %v881 = vunpack.c.l.b16 %v704
    %v882 = vunpack.c.h.b16 %v704
    %v883 = vunpack.c.l.b16 %v705
    %v884 = vunpack.c.l.b16 %v706
    %v885 = vunpack.c.h.b16 %v706
    %v886 = vunpack.c.l.b16 %v707
    %v887 = vpack.c.b16 %v794, %v791
    %v888 = vpack.c.b16 %v795, %v792
    %v889 = vpack.c.b16 %v796, %v793
    %v890 = vpack.c.b16 %v800, %v797
    %v891 = vpack.c.b16 %v801, %v798
    %v892 = vpack.c.b16 %v802, %v799
    %v893 = vpack.c.b16 %v806, %v803
    %v894 = vpack.c.b16 %v807, %v804
    %v895 = vpack.c.b16 %v808, %v805
    %v896 = vpack.c.b16 %v812, %v809
    %v897 = vpack.c.b16 %v813, %v810
    %v898 = vpack.c.b16 %v814, %v811
    %v899 = vpack.c.b16 %v818, %v815
    %v900 = vpack.c.b16 %v819, %v816
    %v901 = vpack.c.b16 %v820, %v817
    %v902 = vpack.c.b16 %v824, %v821
    %v903 = vpack.c.b16 %v825, %v822
    %v904 = vpack.c.b16 %v826, %v823
    %v905 = vpack.c.b16 %v830, %v827
    %v906 = vpack.c.b16 %v831, %v828
    %v907 = vpack.c.b16 %v832, %v829
    %v908 = vpack.c.b16 %v836, %v833
    %v909 = vpack.c.b16 %v837, %v834
    %v910 = vpack.c.b16 %v838, %v835
    %v911 = vpack.c.b16 %v842, %v839
    %v912 = vpack.c.b16 %v843, %v840
    %v913 = vpack.c.b16 %v844, %v841
    %v914 = vpack.c.b16 %v848, %v845
    %v915 = vpack.c.b16 %v849, %v846
    %v916 = vpack.c.b16 %v850, %v847
    %v917 = vpack.c.b16 %v854, %v851
    %v918 = vpack.c.b16 %v855, %v852
    %v919 = vpack.c.b16 %v856, %v853
    %v920 = vpack.c.b16 %v860, %v857
    %v921 = vpack.c.b16 %v861, %v858
    %v922 = vpack.c.b16 %v862, %v859
    %v923 = vpack.c.b16 %v866, %v863
    %v924 = vpack.c.b16 %v867, %v864
    %v925 = vpack.c.b16 %v868, %v865
    %v926 = vpack.c.b16 %v872, %v869
    %v927 = vpack.c.b16 %v873, %v870
    %v928 = vpack.c.b16 %v874, %v871
    %v929 = vpack.c.b16 %v878, %v875
    %v930 = vpack.c.b16 %v879, %v876
    %v931 = vpack.c.b16 %v880, %v877
    %v932 = vpack.c.b16 %v884, %v881
    %v933 = vpack.c.b16 %v885, %v882
    %v934 = vpack.c.b16 %v886, %v883
    %983 = vmatprep.subr.bf16.mxu0 %v888
    %984 = vmatpush1.bf16.msra.mxu0 %v887
    %985 = vmatprep.subr.bf16.mxu0 %v891
    %986 = vmatpush1.bf16.msra.mxu0 %v890
    %987 = vmatprep.subr.bf16.mxu0 %v894
    %988 = vmatpush1.bf16.msra.mxu0 %v893
    %989 = vmatprep.subr.bf16.mxu0 %v897
    %990 = vmatpush1.bf16.msra.mxu0 %v896
    %991 = vmatprep.subr.bf16.mxu0 %v900
    %992 = vmatpush1.bf16.msra.mxu0 %v899
    %993 = vmatprep.subr.bf16.mxu0 %v903
    %994 = vmatpush1.bf16.msra.mxu0 %v902
    %995 = vmatprep.subr.bf16.mxu0 %v906
    %996 = vmatpush1.bf16.msra.mxu0 %v905
    %997 = vmatprep.subr.bf16.mxu0 %v909
    %998 = vmatpush1.bf16.msra.mxu0 %v908
    %999 = vmatprep.subr.bf16.mxu0 %v912
    %1000 = vmatpush1.bf16.msra.mxu0 %v911
    %1001 = vmatprep.subr.bf16.mxu0 %v915
    %1002 = vmatpush1.bf16.msra.mxu0 %v914
    %1003 = vmatprep.subr.bf16.mxu0 %v918
    %1004 = vmatpush1.bf16.msra.mxu0 %v917
    %1005 = vmatprep.subr.bf16.mxu0 %v921
    %1006 = vmatpush1.bf16.msra.mxu0 %v920
    %1007 = vmatprep.subr.bf16.mxu0 %v924
    %1008 = vmatpush1.bf16.msra.mxu0 %v923
    %1009 = vmatprep.subr.bf16.mxu0 %v927
    %1010 = vmatpush1.bf16.msra.mxu0 %v926
    %1011 = vmatprep.subr.bf16.mxu0 %v930
    %1012 = vmatpush1.bf16.msra.mxu0 %v929
    %1013 = vmatprep.subr.bf16.mxu0 %v933
    %1014 = vmatpush1.bf16.msra.mxu0 %v932
    %1015 = vmatprep.mubr.bf16.mxu0 %v710
    %1016 = vmatmul.mubr.bf16.gmra.mrb[0].mxu0 %v709
    %v1017 = vpop.f32.mrb[0].mxu0
    %v1018 = vadd.f32 %v715, %v1017
    %v1019 = vpop.f32.mrb[0].mxu0
    %v1020 = vadd.f32 %v719, %v1019
    %v1021 = vpop.f32.mrb[0].mxu0
    %v1022 = vadd.f32 %v715, %v1021
    %v1023 = vpop.f32.mrb[0].mxu0
    %v1024 = vadd.f32 %v719, %v1023
    %1025 = vdwg.mxu0
    %1026 = vmatprep.subr.bf16.mxu0 0
    %1027 = vmatpush1.bf16.msra.mxu0 %v889
    %1028 = vmatprep.subr.bf16.mxu0 0
    %1029 = vmatpush1.bf16.msra.mxu0 %v892
    %1030 = vmatprep.subr.bf16.mxu0 0
    %1031 = vmatpush1.bf16.msra.mxu0 %v895
    %1032 = vmatprep.subr.bf16.mxu0 0
    %1033 = vmatpush1.bf16.msra.mxu0 %v898
    %1034 = vmatprep.subr.bf16.mxu0 0
    %1035 = vmatpush1.bf16.msra.mxu0 %v901
    %1036 = vmatprep.subr.bf16.mxu0 0
    %1037 = vmatpush1.bf16.msra.mxu0 %v904
    %1038 = vmatprep.subr.bf16.mxu0 0
    %1039 = vmatpush1.bf16.msra.mxu0 %v907
    %1040 = vmatprep.subr.bf16.mxu0 0
    %1041 = vmatpush1.bf16.msra.mxu0 %v910
    %1042 = vmatprep.subr.bf16.mxu0 0
    %1043 = vmatpush1.bf16.msra.mxu0 %v913
    %1044 = vmatprep.subr.bf16.mxu0 0
    %1045 = vmatpush1.bf16.msra.mxu0 %v916
    %1046 = vmatprep.subr.bf16.mxu0 0
    %1047 = vmatpush1.bf16.msra.mxu0 %v919
    %1048 = vmatprep.subr.bf16.mxu0 0
    %1049 = vmatpush1.bf16.msra.mxu0 %v922
    %1050 = vmatprep.subr.bf16.mxu0 0
    %1051 = vmatpush1.bf16.msra.mxu0 %v925
    %1052 = vmatprep.subr.bf16.mxu0 0
    %1053 = vmatpush1.bf16.msra.mxu0 %v928
    %1054 = vmatprep.subr.bf16.mxu0 0
    %1055 = vmatpush1.bf16.msra.mxu0 %v931
    %1056 = vmatprep.subr.bf16.mxu0 0
    %1057 = vmatpush1.bf16.msra.mxu0 %v934
    %1058 = vmatprep.mubr.bf16.mxu0 %v710
    %1059 = vmatmul.mubr.bf16.gmra.mrb[0].mxu0 %v709
    %v1060 = vpop.f32.mrb[0].mxu0
    %v1061 = vadd.f32 %v723, %v1060
    %v1062 = vpop.f32.mrb[0].mxu0
    %v1063 = vpop.f32.mrb[0].mxu0
    %v1064 = vadd.f32 %v723, %v1063
    %v1065 = vpop.f32.mrb[0].mxu0
    %1066 = vdwg.mxu0
    %vm1067 = vcmp.gt.f32.partialorder %v1018, 0.0
    %vm1068 = vcmp.gt.f32.partialorder %v1020, 0.0
    %vm1069 = vcmp.gt.f32.partialorder %v1061, 0.0
    %vm1070 = vcmp.gt.f32.partialorder %v1022, 0.0
    %vm1071 = vcmp.gt.f32.partialorder %v1024, 0.0
    %vm1072 = vcmp.gt.f32.partialorder %v1064, 0.0
    %v1073 = vmul.f32 %v1018, 0.01
    %v1074 = vmul.f32 %v1020, 0.01
    %v1075 = vmul.f32 %v1061, 0.01
    %v1076 = vmul.f32 %v1022, 0.01
    %v1077 = vmul.f32 %v1024, 0.01
    %v1078 = vmul.f32 %v1064, 0.01
    %v1079 = vsel %vm1067, %v1018, %v1073
    %v1080 = vsel %vm1068, %v1020, %v1074
    %v1081 = vsel %vm1069, %v1061, %v1075
    %v1082 = vsel %vm1070, %v1022, %v1076
    %v1083 = vsel %vm1071, %v1024, %v1077
    %v1084 = vsel %vm1072, %v1064, %v1078
    %v1085 = vld [vmem:[#allocation8] sm:$0xff]
    %v1086 = vld [vmem:[#allocation8 + $0x8] sm:$0xf]
    %v1087 = vld [vmem:[#allocation8 + $0xc] sm:$0xff]
    %v1088 = vld [vmem:[#allocation8 + $0x14] sm:$0xf]
    %v1089 = vld [vmem:[#allocation8 + $0x18] sm:$0xff]
    %v1090 = vld [vmem:[#allocation8 + $0x20] sm:$0xf]
    %v1091 = vld [vmem:[#allocation8 + $0x24] sm:$0xff]
    %v1092 = vld [vmem:[#allocation8 + $0x2c] sm:$0xf]
    %v1093 = vld [vmem:[#allocation8 + $0x30] sm:$0xff]
    %v1094 = vld [vmem:[#allocation8 + $0x38] sm:$0xf]
    %v1095 = vld [vmem:[#allocation8 + $0x3c] sm:$0xff]
    %v1096 = vld [vmem:[#allocation8 + $0x44] sm:$0xf]
    %v1097 = vld [vmem:[#allocation8 + $0x48] sm:$0xff]
    %v1098 = vld [vmem:[#allocation8 + $0x50] sm:$0xf]
    %v1099 = vld [vmem:[#allocation8 + $0x54] sm:$0xff]
    %v1100 = vld [vmem:[#allocation8 + $0x5c] sm:$0xf]
    %v1101 = vld [vmem:[#allocation8 + $0x60] sm:$0xff]
    %v1102 = vld [vmem:[#allocation8 + $0x68] sm:$0xf]
    %v1103 = vld [vmem:[#allocation8 + $0x6c] sm:$0xff]
    %v1104 = vld [vmem:[#allocation8 + $0x74] sm:$0xf]
    %v1105 = vld [vmem:[#allocation8 + $0x78] sm:$0xff]
    %v1106 = vld [vmem:[#allocation8 + $0x80] sm:$0xf]
    %v1107 = vld [vmem:[#allocation8 + $0x84] sm:$0xff]
    %v1108 = vld [vmem:[#allocation8 + $0x8c] sm:$0xf]
    %v1109 = vld [vmem:[#allocation8 + $0x90] sm:$0xff]
    %v1110 = vld [vmem:[#allocation8 + $0x98] sm:$0xf]
    %v1111 = vld [vmem:[#allocation8 + $0x9c] sm:$0xff]
    %v1112 = vld [vmem:[#allocation8 + $0xa4] sm:$0xf]
    %v1113 = vld [vmem:[#allocation8 + $0xa8] sm:$0xff]
    %v1114 = vld [vmem:[#allocation8 + $0xb0] sm:$0xf]
    %v1115 = vld [vmem:[#allocation8 + $0xb4] sm:$0xff]
    %v1116 = vld [vmem:[#allocation8 + $0xbc] sm:$0xf]
    %v1117 = vld [vmem:[#allocation8 + $0xc0] sm:$0xff]
    %v1118 = vld [vmem:[#allocation8 + $0xc8] sm:$0xf]
    %v1119 = vld [vmem:[#allocation8 + $0xcc] sm:$0xff]
    %v1120 = vld [vmem:[#allocation8 + $0xd4] sm:$0xf]
    %v1121 = vld [vmem:[#allocation8 + $0xd8] sm:$0xff]
    %v1122 = vld [vmem:[#allocation8 + $0xe0] sm:$0xf]
    %v1123 = vld [vmem:[#allocation8 + $0xe4] sm:$0xff]
    %v1124 = vld [vmem:[#allocation8 + $0xec] sm:$0xf]
    %v1125 = vld [vmem:[#allocation8 + $0xf0] sm:$0xff]
    %v1126 = vld [vmem:[#allocation8 + $0xf8] sm:$0xf]
    %v1127 = vld [vmem:[#allocation8 + $0xfc] sm:$0xff]
    %v1128 = vld [vmem:[#allocation8 + $0x104] sm:$0xf]
    %v1129 = vld [vmem:[#allocation8 + $0x108] sm:$0xff]
    %v1130 = vld [vmem:[#allocation8 + $0x110] sm:$0xf]
    %v1131 = vld [vmem:[#allocation8 + $0x114] sm:$0xff]
    %v1132 = vld [vmem:[#allocation8 + $0x11c] sm:$0xf]
    %v1133 = vld [vmem:[#allocation8 + $0x120] sm:$0xff]
    %v1134 = vld [vmem:[#allocation8 + $0x128] sm:$0xf]
    %v1135 = vld [vmem:[#allocation8 + $0x12c] sm:$0xff]
    %v1136 = vld [vmem:[#allocation8 + $0x134] sm:$0xf]
    %v1137 = vld [vmem:[#allocation8 + $0x138] sm:$0xff]
    %v1138 = vld [vmem:[#allocation8 + $0x140] sm:$0xf]
    %v1139 = vld [vmem:[#allocation8 + $0x144] sm:$0xff]
    %v1140 = vld [vmem:[#allocation8 + $0x14c] sm:$0xf]
    %v1141 = vld [vmem:[#allocation8 + $0x150] sm:$0xff]
    %v1142 = vld [vmem:[#allocation8 + $0x158] sm:$0xf]
    %v1143 = vld [vmem:[#allocation8 + $0x15c] sm:$0xff]
    %v1144 = vld [vmem:[#allocation8 + $0x164] sm:$0xf]
    %v1145 = vld [vmem:[#allocation8 + $0x168] sm:$0xff]
    %v1146 = vld [vmem:[#allocation8 + $0x170] sm:$0xf]
    %v1147 = vld [vmem:[#allocation8 + $0x174] sm:$0xff]
    %v1148 = vld [vmem:[#allocation8 + $0x17c] sm:$0xf]
    %v1149 = vld [vmem:[#allocation8 + $0x180] sm:$0xff]
    %v1150 = vld [vmem:[#allocation8 + $0x188] sm:$0xf]
    %v1151 = vld [vmem:[#allocation8 + $0x18c] sm:$0xff]
    %v1152 = vld [vmem:[#allocation8 + $0x194] sm:$0xf]
    %v1153 = vld [vmem:[#allocation8 + $0x198] sm:$0xff]
    %v1154 = vld [vmem:[#allocation8 + $0x1a0] sm:$0xf]
    %v1155 = vld [vmem:[#allocation8 + $0x1a4] sm:$0xff]
    %v1156 = vld [vmem:[#allocation8 + $0x1ac] sm:$0xf]
    %v1157 = vld [vmem:[#allocation8 + $0x1b0] sm:$0xff]
    %v1158 = vld [vmem:[#allocation8 + $0x1b8] sm:$0xf]
    %v1159 = vld [vmem:[#allocation8 + $0x1bc] sm:$0xff]
    %v1160 = vld [vmem:[#allocation8 + $0x1c4] sm:$0xf]
    %v1161 = vld [vmem:[#allocation8 + $0x1c8] sm:$0xff]
    %v1162 = vld [vmem:[#allocation8 + $0x1d0] sm:$0xf]
    %v1163 = vld [vmem:[#allocation8 + $0x1d4] sm:$0xff]
    %v1164 = vld [vmem:[#allocation8 + $0x1dc] sm:$0xf]
    %v1165 = vld [vmem:[#allocation8 + $0x1e0] sm:$0xff]
    %v1166 = vld [vmem:[#allocation8 + $0x1e8] sm:$0xf]
    %v1167 = vld [vmem:[#allocation8 + $0x1ec] sm:$0xff]
    %v1168 = vld [vmem:[#allocation8 + $0x1f4] sm:$0xf]
    %v1169 = vld [vmem:[#allocation8 + $0x1f8] sm:$0xff]
    %v1170 = vld [vmem:[#allocation8 + $0x200] sm:$0xf]
    %v1171 = vld [vmem:[#allocation8 + $0x204] sm:$0xff]
    %v1172 = vld [vmem:[#allocation8 + $0x20c] sm:$0xf]
    %v1173 = vld [vmem:[#allocation8 + $0x210] sm:$0xff]
    %v1174 = vld [vmem:[#allocation8 + $0x218] sm:$0xf]
    %v1175 = vld [vmem:[#allocation8 + $0x21c] sm:$0xff]
    %v1176 = vld [vmem:[#allocation8 + $0x224] sm:$0xf]
    %v1177 = vld [vmem:[#allocation8 + $0x228] sm:$0xff]
    %v1178 = vld [vmem:[#allocation8 + $0x230] sm:$0xf]
    %v1179 = vld [vmem:[#allocation8 + $0x234] sm:$0xff]
    %v1180 = vld [vmem:[#allocation8 + $0x23c] sm:$0xf]
    %v1181 = vld [vmem:[%s10] sm:$0x7]
    %v1182 = vpack.c.bf16 %v1082, %v1079
    %v1183 = vpack.c.bf16 %v1083, %v1080
    %v1184 = vpack.c.bf16 %v1084, %v1081
    %v1186 = vlaneseq
    %v1187 = vshrl.u32 %v1186, 7
    %v1188 = vsub.s32 0, %v1187
    %v1189 = vrot.slane %v1181, %v1188
    %v1190 = vlaneseq
    %v1191 = vshrl.u32 %v1190, 7
    %v1192 = vsub.s32 1, %v1191
    %v1193 = vrot.slane %v1181, %v1192
    %v1194 = vlaneseq
    %v1195 = vshrl.u32 %v1194, 7
    %v1196 = vsub.s32 2, %v1195
    %v1197 = vrot.slane %v1181, %v1196
    %v1297 = vunpack.c.l.b16 %v1085
    %v1298 = vunpack.c.h.b16 %v1085
    %v1299 = vunpack.c.l.b16 %v1086
    %v1300 = vunpack.c.l.b16 %v1087
    %v1301 = vunpack.c.h.b16 %v1087
    %v1302 = vunpack.c.l.b16 %v1088
    %v1303 = vunpack.c.l.b16 %v1089
    %v1304 = vunpack.c.h.b16 %v1089
    %v1305 = vunpack.c.l.b16 %v1090
    %v1306 = vunpack.c.l.b16 %v1091
    %v1307 = vunpack.c.h.b16 %v1091
    %v1308 = vunpack.c.l.b16 %v1092
    %v1309 = vunpack.c.l.b16 %v1093
    %v1310 = vunpack.c.h.b16 %v1093
    %v1311 = vunpack.c.l.b16 %v1094
    %v1312 = vunpack.c.l.b16 %v1095
    %v1313 = vunpack.c.h.b16 %v1095
    %v1314 = vunpack.c.l.b16 %v1096
    %v1315 = vunpack.c.l.b16 %v1097
    %v1316 = vunpack.c.h.b16 %v1097
    %v1317 = vunpack.c.l.b16 %v1098
    %v1318 = vunpack.c.l.b16 %v1099
    %v1319 = vunpack.c.h.b16 %v1099
    %v1320 = vunpack.c.l.b16 %v1100
    %v1321 = vunpack.c.l.b16 %v1101
    %v1322 = vunpack.c.h.b16 %v1101
    %v1323 = vunpack.c.l.b16 %v1102
    %v1324 = vunpack.c.l.b16 %v1103
    %v1325 = vunpack.c.h.b16 %v1103
    %v1326 = vunpack.c.l.b16 %v1104
    %v1327 = vunpack.c.l.b16 %v1105
    %v1328 = vunpack.c.h.b16 %v1105
    %v1329 = vunpack.c.l.b16 %v1106
    %v1330 = vunpack.c.l.b16 %v1107
    %v1331 = vunpack.c.h.b16 %v1107
    %v1332 = vunpack.c.l.b16 %v1108
    %v1333 = vunpack.c.l.b16 %v1109
    %v1334 = vunpack.c.h.b16 %v1109
    %v1335 = vunpack.c.l.b16 %v1110
    %v1336 = vunpack.c.l.b16 %v1111
    %v1337 = vunpack.c.h.b16 %v1111
    %v1338 = vunpack.c.l.b16 %v1112
    %v1339 = vunpack.c.l.b16 %v1113
    %v1340 = vunpack.c.h.b16 %v1113
    %v1341 = vunpack.c.l.b16 %v1114
    %v1342 = vunpack.c.l.b16 %v1115
    %v1343 = vunpack.c.h.b16 %v1115
    %v1344 = vunpack.c.l.b16 %v1116
    %v1345 = vunpack.c.l.b16 %v1117
    %v1346 = vunpack.c.h.b16 %v1117
    %v1347 = vunpack.c.l.b16 %v1118
    %v1348 = vunpack.c.l.b16 %v1119
    %v1349 = vunpack.c.h.b16 %v1119
    %v1350 = vunpack.c.l.b16 %v1120
    %v1351 = vunpack.c.l.b16 %v1121
    %v1352 = vunpack.c.h.b16 %v1121
    %v1353 = vunpack.c.l.b16 %v1122
    %v1354 = vunpack.c.l.b16 %v1123
    %v1355 = vunpack.c.h.b16 %v1123
    %v1356 = vunpack.c.l.b16 %v1124
    %v1357 = vunpack.c.l.b16 %v1125
    %v1358 = vunpack.c.h.b16 %v1125
    %v1359 = vunpack.c.l.b16 %v1126
    %v1360 = vunpack.c.l.b16 %v1127
    %v1361 = vunpack.c.h.b16 %v1127
    %v1362 = vunpack.c.l.b16 %v1128
    %v1363 = vunpack.c.l.b16 %v1129
    %v1364 = vunpack.c.h.b16 %v1129
    %v1365 = vunpack.c.l.b16 %v1130
    %v1366 = vunpack.c.l.b16 %v1131
    %v1367 = vunpack.c.h.b16 %v1131
    %v1368 = vunpack.c.l.b16 %v1132
    %v1369 = vunpack.c.l.b16 %v1133
    %v1370 = vunpack.c.h.b16 %v1133
    %v1371 = vunpack.c.l.b16 %v1134
    %v1372 = vunpack.c.l.b16 %v1135
    %v1373 = vunpack.c.h.b16 %v1135
    %v1374 = vunpack.c.l.b16 %v1136
    %v1375 = vunpack.c.l.b16 %v1137
    %v1376 = vunpack.c.h.b16 %v1137
    %v1377 = vunpack.c.l.b16 %v1138
    %v1378 = vunpack.c.l.b16 %v1139
    %v1379 = vunpack.c.h.b16 %v1139
    %v1380 = vunpack.c.l.b16 %v1140
    %v1381 = vunpack.c.l.b16 %v1141
    %v1382 = vunpack.c.h.b16 %v1141
    %v1383 = vunpack.c.l.b16 %v1142
    %v1384 = vunpack.c.l.b16 %v1143
    %v1385 = vunpack.c.h.b16 %v1143
    %v1386 = vunpack.c.l.b16 %v1144
    %v1387 = vunpack.c.l.b16 %v1145
    %v1388 = vunpack.c.h.b16 %v1145
    %v1389 = vunpack.c.l.b16 %v1146
    %v1390 = vunpack.c.l.b16 %v1147
    %v1391 = vunpack.c.h.b16 %v1147
    %v1392 = vunpack.c.l.b16 %v1148
    %v1393 = vunpack.c.l.b16 %v1149
    %v1394 = vunpack.c.h.b16 %v1149
    %v1395 = vunpack.c.l.b16 %v1150
    %v1396 = vunpack.c.l.b16 %v1151
    %v1397 = vunpack.c.h.b16 %v1151
    %v1398 = vunpack.c.l.b16 %v1152
    %v1399 = vunpack.c.l.b16 %v1153
    %v1400 = vunpack.c.h.b16 %v1153
    %v1401 = vunpack.c.l.b16 %v1154
    %v1402 = vunpack.c.l.b16 %v1155
    %v1403 = vunpack.c.h.b16 %v1155
    %v1404 = vunpack.c.l.b16 %v1156
    %v1405 = vunpack.c.l.b16 %v1157
    %v1406 = vunpack.c.h.b16 %v1157
    %v1407 = vunpack.c.l.b16 %v1158
    %v1408 = vunpack.c.l.b16 %v1159
    %v1409 = vunpack.c.h.b16 %v1159
    %v1410 = vunpack.c.l.b16 %v1160
    %v1411 = vunpack.c.l.b16 %v1161
    %v1412 = vunpack.c.h.b16 %v1161
    %v1413 = vunpack.c.l.b16 %v1162
    %v1414 = vunpack.c.l.b16 %v1163
    %v1415 = vunpack.c.h.b16 %v1163
    %v1416 = vunpack.c.l.b16 %v1164
    %v1417 = vunpack.c.l.b16 %v1165
    %v1418 = vunpack.c.h.b16 %v1165
    %v1419 = vunpack.c.l.b16 %v1166
    %v1420 = vunpack.c.l.b16 %v1167
    %v1421 = vunpack.c.h.b16 %v1167
    %v1422 = vunpack.c.l.b16 %v1168
    %v1423 = vunpack.c.l.b16 %v1169
    %v1424 = vunpack.c.h.b16 %v1169
    %v1425 = vunpack.c.l.b16 %v1170
    %v1426 = vunpack.c.l.b16 %v1171
    %v1427 = vunpack.c.h.b16 %v1171
    %v1428 = vunpack.c.l.b16 %v1172
    %v1429 = vunpack.c.l.b16 %v1173
    %v1430 = vunpack.c.h.b16 %v1173
    %v1431 = vunpack.c.l.b16 %v1174
    %v1432 = vunpack.c.l.b16 %v1175
    %v1433 = vunpack.c.h.b16 %v1175
    %v1434 = vunpack.c.l.b16 %v1176
    %v1435 = vunpack.c.l.b16 %v1177
    %v1436 = vunpack.c.h.b16 %v1177
    %v1437 = vunpack.c.l.b16 %v1178
    %v1438 = vunpack.c.l.b16 %v1179
    %v1439 = vunpack.c.h.b16 %v1179
    %v1440 = vunpack.c.l.b16 %v1180
    %v1441 = vpack.c.b16 %v1300, %v1297
    %v1442 = vpack.c.b16 %v1301, %v1298
    %v1443 = vpack.c.b16 %v1302, %v1299
    %v1444 = vpack.c.b16 %v1306, %v1303
    %v1445 = vpack.c.b16 %v1307, %v1304
    %v1446 = vpack.c.b16 %v1308, %v1305
    %v1447 = vpack.c.b16 %v1312, %v1309
    %v1448 = vpack.c.b16 %v1313, %v1310
    %v1449 = vpack.c.b16 %v1314, %v1311
    %v1450 = vpack.c.b16 %v1318, %v1315
    %v1451 = vpack.c.b16 %v1319, %v1316
    %v1452 = vpack.c.b16 %v1320, %v1317
    %v1453 = vpack.c.b16 %v1324, %v1321
    %v1454 = vpack.c.b16 %v1325, %v1322
    %v1455 = vpack.c.b16 %v1326, %v1323
    %v1456 = vpack.c.b16 %v1330, %v1327
    %v1457 = vpack.c.b16 %v1331, %v1328
    %v1458 = vpack.c.b16 %v1332, %v1329
    %v1459 = vpack.c.b16 %v1336, %v1333
    %v1460 = vpack.c.b16 %v1337, %v1334
    %v1461 = vpack.c.b16 %v1338, %v1335
    %v1462 = vpack.c.b16 %v1342, %v1339
    %v1463 = vpack.c.b16 %v1343, %v1340
    %v1464 = vpack.c.b16 %v1344, %v1341
    %v1465 = vpack.c.b16 %v1348, %v1345
    %v1466 = vpack.c.b16 %v1349, %v1346
    %v1467 = vpack.c.b16 %v1350, %v1347
    %v1468 = vpack.c.b16 %v1354, %v1351
    %v1469 = vpack.c.b16 %v1355, %v1352
    %v1470 = vpack.c.b16 %v1356, %v1353
    %v1471 = vpack.c.b16 %v1360, %v1357
    %v1472 = vpack.c.b16 %v1361, %v1358
    %v1473 = vpack.c.b16 %v1362, %v1359
    %v1474 = vpack.c.b16 %v1366, %v1363
    %v1475 = vpack.c.b16 %v1367, %v1364
    %v1476 = vpack.c.b16 %v1368, %v1365
    %v1477 = vpack.c.b16 %v1372, %v1369
    %v1478 = vpack.c.b16 %v1373, %v1370
    %v1479 = vpack.c.b16 %v1374, %v1371
    %v1480 = vpack.c.b16 %v1378, %v1375
    %v1481 = vpack.c.b16 %v1379, %v1376
    %v1482 = vpack.c.b16 %v1380, %v1377
    %v1483 = vpack.c.b16 %v1384, %v1381
    %v1484 = vpack.c.b16 %v1385, %v1382
    %v1485 = vpack.c.b16 %v1386, %v1383
    %v1486 = vpack.c.b16 %v1390, %v1387
    %v1487 = vpack.c.b16 %v1391, %v1388
    %v1488 = vpack.c.b16 %v1392, %v1389
    %v1489 = vpack.c.b16 %v1396, %v1393
    %v1490 = vpack.c.b16 %v1397, %v1394
    %v1491 = vpack.c.b16 %v1398, %v1395
    %v1492 = vpack.c.b16 %v1402, %v1399
    %v1493 = vpack.c.b16 %v1403, %v1400
    %v1494 = vpack.c.b16 %v1404, %v1401
    %v1495 = vpack.c.b16 %v1408, %v1405
    %v1496 = vpack.c.b16 %v1409, %v1406
    %v1497 = vpack.c.b16 %v1410, %v1407
    %v1498 = vpack.c.b16 %v1414, %v1411
    %v1499 = vpack.c.b16 %v1415, %v1412
    %v1500 = vpack.c.b16 %v1416, %v1413
    %v1501 = vpack.c.b16 %v1420, %v1417
    %v1502 = vpack.c.b16 %v1421, %v1418
    %v1503 = vpack.c.b16 %v1422, %v1419
    %v1504 = vpack.c.b16 %v1426, %v1423
    %v1505 = vpack.c.b16 %v1427, %v1424
    %v1506 = vpack.c.b16 %v1428, %v1425
    %v1507 = vpack.c.b16 %v1432, %v1429
    %v1508 = vpack.c.b16 %v1433, %v1430
    %v1509 = vpack.c.b16 %v1434, %v1431
    %v1510 = vpack.c.b16 %v1438, %v1435
    %v1511 = vpack.c.b16 %v1439, %v1436
    %v1512 = vpack.c.b16 %v1440, %v1437
    %1585 = vmatprep.subr.bf16.mxu0 %v1442
    %1586 = vmatpush1.bf16.msra.mxu0 %v1441
    %1587 = vmatprep.subr.bf16.mxu0 %v1445
    %1588 = vmatpush1.bf16.msra.mxu0 %v1444
    %1589 = vmatprep.subr.bf16.mxu0 %v1448
    %1590 = vmatpush1.bf16.msra.mxu0 %v1447
    %1591 = vmatprep.subr.bf16.mxu0 %v1451
    %1592 = vmatpush1.bf16.msra.mxu0 %v1450
    %1593 = vmatprep.subr.bf16.mxu0 %v1454
    %1594 = vmatpush1.bf16.msra.mxu0 %v1453
    %1595 = vmatprep.subr.bf16.mxu0 %v1457
    %1596 = vmatpush1.bf16.msra.mxu0 %v1456
    %1597 = vmatprep.subr.bf16.mxu0 %v1460
    %1598 = vmatpush1.bf16.msra.mxu0 %v1459
    %1599 = vmatprep.subr.bf16.mxu0 %v1463
    %1600 = vmatpush1.bf16.msra.mxu0 %v1462
    %1601 = vmatprep.subr.bf16.mxu0 %v1466
    %1602 = vmatpush1.bf16.msra.mxu0 %v1465
    %1603 = vmatprep.subr.bf16.mxu0 %v1469
    %1604 = vmatpush1.bf16.msra.mxu0 %v1468
    %1605 = vmatprep.subr.bf16.mxu0 %v1472
    %1606 = vmatpush1.bf16.msra.mxu0 %v1471
    %1607 = vmatprep.subr.bf16.mxu0 %v1475
    %1608 = vmatpush1.bf16.msra.mxu0 %v1474
    %1609 = vmatprep.subr.bf16.mxu0 %v1478
    %1610 = vmatpush1.bf16.msra.mxu0 %v1477
    %1611 = vmatprep.subr.bf16.mxu0 %v1481
    %1612 = vmatpush1.bf16.msra.mxu0 %v1480
    %1613 = vmatprep.subr.bf16.mxu0 %v1484
    %1614 = vmatpush1.bf16.msra.mxu0 %v1483
    %1615 = vmatprep.subr.bf16.mxu0 %v1487
    %1616 = vmatpush1.bf16.msra.mxu0 %v1486
    %1617 = vmatprep.mubr.bf16.mxu0 %v1183
    %1618 = vmatmul.mubr.bf16.gmra.mrb[0].mxu0 %v1182
    %v1619 = vpop.f32.mrb[0].mxu0
    %v1620 = vadd.f32 %v1189, %v1619
    %v1621 = vpop.f32.mrb[0].mxu0
    %v1622 = vadd.f32 %v1193, %v1621
    %v1623 = vpop.f32.mrb[0].mxu0
    %v1624 = vadd.f32 %v1189, %v1623
    %v1625 = vpop.f32.mrb[0].mxu0
    %v1626 = vadd.f32 %v1193, %v1625
    %1627 = vdwg.mxu0
    %1628 = vmatprep.subr.bf16.mxu0 %v1490
    %1629 = vmatpush1.bf16.msra.mxu0 %v1489
    %1630 = vmatprep.subr.bf16.mxu0 %v1493
    %1631 = vmatpush1.bf16.msra.mxu0 %v1492
    %1632 = vmatprep.subr.bf16.mxu0 %v1496
    %1633 = vmatpush1.bf16.msra.mxu0 %v1495
    %1634 = vmatprep.subr.bf16.mxu0 %v1499
    %1635 = vmatpush1.bf16.msra.mxu0 %v1498
    %1636 = vmatprep.subr.bf16.mxu0 %v1502
    %1637 = vmatpush1.bf16.msra.mxu0 %v1501
    %1638 = vmatprep.subr.bf16.mxu0 %v1505
    %1639 = vmatpush1.bf16.msra.mxu0 %v1504
    %1640 = vmatprep.subr.bf16.mxu0 %v1508
    %1641 = vmatpush1.bf16.msra.mxu0 %v1507
    %1642 = vmatprep.subr.bf16.mxu0 %v1511
    %1643 = vmatpush1.bf16.msra.mxu0 %v1510
    %1644 = vmatprep.subr.bf16.mxu0 0
    %1645 = vmatpush1.bf16.msra.mxu0 0
    %1646 = vmatprep.subr.bf16.mxu0 0
    %1647 = vmatpush1.bf16.msra.mxu0 0
    %1648 = vmatprep.subr.bf16.mxu0 0
    %1649 = vmatpush1.bf16.msra.mxu0 0
    %1650 = vmatprep.subr.bf16.mxu0 0
    %1651 = vmatpush1.bf16.msra.mxu0 0
    %1652 = vmatprep.subr.bf16.mxu0 0
    %1653 = vmatpush1.bf16.msra.mxu0 0
    %1654 = vmatprep.subr.bf16.mxu0 0
    %1655 = vmatpush1.bf16.msra.mxu0 0
    %1656 = vmatprep.subr.bf16.mxu0 0
    %1657 = vmatpush1.bf16.msra.mxu0 0
    %1658 = vmatprep.subr.bf16.mxu0 0
    %1659 = vmatpush1.bf16.msra.mxu0 0
    %1660 = vmatprep.mubr.bf16.mxu0 0
    %1661 = vmatmul.mubr.bf16.gmra.mrb[0].mxu0 %v1184
    %v1662 = vpop.f32.mrb[0].mxu0
    %v1663 = vadd.f32 %v1620, %v1662
    %v1664 = vpop.f32.mrb[0].mxu0
    %v1665 = vadd.f32 %v1622, %v1664
    %v1666 = vpop.f32.mrb[0].mxu0
    %v1667 = vadd.f32 %v1624, %v1666
    %v1668 = vpop.f32.mrb[0].mxu0
    %v1669 = vadd.f32 %v1626, %v1668
    %1670 = vdwg.mxu0
    %1671 = vmatprep.subr.bf16.mxu0 0
    %1672 = vmatpush1.bf16.msra.mxu0 %v1443
    %1673 = vmatprep.subr.bf16.mxu0 0
    %1674 = vmatpush1.bf16.msra.mxu0 %v1446
    %1675 = vmatprep.subr.bf16.mxu0 0
    %1676 = vmatpush1.bf16.msra.mxu0 %v1449
    %1677 = vmatprep.subr.bf16.mxu0 0
    %1678 = vmatpush1.bf16.msra.mxu0 %v1452
    %1679 = vmatprep.subr.bf16.mxu0 0
    %1680 = vmatpush1.bf16.msra.mxu0 %v1455
    %1681 = vmatprep.subr.bf16.mxu0 0
    %1682 = vmatpush1.bf16.msra.mxu0 %v1458
    %1683 = vmatprep.subr.bf16.mxu0 0
    %1684 = vmatpush1.bf16.msra.mxu0 %v1461
    %1685 = vmatprep.subr.bf16.mxu0 0
    %1686 = vmatpush1.bf16.msra.mxu0 %v1464
    %1687 = vmatprep.subr.bf16.mxu0 0
    %1688 = vmatpush1.bf16.msra.mxu0 %v1467
    %1689 = vmatprep.subr.bf16.mxu0 0
    %1690 = vmatpush1.bf16.msra.mxu0 %v1470
    %1691 = vmatprep.subr.bf16.mxu0 0
    %1692 = vmatpush1.bf16.msra.mxu0 %v1473
    %1693 = vmatprep.subr.bf16.mxu0 0
    %1694 = vmatpush1.bf16.msra.mxu0 %v1476
    %1695 = vmatprep.subr.bf16.mxu0 0
    %1696 = vmatpush1.bf16.msra.mxu0 %v1479
    %1697 = vmatprep.subr.bf16.mxu0 0
    %1698 = vmatpush1.bf16.msra.mxu0 %v1482
    %1699 = vmatprep.subr.bf16.mxu0 0
    %1700 = vmatpush1.bf16.msra.mxu0 %v1485
    %1701 = vmatprep.subr.bf16.mxu0 0
    %1702 = vmatpush1.bf16.msra.mxu0 %v1488
    %1703 = vmatprep.mubr.bf16.mxu0 %v1183
    %1704 = vmatmul.mubr.bf16.gmra.mrb[0].mxu0 %v1182
    %v1705 = vpop.f32.mrb[0].mxu0
    %v1706 = vadd.f32 %v1197, %v1705
    %v1707 = vpop.f32.mrb[0].mxu0
    %v1708 = vpop.f32.mrb[0].mxu0
    %v1709 = vadd.f32 %v1197, %v1708
    %v1710 = vpop.f32.mrb[0].mxu0
    %1711 = vdwg.mxu0
    %1712 = vmatprep.subr.bf16.mxu0 0
    %1713 = vmatpush1.bf16.msra.mxu0 %v1491
    %1714 = vmatprep.subr.bf16.mxu0 0
    %1715 = vmatpush1.bf16.msra.mxu0 %v1494
    %1716 = vmatprep.subr.bf16.mxu0 0
    %1717 = vmatpush1.bf16.msra.mxu0 %v1497
    %1718 = vmatprep.subr.bf16.mxu0 0
    %1719 = vmatpush1.bf16.msra.mxu0 %v1500
    %1720 = vmatprep.subr.bf16.mxu0 0
    %1721 = vmatpush1.bf16.msra.mxu0 %v1503
    %1722 = vmatprep.subr.bf16.mxu0 0
    %1723 = vmatpush1.bf16.msra.mxu0 %v1506
    %1724 = vmatprep.subr.bf16.mxu0 0
    %1725 = vmatpush1.bf16.msra.mxu0 %v1509
    %1726 = vmatprep.subr.bf16.mxu0 0
    %1727 = vmatpush1.bf16.msra.mxu0 %v1512
    %1728 = vmatprep.subr.bf16.mxu0 0
    %1729 = vmatpush1.bf16.msra.mxu0 0
    %1730 = vmatprep.subr.bf16.mxu0 0
    %1731 = vmatpush1.bf16.msra.mxu0 0
    %1732 = vmatprep.subr.bf16.mxu0 0
    %1733 = vmatpush1.bf16.msra.mxu0 0
    %1734 = vmatprep.subr.bf16.mxu0 0
    %1735 = vmatpush1.bf16.msra.mxu0 0
    %1736 = vmatprep.subr.bf16.mxu0 0
    %1737 = vmatpush1.bf16.msra.mxu0 0
    %1738 = vmatprep.subr.bf16.mxu0 0
    %1739 = vmatpush1.bf16.msra.mxu0 0
    %1740 = vmatprep.subr.bf16.mxu0 0
    %1741 = vmatpush1.bf16.msra.mxu0 0
    %1742 = vmatprep.subr.bf16.mxu0 0
    %1743 = vmatpush1.bf16.msra.mxu0 0
    %1744 = vmatprep.mubr.bf16.mxu0 0
    %1745 = vmatmul.mubr.bf16.gmra.mrb[0].mxu0 %v1184
    %v1746 = vpop.f32.mrb[0].mxu0
    %v1747 = vadd.f32 %v1706, %v1746
    %v1748 = vpop.f32.mrb[0].mxu0
    %v1749 = vpop.f32.mrb[0].mxu0
    %v1750 = vadd.f32 %v1709, %v1749
    %v1751 = vpop.f32.mrb[0].mxu0
    %1752 = vdwg.mxu0
    %vm1753 = vcmp.gt.f32.partialorder %v1663, 0.0
    %vm1754 = vcmp.gt.f32.partialorder %v1665, 0.0
    %vm1755 = vcmp.gt.f32.partialorder %v1747, 0.0
    %vm1756 = vcmp.gt.f32.partialorder %v1667, 0.0
    %vm1757 = vcmp.gt.f32.partialorder %v1669, 0.0
    %vm1758 = vcmp.gt.f32.partialorder %v1750, 0.0
    %v1759 = vmul.f32 %v1663, 0.01
    %v1760 = vmul.f32 %v1665, 0.01
    %v1761 = vmul.f32 %v1747, 0.01
    %v1762 = vmul.f32 %v1667, 0.01
    %v1763 = vmul.f32 %v1669, 0.01
    %v1764 = vmul.f32 %v1750, 0.01
    %v1765 = vsel %vm1753, %v1663, %v1759
    %v1766 = vsel %vm1754, %v1665, %v1760
    %v1767 = vsel %vm1755, %v1747, %v1761
    %v1768 = vsel %vm1756, %v1667, %v1762
    %v1769 = vsel %vm1757, %v1669, %v1763
    %v1770 = vsel %vm1758, %v1750, %v1764
    %v1771 = vld [vmem:[#allocation10] sm:$0xff]
    %v1772 = vld [vmem:[#allocation10 + $0x8] sm:$0xff]
    %v1773 = vld [vmem:[#allocation10 + $0x10] sm:$0xff]
    %v1774 = vld [vmem:[#allocation10 + $0x18] sm:$0xff]
    %v1775 = vld [vmem:[#allocation10 + $0x20] sm:$0xff]
    %v1776 = vld [vmem:[#allocation10 + $0x28] sm:$0xff]
    %v1777 = vld [vmem:[#allocation10 + $0x30] sm:$0xff]
    %v1778 = vld [vmem:[#allocation10 + $0x38] sm:$0xff]
    %v1779 = vld [vmem:[#allocation10 + $0x40] sm:$0xff]
    %v1780 = vld [vmem:[#allocation10 + $0x48] sm:$0xff]
    %v1781 = vld [vmem:[#allocation10 + $0x50] sm:$0xff]
    %v1782 = vld [vmem:[#allocation10 + $0x58] sm:$0xff]
    %v1783 = vld [vmem:[#allocation10 + $0x60] sm:$0xff]
    %v1784 = vld [vmem:[#allocation10 + $0x68] sm:$0xff]
    %v1785 = vld [vmem:[#allocation10 + $0x70] sm:$0xff]
    %v1786 = vld [vmem:[#allocation10 + $0x78] sm:$0xff]
    %v1787 = vld [vmem:[#allocation10 + $0x80] sm:$0xff]
    %v1788 = vld [vmem:[#allocation10 + $0x88] sm:$0xff]
    %v1789 = vld [vmem:[#allocation10 + $0x90] sm:$0xff]
    %v1790 = vld [vmem:[#allocation10 + $0x98] sm:$0xff]
    %v1791 = vld [vmem:[#allocation10 + $0xa0] sm:$0xff]
    %v1792 = vld [vmem:[#allocation10 + $0xa8] sm:$0xff]
    %v1793 = vld [vmem:[#allocation10 + $0xb0] sm:$0xff]
    %v1794 = vld [vmem:[#allocation10 + $0xb8] sm:$0xff]
    %v1795 = vld [vmem:[#allocation10 + $0xc0] sm:$0xff]
    %v1796 = vld [vmem:[#allocation10 + $0xc8] sm:$0xff]
    %v1797 = vld [vmem:[#allocation10 + $0xd0] sm:$0xff]
    %v1798 = vld [vmem:[#allocation10 + $0xd8] sm:$0xff]
    %v1799 = vld [vmem:[#allocation10 + $0xe0] sm:$0xff]
    %v1800 = vld [vmem:[#allocation10 + $0xe8] sm:$0xff]
    %v1801 = vld [vmem:[#allocation10 + $0xf0] sm:$0xff]
    %v1802 = vld [vmem:[#allocation10 + $0xf8] sm:$0xff]
    %v1803 = vld [vmem:[#allocation10 + $0x100] sm:$0xff]
    %v1804 = vld [vmem:[#allocation10 + $0x108] sm:$0xff]
    %v1805 = vld [vmem:[#allocation10 + $0x110] sm:$0xff]
    %v1806 = vld [vmem:[#allocation10 + $0x118] sm:$0xff]
    %v1807 = vld [vmem:[#allocation10 + $0x120] sm:$0xff]
    %v1808 = vld [vmem:[#allocation10 + $0x128] sm:$0xff]
    %v1809 = vld [vmem:[#allocation10 + $0x130] sm:$0xff]
    %v1810 = vld [vmem:[#allocation10 + $0x138] sm:$0xff]
    %v1811 = vld [vmem:[#allocation10 + $0x140] sm:$0xff]
    %v1812 = vld [vmem:[#allocation10 + $0x148] sm:$0xff]
    %v1813 = vld [vmem:[#allocation10 + $0x150] sm:$0xff]
    %v1814 = vld [vmem:[#allocation10 + $0x158] sm:$0xff]
    %v1815 = vld [vmem:[#allocation10 + $0x160] sm:$0xff]
    %v1816 = vld [vmem:[#allocation10 + $0x168] sm:$0xff]
    %v1817 = vld [vmem:[#allocation10 + $0x170] sm:$0xff]
    %v1818 = vld [vmem:[#allocation10 + $0x178] sm:$0xff]
    %v1819 = vld [vmem:[#allocation10 + $0x180] sm:$0xff]
    %v1820 = vld [vmem:[#allocation10 + $0x188] sm:$0xff]
    %v1821 = vld [vmem:[#allocation10 + $0x190] sm:$0xff]
    %v1822 = vld [vmem:[#allocation10 + $0x198] sm:$0xff]
    %v1823 = vld [vmem:[#allocation10 + $0x1a0] sm:$0xff]
    %v1824 = vld [vmem:[#allocation10 + $0x1a8] sm:$0xff]
    %v1825 = vld [vmem:[#allocation10 + $0x1b0] sm:$0xff]
    %v1826 = vld [vmem:[#allocation10 + $0x1b8] sm:$0xff]
    %v1827 = vld [vmem:[#allocation10 + $0x1c0] sm:$0xff]
    %v1828 = vld [vmem:[#allocation10 + $0x1c8] sm:$0xff]
    %v1829 = vld [vmem:[#allocation10 + $0x1d0] sm:$0xff]
    %v1830 = vld [vmem:[#allocation10 + $0x1d8] sm:$0xff]
    %v1831 = vld [vmem:[#allocation10 + $0x1e0] sm:$0xff]
    %v1832 = vld [vmem:[#allocation10 + $0x1e8] sm:$0xff]
    %v1833 = vld [vmem:[#allocation10 + $0x1f0] sm:$0xff]
    %v1834 = vld [vmem:[#allocation10 + $0x1f8] sm:$0xff]
    %v1835 = vld [vmem:[#allocation10 + $0x200] sm:$0xff]
    %v1836 = vld [vmem:[#allocation10 + $0x208] sm:$0xff]
    %v1837 = vld [vmem:[#allocation10 + $0x210] sm:$0xff]
    %v1838 = vld [vmem:[#allocation10 + $0x218] sm:$0xff]
    %v1839 = vld [vmem:[#allocation10 + $0x220] sm:$0xff]
    %v1840 = vld [vmem:[#allocation10 + $0x228] sm:$0xff]
    %v1841 = vld [vmem:[#allocation10 + $0x230] sm:$0xff]
    %v1842 = vld [vmem:[#allocation10 + $0x238] sm:$0xff]
    %v1843 = vld [vmem:[#allocation10 + $0x240] sm:$0xff]
    %v1844 = vld [vmem:[#allocation10 + $0x248] sm:$0xff]
    %v1845 = vld [vmem:[#allocation10 + $0x250] sm:$0xff]
    %v1846 = vld [vmem:[#allocation10 + $0x258] sm:$0xff]
    %v1847 = vld [vmem:[#allocation10 + $0x260] sm:$0xff]
    %v1848 = vld [vmem:[#allocation10 + $0x268] sm:$0xff]
    %v1849 = vld [vmem:[#allocation10 + $0x270] sm:$0xff]
    %v1850 = vld [vmem:[#allocation10 + $0x278] sm:$0xff]
    %v1851 = vld [vmem:[#allocation10 + $0x280] sm:$0xff]
    %v1852 = vld [vmem:[#allocation10 + $0x288] sm:$0xff]
    %v1853 = vld [vmem:[#allocation10 + $0x290] sm:$0xff]
    %v1854 = vld [vmem:[#allocation10 + $0x298] sm:$0xff]
    %v1855 = vld [vmem:[#allocation10 + $0x2a0] sm:$0xff]
    %v1856 = vld [vmem:[#allocation10 + $0x2a8] sm:$0xff]
    %v1857 = vld [vmem:[#allocation10 + $0x2b0] sm:$0xff]
    %v1858 = vld [vmem:[#allocation10 + $0x2b8] sm:$0xff]
    %v1859 = vld [vmem:[#allocation10 + $0x2c0] sm:$0xff]
    %v1860 = vld [vmem:[#allocation10 + $0x2c8] sm:$0xff]
    %v1861 = vld [vmem:[#allocation10 + $0x2d0] sm:$0xff]
    %v1862 = vld [vmem:[#allocation10 + $0x2d8] sm:$0xff]
    %v1863 = vld [vmem:[#allocation10 + $0x2e0] sm:$0xff]
    %v1864 = vld [vmem:[#allocation10 + $0x2e8] sm:$0xff]
    %v1865 = vld [vmem:[#allocation10 + $0x2f0] sm:$0xff]
    %v1866 = vld [vmem:[#allocation10 + $0x2f8] sm:$0xff]
    %v1867 = vld [vmem:[%s12] sm:$0xf]
    %v1868 = vpack.c.bf16 %v1768, %v1765
    %v1869 = vpack.c.bf16 %v1769, %v1766
    %v1870 = vpack.c.bf16 %v1770, %v1767
    %v1872 = vlaneseq
    %v1873 = vshrl.u32 %v1872, 7
    %v1874 = vsub.s32 0, %v1873
    %v1875 = vrot.slane %v1867, %v1874
    %v1876 = vlaneseq
    %v1877 = vshrl.u32 %v1876, 7
    %v1878 = vsub.s32 1, %v1877
    %v1879 = vrot.slane %v1867, %v1878
    %v1880 = vlaneseq
    %v1881 = vshrl.u32 %v1880, 7
    %v1882 = vsub.s32 2, %v1881
    %v1883 = vrot.slane %v1867, %v1882
    %v1884 = vlaneseq
    %v1885 = vshrl.u32 %v1884, 7
    %v1886 = vsub.s32 3, %v1885
    %v1887 = vrot.slane %v1867, %v1886
    %v1988 = vunpack.c.l.b16 %v1771
    %v1989 = vunpack.c.h.b16 %v1771
    %v1990 = vunpack.c.l.b16 %v1772
    %v1991 = vunpack.c.h.b16 %v1772
    %v1992 = vunpack.c.l.b16 %v1773
    %v1993 = vunpack.c.h.b16 %v1773
    %v1994 = vunpack.c.l.b16 %v1774
    %v1995 = vunpack.c.h.b16 %v1774
    %v1996 = vunpack.c.l.b16 %v1775
    %v1997 = vunpack.c.h.b16 %v1775
    %v1998 = vunpack.c.l.b16 %v1776
    %v1999 = vunpack.c.h.b16 %v1776
    %v2000 = vunpack.c.l.b16 %v1777
    %v2001 = vunpack.c.h.b16 %v1777
    %v2002 = vunpack.c.l.b16 %v1778
    %v2003 = vunpack.c.h.b16 %v1778
    %v2004 = vunpack.c.l.b16 %v1779
    %v2005 = vunpack.c.h.b16 %v1779
    %v2006 = vunpack.c.l.b16 %v1780
    %v2007 = vunpack.c.h.b16 %v1780
    %v2008 = vunpack.c.l.b16 %v1781
    %v2009 = vunpack.c.h.b16 %v1781
    %v2010 = vunpack.c.l.b16 %v1782
    %v2011 = vunpack.c.h.b16 %v1782
    %v2012 = vunpack.c.l.b16 %v1783
    %v2013 = vunpack.c.h.b16 %v1783
    %v2014 = vunpack.c.l.b16 %v1784
    %v2015 = vunpack.c.h.b16 %v1784
    %v2016 = vunpack.c.l.b16 %v1785
    %v2017 = vunpack.c.h.b16 %v1785
    %v2018 = vunpack.c.l.b16 %v1786
    %v2019 = vunpack.c.h.b16 %v1786
    %v2020 = vunpack.c.l.b16 %v1787
    %v2021 = vunpack.c.h.b16 %v1787
    %v2022 = vunpack.c.l.b16 %v1788
    %v2023 = vunpack.c.h.b16 %v1788
    %v2024 = vunpack.c.l.b16 %v1789
    %v2025 = vunpack.c.h.b16 %v1789
    %v2026 = vunpack.c.l.b16 %v1790
    %v2027 = vunpack.c.h.b16 %v1790
    %v2028 = vunpack.c.l.b16 %v1791
    %v2029 = vunpack.c.h.b16 %v1791
    %v2030 = vunpack.c.l.b16 %v1792
    %v2031 = vunpack.c.h.b16 %v1792
    %v2032 = vunpack.c.l.b16 %v1793
    %v2033 = vunpack.c.h.b16 %v1793
    %v2034 = vunpack.c.l.b16 %v1794
    %v2035 = vunpack.c.h.b16 %v1794
    %v2036 = vunpack.c.l.b16 %v1795
    %v2037 = vunpack.c.h.b16 %v1795
    %v2038 = vunpack.c.l.b16 %v1796
    %v2039 = vunpack.c.h.b16 %v1796
    %v2040 = vunpack.c.l.b16 %v1797
    %v2041 = vunpack.c.h.b16 %v1797
    %v2042 = vunpack.c.l.b16 %v1798
    %v2043 = vunpack.c.h.b16 %v1798
    %v2044 = vunpack.c.l.b16 %v1799
    %v2045 = vunpack.c.h.b16 %v1799
    %v2046 = vunpack.c.l.b16 %v1800
    %v2047 = vunpack.c.h.b16 %v1800
    %v2048 = vunpack.c.l.b16 %v1801
    %v2049 = vunpack.c.h.b16 %v1801
    %v2050 = vunpack.c.l.b16 %v1802
    %v2051 = vunpack.c.h.b16 %v1802
    %v2052 = vunpack.c.l.b16 %v1803
    %v2053 = vunpack.c.h.b16 %v1803
    %v2054 = vunpack.c.l.b16 %v1804
    %v2055 = vunpack.c.h.b16 %v1804
    %v2056 = vunpack.c.l.b16 %v1805
    %v2057 = vunpack.c.h.b16 %v1805
    %v2058 = vunpack.c.l.b16 %v1806
    %v2059 = vunpack.c.h.b16 %v1806
    %v2060 = vunpack.c.l.b16 %v1807
    %v2061 = vunpack.c.h.b16 %v1807
    %v2062 = vunpack.c.l.b16 %v1808
    %v2063 = vunpack.c.h.b16 %v1808
    %v2064 = vunpack.c.l.b16 %v1809
    %v2065 = vunpack.c.h.b16 %v1809
    %v2066 = vunpack.c.l.b16 %v1810
    %v2067 = vunpack.c.h.b16 %v1810
    %v2068 = vunpack.c.l.b16 %v1811
    %v2069 = vunpack.c.h.b16 %v1811
    %v2070 = vunpack.c.l.b16 %v1812
    %v2071 = vunpack.c.h.b16 %v1812
    %v2072 = vunpack.c.l.b16 %v1813
    %v2073 = vunpack.c.h.b16 %v1813
    %v2074 = vunpack.c.l.b16 %v1814
    %v2075 = vunpack.c.h.b16 %v1814
    %v2076 = vunpack.c.l.b16 %v1815
    %v2077 = vunpack.c.h.b16 %v1815
    %v2078 = vunpack.c.l.b16 %v1816
    %v2079 = vunpack.c.h.b16 %v1816
    %v2080 = vunpack.c.l.b16 %v1817
    %v2081 = vunpack.c.h.b16 %v1817
    %v2082 = vunpack.c.l.b16 %v1818
    %v2083 = vunpack.c.h.b16 %v1818
    %v2084 = vunpack.c.l.b16 %v1819
    %v2085 = vunpack.c.h.b16 %v1819
    %v2086 = vunpack.c.l.b16 %v1820
    %v2087 = vunpack.c.h.b16 %v1820
    %v2088 = vunpack.c.l.b16 %v1821
    %v2089 = vunpack.c.h.b16 %v1821
    %v2090 = vunpack.c.l.b16 %v1822
    %v2091 = vunpack.c.h.b16 %v1822
    %v2092 = vunpack.c.l.b16 %v1823
    %v2093 = vunpack.c.h.b16 %v1823
    %v2094 = vunpack.c.l.b16 %v1824
    %v2095 = vunpack.c.h.b16 %v1824
    %v2096 = vunpack.c.l.b16 %v1825
    %v2097 = vunpack.c.h.b16 %v1825
    %v2098 = vunpack.c.l.b16 %v1826
    %v2099 = vunpack.c.h.b16 %v1826
    %v2100 = vunpack.c.l.b16 %v1827
    %v2101 = vunpack.c.h.b16 %v1827
    %v2102 = vunpack.c.l.b16 %v1828
    %v2103 = vunpack.c.h.b16 %v1828
    %v2104 = vunpack.c.l.b16 %v1829
    %v2105 = vunpack.c.h.b16 %v1829
    %v2106 = vunpack.c.l.b16 %v1830
    %v2107 = vunpack.c.h.b16 %v1830
    %v2108 = vunpack.c.l.b16 %v1831
    %v2109 = vunpack.c.h.b16 %v1831
    %v2110 = vunpack.c.l.b16 %v1832
    %v2111 = vunpack.c.h.b16 %v1832
    %v2112 = vunpack.c.l.b16 %v1833
    %v2113 = vunpack.c.h.b16 %v1833
    %v2114 = vunpack.c.l.b16 %v1834
    %v2115 = vunpack.c.h.b16 %v1834
    %v2116 = vunpack.c.l.b16 %v1835
    %v2117 = vunpack.c.h.b16 %v1835
    %v2118 = vunpack.c.l.b16 %v1836
    %v2119 = vunpack.c.h.b16 %v1836
    %v2120 = vunpack.c.l.b16 %v1837
    %v2121 = vunpack.c.h.b16 %v1837
    %v2122 = vunpack.c.l.b16 %v1838
    %v2123 = vunpack.c.h.b16 %v1838
    %v2124 = vunpack.c.l.b16 %v1839
    %v2125 = vunpack.c.h.b16 %v1839
    %v2126 = vunpack.c.l.b16 %v1840
    %v2127 = vunpack.c.h.b16 %v1840
    %v2128 = vunpack.c.l.b16 %v1841
    %v2129 = vunpack.c.h.b16 %v1841
    %v2130 = vunpack.c.l.b16 %v1842
    %v2131 = vunpack.c.h.b16 %v1842
    %v2132 = vunpack.c.l.b16 %v1843
    %v2133 = vunpack.c.h.b16 %v1843
    %v2134 = vunpack.c.l.b16 %v1844
    %v2135 = vunpack.c.h.b16 %v1844
    %v2136 = vunpack.c.l.b16 %v1845
    %v2137 = vunpack.c.h.b16 %v1845
    %v2138 = vunpack.c.l.b16 %v1846
    %v2139 = vunpack.c.h.b16 %v1846
    %v2140 = vunpack.c.l.b16 %v1847
    %v2141 = vunpack.c.h.b16 %v1847
    %v2142 = vunpack.c.l.b16 %v1848
    %v2143 = vunpack.c.h.b16 %v1848
    %v2144 = vunpack.c.l.b16 %v1849
    %v2145 = vunpack.c.h.b16 %v1849
    %v2146 = vunpack.c.l.b16 %v1850
    %v2147 = vunpack.c.h.b16 %v1850
    %v2148 = vunpack.c.l.b16 %v1851
    %v2149 = vunpack.c.h.b16 %v1851
    %v2150 = vunpack.c.l.b16 %v1852
    %v2151 = vunpack.c.h.b16 %v1852
    %v2152 = vunpack.c.l.b16 %v1853
    %v2153 = vunpack.c.h.b16 %v1853
    %v2154 = vunpack.c.l.b16 %v1854
    %v2155 = vunpack.c.h.b16 %v1854
    %v2156 = vunpack.c.l.b16 %v1855
    %v2157 = vunpack.c.h.b16 %v1855
    %v2158 = vunpack.c.l.b16 %v1856
    %v2159 = vunpack.c.h.b16 %v1856
    %v2160 = vunpack.c.l.b16 %v1857
    %v2161 = vunpack.c.h.b16 %v1857
    %v2162 = vunpack.c.l.b16 %v1858
    %v2163 = vunpack.c.h.b16 %v1858
    %v2164 = vunpack.c.l.b16 %v1859
    %v2165 = vunpack.c.h.b16 %v1859
    %v2166 = vunpack.c.l.b16 %v1860
    %v2167 = vunpack.c.h.b16 %v1860
    %v2168 = vunpack.c.l.b16 %v1861
    %v2169 = vunpack.c.h.b16 %v1861
    %v2170 = vunpack.c.l.b16 %v1862
    %v2171 = vunpack.c.h.b16 %v1862
    %v2172 = vunpack.c.l.b16 %v1863
    %v2173 = vunpack.c.h.b16 %v1863
    %v2174 = vunpack.c.l.b16 %v1864
    %v2175 = vunpack.c.h.b16 %v1864
    %v2176 = vunpack.c.l.b16 %v1865
    %v2177 = vunpack.c.h.b16 %v1865
    %v2178 = vunpack.c.l.b16 %v1866
    %v2179 = vunpack.c.h.b16 %v1866
    %v2180 = vpack.c.b16 %v1992, %v1988
    %v2181 = vpack.c.b16 %v1993, %v1989
    %v2182 = vpack.c.b16 %v1994, %v1990
    %v2183 = vpack.c.b16 %v1995, %v1991
    %v2184 = vpack.c.b16 %v2000, %v1996
    %v2185 = vpack.c.b16 %v2001, %v1997
    %v2186 = vpack.c.b16 %v2002, %v1998
    %v2187 = vpack.c.b16 %v2003, %v1999
    %v2188 = vpack.c.b16 %v2008, %v2004
    %v2189 = vpack.c.b16 %v2009, %v2005
    %v2190 = vpack.c.b16 %v2010, %v2006
    %v2191 = vpack.c.b16 %v2011, %v2007
    %v2192 = vpack.c.b16 %v2016, %v2012
    %v2193 = vpack.c.b16 %v2017, %v2013
    %v2194 = vpack.c.b16 %v2018, %v2014
    %v2195 = vpack.c.b16 %v2019, %v2015
    %v2196 = vpack.c.b16 %v2024, %v2020
    %v2197 = vpack.c.b16 %v2025, %v2021
    %v2198 = vpack.c.b16 %v2026, %v2022
    %v2199 = vpack.c.b16 %v2027, %v2023
    %v2200 = vpack.c.b16 %v2032, %v2028
    %v2201 = vpack.c.b16 %v2033, %v2029
    %v2202 = vpack.c.b16 %v2034, %v2030
    %v2203 = vpack.c.b16 %v2035, %v2031
    %v2204 = vpack.c.b16 %v2040, %v2036
    %v2205 = vpack.c.b16 %v2041, %v2037
    %v2206 = vpack.c.b16 %v2042, %v2038
    %v2207 = vpack.c.b16 %v2043, %v2039
    %v2208 = vpack.c.b16 %v2048, %v2044
    %v2209 = vpack.c.b16 %v2049, %v2045
    %v2210 = vpack.c.b16 %v2050, %v2046
    %v2211 = vpack.c.b16 %v2051, %v2047
    %v2212 = vpack.c.b16 %v2056, %v2052
    %v2213 = vpack.c.b16 %v2057, %v2053
    %v2214 = vpack.c.b16 %v2058, %v2054
    %v2215 = vpack.c.b16 %v2059, %v2055
    %v2216 = vpack.c.b16 %v2064, %v2060
    %v2217 = vpack.c.b16 %v2065, %v2061
    %v2218 = vpack.c.b16 %v2066, %v2062
    %v2219 = vpack.c.b16 %v2067, %v2063
    %v2220 = vpack.c.b16 %v2072, %v2068
    %v2221 = vpack.c.b16 %v2073, %v2069
    %v2222 = vpack.c.b16 %v2074, %v2070
    %v2223 = vpack.c.b16 %v2075, %v2071
    %v2224 = vpack.c.b16 %v2080, %v2076
    %v2225 = vpack.c.b16 %v2081, %v2077
    %v2226 = vpack.c.b16 %v2082, %v2078
    %v2227 = vpack.c.b16 %v2083, %v2079
    %v2228 = vpack.c.b16 %v2088, %v2084
    %v2229 = vpack.c.b16 %v2089, %v2085
    %v2230 = vpack.c.b16 %v2090, %v2086
    %v2231 = vpack.c.b16 %v2091, %v2087
    %v2232 = vpack.c.b16 %v2096, %v2092
    %v2233 = vpack.c.b16 %v2097, %v2093
    %v2234 = vpack.c.b16 %v2098, %v2094
    %v2235 = vpack.c.b16 %v2099, %v2095
    %v2236 = vpack.c.b16 %v2104, %v2100
    %v2237 = vpack.c.b16 %v2105, %v2101
    %v2238 = vpack.c.b16 %v2106, %v2102
    %v2239 = vpack.c.b16 %v2107, %v2103
    %v2240 = vpack.c.b16 %v2112, %v2108
    %v2241 = vpack.c.b16 %v2113, %v2109
    %v2242 = vpack.c.b16 %v2114, %v2110
    %v2243 = vpack.c.b16 %v2115, %v2111
    %v2244 = vpack.c.b16 %v2120, %v2116
    %v2245 = vpack.c.b16 %v2121, %v2117
    %v2246 = vpack.c.b16 %v2122, %v2118
    %v2247 = vpack.c.b16 %v2123, %v2119
    %v2248 = vpack.c.b16 %v2128, %v2124
    %v2249 = vpack.c.b16 %v2129, %v2125
    %v2250 = vpack.c.b16 %v2130, %v2126
    %v2251 = vpack.c.b16 %v2131, %v2127
    %v2252 = vpack.c.b16 %v2136, %v2132
    %v2253 = vpack.c.b16 %v2137, %v2133
    %v2254 = vpack.c.b16 %v2138, %v2134
    %v2255 = vpack.c.b16 %v2139, %v2135
    %v2256 = vpack.c.b16 %v2144, %v2140
    %v2257 = vpack.c.b16 %v2145, %v2141
    %v2258 = vpack.c.b16 %v2146, %v2142
    %v2259 = vpack.c.b16 %v2147, %v2143
    %v2260 = vpack.c.b16 %v2152, %v2148
    %v2261 = vpack.c.b16 %v2153, %v2149
    %v2262 = vpack.c.b16 %v2154, %v2150
    %v2263 = vpack.c.b16 %v2155, %v2151
    %v2264 = vpack.c.b16 %v2160, %v2156
    %v2265 = vpack.c.b16 %v2161, %v2157
    %v2266 = vpack.c.b16 %v2162, %v2158
    %v2267 = vpack.c.b16 %v2163, %v2159
    %v2268 = vpack.c.b16 %v2168, %v2164
    %v2269 = vpack.c.b16 %v2169, %v2165
    %v2270 = vpack.c.b16 %v2170, %v2166
    %v2271 = vpack.c.b16 %v2171, %v2167
    %v2272 = vpack.c.b16 %v2176, %v2172
    %v2273 = vpack.c.b16 %v2177, %v2173
    %v2274 = vpack.c.b16 %v2178, %v2174
    %v2275 = vpack.c.b16 %v2179, %v2175
    %2372 = vmatprep.subr.bf16.mxu0 %v2181
    %2373 = vmatpush1.bf16.msra.mxu0 %v2180
    %2374 = vmatprep.subr.bf16.mxu0 %v2185
    %2375 = vmatpush1.bf16.msra.mxu0 %v2184
    %2376 = vmatprep.subr.bf16.mxu0 %v2189
    %2377 = vmatpush1.bf16.msra.mxu0 %v2188
    %2378 = vmatprep.subr.bf16.mxu0 %v2193
    %2379 = vmatpush1.bf16.msra.mxu0 %v2192
    %2380 = vmatprep.subr.bf16.mxu0 %v2197
    %2381 = vmatpush1.bf16.msra.mxu0 %v2196
    %2382 = vmatprep.subr.bf16.mxu0 %v2201
    %2383 = vmatpush1.bf16.msra.mxu0 %v2200
    %2384 = vmatprep.subr.bf16.mxu0 %v2205
    %2385 = vmatpush1.bf16.msra.mxu0 %v2204
    %2386 = vmatprep.subr.bf16.mxu0 %v2209
    %2387 = vmatpush1.bf16.msra.mxu0 %v2208
    %2388 = vmatprep.subr.bf16.mxu0 %v2213
    %2389 = vmatpush1.bf16.msra.mxu0 %v2212
    %2390 = vmatprep.subr.bf16.mxu0 %v2217
    %2391 = vmatpush1.bf16.msra.mxu0 %v2216
    %2392 = vmatprep.subr.bf16.mxu0 %v2221
    %2393 = vmatpush1.bf16.msra.mxu0 %v2220
    %2394 = vmatprep.subr.bf16.mxu0 %v2225
    %2395 = vmatpush1.bf16.msra.mxu0 %v2224
    %2396 = vmatprep.subr.bf16.mxu0 %v2229
    %2397 = vmatpush1.bf16.msra.mxu0 %v2228
    %2398 = vmatprep.subr.bf16.mxu0 %v2233
    %2399 = vmatpush1.bf16.msra.mxu0 %v2232
    %2400 = vmatprep.subr.bf16.mxu0 %v2237
    %2401 = vmatpush1.bf16.msra.mxu0 %v2236
    %2402 = vmatprep.subr.bf16.mxu0 %v2241
    %2403 = vmatpush1.bf16.msra.mxu0 %v2240
    %2404 = vmatprep.mubr.bf16.mxu0 %v1869
    %2405 = vmatmul.mubr.bf16.gmra.mrb[0].mxu0 %v1868
    %v2406 = vpop.f32.mrb[0].mxu0
    %v2407 = vadd.f32 %v1875, %v2406
    %v2408 = vpop.f32.mrb[0].mxu0
    %v2409 = vadd.f32 %v1879, %v2408
    %v2410 = vpop.f32.mrb[0].mxu0
    %v2411 = vadd.f32 %v1875, %v2410
    %v2412 = vpop.f32.mrb[0].mxu0
    %v2413 = vadd.f32 %v1879, %v2412
    %2414 = vdwg.mxu0
    %2415 = vmatprep.subr.bf16.mxu0 %v2245
    %2416 = vmatpush1.bf16.msra.mxu0 %v2244
    %2417 = vmatprep.subr.bf16.mxu0 %v2249
    %2418 = vmatpush1.bf16.msra.mxu0 %v2248
    %2419 = vmatprep.subr.bf16.mxu0 %v2253
    %2420 = vmatpush1.bf16.msra.mxu0 %v2252
    %2421 = vmatprep.subr.bf16.mxu0 %v2257
    %2422 = vmatpush1.bf16.msra.mxu0 %v2256
    %2423 = vmatprep.subr.bf16.mxu0 %v2261
    %2424 = vmatpush1.bf16.msra.mxu0 %v2260
    %2425 = vmatprep.subr.bf16.mxu0 %v2265
    %2426 = vmatpush1.bf16.msra.mxu0 %v2264
    %2427 = vmatprep.subr.bf16.mxu0 %v2269
    %2428 = vmatpush1.bf16.msra.mxu0 %v2268
    %2429 = vmatprep.subr.bf16.mxu0 %v2273
    %2430 = vmatpush1.bf16.msra.mxu0 %v2272
    %2431 = vmatprep.subr.bf16.mxu0 0
    %2432 = vmatpush1.bf16.msra.mxu0 0
    %2433 = vmatprep.subr.bf16.mxu0 0
    %2434 = vmatpush1.bf16.msra.mxu0 0
    %2435 = vmatprep.subr.bf16.mxu0 0
    %2436 = vmatpush1.bf16.msra.mxu0 0
    %2437 = vmatprep.subr.bf16.mxu0 0
    %2438 = vmatpush1.bf16.msra.mxu0 0
    %2439 = vmatprep.subr.bf16.mxu0 0
    %2440 = vmatpush1.bf16.msra.mxu0 0
    %2441 = vmatprep.subr.bf16.mxu0 0
    %2442 = vmatpush1.bf16.msra.mxu0 0
    %2443 = vmatprep.subr.bf16.mxu0 0
    %2444 = vmatpush1.bf16.msra.mxu0 0
    %2445 = vmatprep.subr.bf16.mxu0 0
    %2446 = vmatpush1.bf16.msra.mxu0 0
    %2447 = vmatprep.mubr.bf16.mxu0 0
    %2448 = vmatmul.mubr.bf16.gmra.mrb[0].mxu0 %v1870
    %v2449 = vpop.f32.mrb[0].mxu0
    %v2450 = vadd.f32 %v2407, %v2449
    %v2451 = vpop.f32.mrb[0].mxu0
    %v2452 = vadd.f32 %v2409, %v2451
    %v2453 = vpop.f32.mrb[0].mxu0
    %v2454 = vadd.f32 %v2411, %v2453
    %v2455 = vpop.f32.mrb[0].mxu0
    %v2456 = vadd.f32 %v2413, %v2455
    %2457 = vdwg.mxu0
    %2458 = vmatprep.subr.bf16.mxu0 %v2183
    %2459 = vmatpush1.bf16.msra.mxu0 %v2182
    %2460 = vmatprep.subr.bf16.mxu0 %v2187
    %2461 = vmatpush1.bf16.msra.mxu0 %v2186
    %2462 = vmatprep.subr.bf16.mxu0 %v2191
    %2463 = vmatpush1.bf16.msra.mxu0 %v2190
    %2464 = vmatprep.subr.bf16.mxu0 %v2195
    %2465 = vmatpush1.bf16.msra.mxu0 %v2194
    %2466 = vmatprep.subr.bf16.mxu0 %v2199
    %2467 = vmatpush1.bf16.msra.mxu0 %v2198
    %2468 = vmatprep.subr.bf16.mxu0 %v2203
    %2469 = vmatpush1.bf16.msra.mxu0 %v2202
    %2470 = vmatprep.subr.bf16.mxu0 %v2207
    %2471 = vmatpush1.bf16.msra.mxu0 %v2206
    %2472 = vmatprep.subr.bf16.mxu0 %v2211
    %2473 = vmatpush1.bf16.msra.mxu0 %v2210
    %2474 = vmatprep.subr.bf16.mxu0 %v2215
    %2475 = vmatpush1.bf16.msra.mxu0 %v2214
    %2476 = vmatprep.subr.bf16.mxu0 %v2219
    %2477 = vmatpush1.bf16.msra.mxu0 %v2218
    %2478 = vmatprep.subr.bf16.mxu0 %v2223
    %2479 = vmatpush1.bf16.msra.mxu0 %v2222
    %2480 = vmatprep.subr.bf16.mxu0 %v2227
    %2481 = vmatpush1.bf16.msra.mxu0 %v2226
    %2482 = vmatprep.subr.bf16.mxu0 %v2231
    %2483 = vmatpush1.bf16.msra.mxu0 %v2230
    %2484 = vmatprep.subr.bf16.mxu0 %v2235
    %2485 = vmatpush1.bf16.msra.mxu0 %v2234
    %2486 = vmatprep.subr.bf16.mxu0 %v2239
    %2487 = vmatpush1.bf16.msra.mxu0 %v2238
    %2488 = vmatprep.subr.bf16.mxu0 %v2243
    %2489 = vmatpush1.bf16.msra.mxu0 %v2242
    %2490 = vmatprep.mubr.bf16.mxu0 %v1869
    %2491 = vmatmul.mubr.bf16.gmra.mrb[0].mxu0 %v1868
    %v2492 = vpop.f32.mrb[0].mxu0
    %v2493 = vadd.f32 %v1883, %v2492
    %v2494 = vpop.f32.mrb[0].mxu0
    %v2495 = vadd.f32 %v1887, %v2494
    %v2496 = vpop.f32.mrb[0].mxu0
    %v2497 = vadd.f32 %v1883, %v2496
    %v2498 = vpop.f32.mrb[0].mxu0
    %v2499 = vadd.f32 %v1887, %v2498
    %2500 = vdwg.mxu0
    %2501 = vmatprep.subr.bf16.mxu0 %v2247
    %2502 = vmatpush1.bf16.msra.mxu0 %v2246
    %2503 = vmatprep.subr.bf16.mxu0 %v2251
    %2504 = vmatpush1.bf16.msra.mxu0 %v2250
    %2505 = vmatprep.subr.bf16.mxu0 %v2255
    %2506 = vmatpush1.bf16.msra.mxu0 %v2254
    %2507 = vmatprep.subr.bf16.mxu0 %v2259
    %2508 = vmatpush1.bf16.msra.mxu0 %v2258
    %2509 = vmatprep.subr.bf16.mxu0 %v2263
    %2510 = vmatpush1.bf16.msra.mxu0 %v2262
    %2511 = vmatprep.subr.bf16.mxu0 %v2267
    %2512 = vmatpush1.bf16.msra.mxu0 %v2266
    %2513 = vmatprep.subr.bf16.mxu0 %v2271
    %2514 = vmatpush1.bf16.msra.mxu0 %v2270
    %2515 = vmatprep.subr.bf16.mxu0 %v2275
    %2516 = vmatpush1.bf16.msra.mxu0 %v2274
    %2517 = vmatprep.subr.bf16.mxu0 0
    %2518 = vmatpush1.bf16.msra.mxu0 0
    %2519 = vmatprep.subr.bf16.mxu0 0
    %2520 = vmatpush1.bf16.msra.mxu0 0
    %2521 = vmatprep.subr.bf16.mxu0 0
    %2522 = vmatpush1.bf16.msra.mxu0 0
    %2523 = vmatprep.subr.bf16.mxu0 0
    %2524 = vmatpush1.bf16.msra.mxu0 0
    %2525 = vmatprep.subr.bf16.mxu0 0
    %2526 = vmatpush1.bf16.msra.mxu0 0
    %2527 = vmatprep.subr.bf16.mxu0 0
    %2528 = vmatpush1.bf16.msra.mxu0 0
    %2529 = vmatprep.subr.bf16.mxu0 0
    %2530 = vmatpush1.bf16.msra.mxu0 0
    %2531 = vmatprep.subr.bf16.mxu0 0
    %2532 = vmatpush1.bf16.msra.mxu0 0
    %2533 = vmatprep.mubr.bf16.mxu0 0
    %2534 = vmatmul.mubr.bf16.gmra.mrb[0].mxu0 %v1870
    %v2535 = vpop.f32.mrb[0].mxu0
    %v2536 = vadd.f32 %v2493, %v2535
    %v2537 = vpop.f32.mrb[0].mxu0
    %v2538 = vadd.f32 %v2495, %v2537
    %v2539 = vpop.f32.mrb[0].mxu0
    %v2540 = vadd.f32 %v2497, %v2539
    %v2541 = vpop.f32.mrb[0].mxu0
    %v2542 = vadd.f32 %v2499, %v2541
    %2543 = vdwg.mxu0
    %vm2544 = vcmp.gt.f32.partialorder %v2450, 0.0
    %vm2545 = vcmp.gt.f32.partialorder %v2452, 0.0
    %vm2546 = vcmp.gt.f32.partialorder %v2536, 0.0
    %vm2547 = vcmp.gt.f32.partialorder %v2538, 0.0
    %vm2548 = vcmp.gt.f32.partialorder %v2454, 0.0
    %vm2549 = vcmp.gt.f32.partialorder %v2456, 0.0
    %vm2550 = vcmp.gt.f32.partialorder %v2540, 0.0
    %vm2551 = vcmp.gt.f32.partialorder %v2542, 0.0
    %v2552 = vmul.f32 %v2450, 0.01
    %v2553 = vmul.f32 %v2452, 0.01
    %v2554 = vmul.f32 %v2536, 0.01
    %v2555 = vmul.f32 %v2538, 0.01
    %v2556 = vmul.f32 %v2454, 0.01
    %v2557 = vmul.f32 %v2456, 0.01
    %v2558 = vmul.f32 %v2540, 0.01
    %v2559 = vmul.f32 %v2542, 0.01
    %v2560 = vsel %vm2544, %v2450, %v2552
    %v2561 = vsel %vm2545, %v2452, %v2553
    %v2562 = vsel %vm2546, %v2536, %v2554
    %v2563 = vsel %vm2547, %v2538, %v2555
    %v2564 = vsel %vm2548, %v2454, %v2556
    %v2565 = vsel %vm2549, %v2456, %v2557
    %v2566 = vsel %vm2550, %v2540, %v2558
    %v2567 = vsel %vm2551, %v2542, %v2559
    %v2568 = vld [vmem:[#allocation11] sm:$0xff]
    %v2569 = vld [vmem:[#allocation11 + $0x8] sm:$0xff]
    %v2570 = vld [vmem:[#allocation11 + $0x10] sm:$0xff]
    %v2571 = vld [vmem:[#allocation11 + $0x18] sm:$0xff]
    %v2572 = vld [vmem:[#allocation11 + $0x20] sm:$0xff]
    %v2573 = vld [vmem:[#allocation11 + $0x28] sm:$0xff]
    %v2574 = vld [vmem:[#allocation11 + $0x30] sm:$0xff]
    %v2575 = vld [vmem:[#allocation11 + $0x38] sm:$0xff]
    %v2576 = vld [vmem:[#allocation11 + $0x40] sm:$0xff]
    %v2577 = vld [vmem:[#allocation11 + $0x48] sm:$0xff]
    %v2578 = vld [vmem:[#allocation11 + $0x50] sm:$0xff]
    %v2579 = vld [vmem:[#allocation11 + $0x58] sm:$0xff]
    %v2580 = vld [vmem:[#allocation11 + $0x60] sm:$0xff]
    %v2581 = vld [vmem:[#allocation11 + $0x68] sm:$0xff]
    %v2582 = vld [vmem:[#allocation11 + $0x70] sm:$0xff]
    %v2583 = vld [vmem:[#allocation11 + $0x78] sm:$0xff]
    %v2584 = vld [vmem:[#allocation11 + $0x80] sm:$0xff]
    %v2585 = vld [vmem:[#allocation11 + $0x88] sm:$0xff]
    %v2586 = vld [vmem:[#allocation11 + $0x90] sm:$0xff]
    %v2587 = vld [vmem:[#allocation11 + $0x98] sm:$0xff]
    %v2588 = vld [vmem:[#allocation11 + $0xa0] sm:$0xff]
    %v2589 = vld [vmem:[#allocation11 + $0xa8] sm:$0xff]
    %v2590 = vld [vmem:[#allocation11 + $0xb0] sm:$0xff]
    %v2591 = vld [vmem:[#allocation11 + $0xb8] sm:$0xff]
    %v2592 = vld [vmem:[#allocation11 + $0xc0] sm:$0xff]
    %v2593 = vld [vmem:[#allocation11 + $0xc8] sm:$0xff]
    %v2594 = vld [vmem:[#allocation11 + $0xd0] sm:$0xff]
    %v2595 = vld [vmem:[#allocation11 + $0xd8] sm:$0xff]
    %v2596 = vld [vmem:[#allocation11 + $0xe0] sm:$0xff]
    %v2597 = vld [vmem:[#allocation11 + $0xe8] sm:$0xff]
    %v2598 = vld [vmem:[#allocation11 + $0xf0] sm:$0xff]
    %v2599 = vld [vmem:[#allocation11 + $0xf8] sm:$0xff]
    %v2600 = vld [vmem:[#allocation11 + $0x100] sm:$0xff]
    %v2601 = vld [vmem:[#allocation11 + $0x108] sm:$0xff]
    %v2602 = vld [vmem:[#allocation11 + $0x110] sm:$0xff]
    %v2603 = vld [vmem:[#allocation11 + $0x118] sm:$0xff]
    %v2604 = vld [vmem:[#allocation11 + $0x120] sm:$0xff]
    %v2605 = vld [vmem:[#allocation11 + $0x128] sm:$0xff]
    %v2606 = vld [vmem:[#allocation11 + $0x130] sm:$0xff]
    %v2607 = vld [vmem:[#allocation11 + $0x138] sm:$0xff]
    %v2608 = vld [vmem:[#allocation11 + $0x140] sm:$0xff]
    %v2609 = vld [vmem:[#allocation11 + $0x148] sm:$0xff]
    %v2610 = vld [vmem:[#allocation11 + $0x150] sm:$0xff]
    %v2611 = vld [vmem:[#allocation11 + $0x158] sm:$0xff]
    %v2612 = vld [vmem:[#allocation11 + $0x160] sm:$0xff]
    %v2613 = vld [vmem:[#allocation11 + $0x168] sm:$0xff]
    %v2614 = vld [vmem:[#allocation11 + $0x170] sm:$0xff]
    %v2615 = vld [vmem:[#allocation11 + $0x178] sm:$0xff]
    %v2616 = vld [vmem:[#allocation11 + $0x180] sm:$0xff]
    %v2617 = vld [vmem:[#allocation11 + $0x188] sm:$0xff]
    %v2618 = vld [vmem:[#allocation11 + $0x190] sm:$0xff]
    %v2619 = vld [vmem:[#allocation11 + $0x198] sm:$0xff]
    %v2620 = vld [vmem:[#allocation11 + $0x1a0] sm:$0xff]
    %v2621 = vld [vmem:[#allocation11 + $0x1a8] sm:$0xff]
    %v2622 = vld [vmem:[#allocation11 + $0x1b0] sm:$0xff]
    %v2623 = vld [vmem:[#allocation11 + $0x1b8] sm:$0xff]
    %v2624 = vld [vmem:[#allocation11 + $0x1c0] sm:$0xff]
    %v2625 = vld [vmem:[#allocation11 + $0x1c8] sm:$0xff]
    %v2626 = vld [vmem:[#allocation11 + $0x1d0] sm:$0xff]
    %v2627 = vld [vmem:[#allocation11 + $0x1d8] sm:$0xff]
    %v2628 = vld [vmem:[#allocation11 + $0x1e0] sm:$0xff]
    %v2629 = vld [vmem:[#allocation11 + $0x1e8] sm:$0xff]
    %v2630 = vld [vmem:[#allocation11 + $0x1f0] sm:$0xff]
    %v2631 = vld [vmem:[#allocation11 + $0x1f8] sm:$0xff]
    %v2632 = vld [vmem:[#allocation11 + $0x200] sm:$0xff]
    %v2633 = vld [vmem:[#allocation11 + $0x208] sm:$0xff]
    %v2634 = vld [vmem:[#allocation11 + $0x210] sm:$0xff]
    %v2635 = vld [vmem:[#allocation11 + $0x218] sm:$0xff]
    %v2636 = vld [vmem:[#allocation11 + $0x220] sm:$0xff]
    %v2637 = vld [vmem:[#allocation11 + $0x228] sm:$0xff]
    %v2638 = vld [vmem:[#allocation11 + $0x230] sm:$0xff]
    %v2639 = vld [vmem:[#allocation11 + $0x238] sm:$0xff]
    %v2640 = vld [vmem:[#allocation11 + $0x240] sm:$0xff]
    %v2641 = vld [vmem:[#allocation11 + $0x248] sm:$0xff]
    %v2642 = vld [vmem:[#allocation11 + $0x250] sm:$0xff]
    %v2643 = vld [vmem:[#allocation11 + $0x258] sm:$0xff]
    %v2644 = vld [vmem:[#allocation11 + $0x260] sm:$0xff]
    %v2645 = vld [vmem:[#allocation11 + $0x268] sm:$0xff]
    %v2646 = vld [vmem:[#allocation11 + $0x270] sm:$0xff]
    %v2647 = vld [vmem:[#allocation11 + $0x278] sm:$0xff]
    %v2648 = vld [vmem:[#allocation11 + $0x280] sm:$0xff]
    %v2649 = vld [vmem:[#allocation11 + $0x288] sm:$0xff]
    %v2650 = vld [vmem:[#allocation11 + $0x290] sm:$0xff]
    %v2651 = vld [vmem:[#allocation11 + $0x298] sm:$0xff]
    %v2652 = vld [vmem:[#allocation11 + $0x2a0] sm:$0xff]
    %v2653 = vld [vmem:[#allocation11 + $0x2a8] sm:$0xff]
    %v2654 = vld [vmem:[#allocation11 + $0x2b0] sm:$0xff]
    %v2655 = vld [vmem:[#allocation11 + $0x2b8] sm:$0xff]
    %v2656 = vld [vmem:[#allocation11 + $0x2c0] sm:$0xff]
    %v2657 = vld [vmem:[#allocation11 + $0x2c8] sm:$0xff]
    %v2658 = vld [vmem:[#allocation11 + $0x2d0] sm:$0xff]
    %v2659 = vld [vmem:[#allocation11 + $0x2d8] sm:$0xff]
    %v2660 = vld [vmem:[#allocation11 + $0x2e0] sm:$0xff]
    %v2661 = vld [vmem:[#allocation11 + $0x2e8] sm:$0xff]
    %v2662 = vld [vmem:[#allocation11 + $0x2f0] sm:$0xff]
    %v2663 = vld [vmem:[#allocation11 + $0x2f8] sm:$0xff]
    %v2664 = vld [vmem:[#allocation11 + $0x300] sm:$0xff]
    %v2665 = vld [vmem:[#allocation11 + $0x308] sm:$0xff]
    %v2666 = vld [vmem:[#allocation11 + $0x310] sm:$0xff]
    %v2667 = vld [vmem:[#allocation11 + $0x318] sm:$0xff]
    %v2668 = vld [vmem:[#allocation11 + $0x320] sm:$0xff]
    %v2669 = vld [vmem:[#allocation11 + $0x328] sm:$0xff]
    %v2670 = vld [vmem:[#allocation11 + $0x330] sm:$0xff]
    %v2671 = vld [vmem:[#allocation11 + $0x338] sm:$0xff]
    %v2672 = vld [vmem:[#allocation11 + $0x340] sm:$0xff]
    %v2673 = vld [vmem:[#allocation11 + $0x348] sm:$0xff]
    %v2674 = vld [vmem:[#allocation11 + $0x350] sm:$0xff]
    %v2675 = vld [vmem:[#allocation11 + $0x358] sm:$0xff]
    %v2676 = vld [vmem:[#allocation11 + $0x360] sm:$0xff]
    %v2677 = vld [vmem:[#allocation11 + $0x368] sm:$0xff]
    %v2678 = vld [vmem:[#allocation11 + $0x370] sm:$0xff]
    %v2679 = vld [vmem:[#allocation11 + $0x378] sm:$0xff]
    %v2680 = vld [vmem:[#allocation11 + $0x380] sm:$0xff]
    %v2681 = vld [vmem:[#allocation11 + $0x388] sm:$0xff]
    %v2682 = vld [vmem:[#allocation11 + $0x390] sm:$0xff]
    %v2683 = vld [vmem:[#allocation11 + $0x398] sm:$0xff]
    %v2684 = vld [vmem:[#allocation11 + $0x3a0] sm:$0xff]
    %v2685 = vld [vmem:[#allocation11 + $0x3a8] sm:$0xff]
    %v2686 = vld [vmem:[#allocation11 + $0x3b0] sm:$0xff]
    %v2687 = vld [vmem:[#allocation11 + $0x3b8] sm:$0xff]
    %v2688 = vld [vmem:[#allocation11 + $0x3c0] sm:$0xff]
    %v2689 = vld [vmem:[#allocation11 + $0x3c8] sm:$0xff]
    %v2690 = vld [vmem:[#allocation11 + $0x3d0] sm:$0xff]
    %v2691 = vld [vmem:[#allocation11 + $0x3d8] sm:$0xff]
    %v2692 = vld [vmem:[#allocation11 + $0x3e0] sm:$0xff]
    %v2693 = vld [vmem:[#allocation11 + $0x3e8] sm:$0xff]
    %v2694 = vld [vmem:[#allocation11 + $0x3f0] sm:$0xff]
    %v2695 = vld [vmem:[#allocation11 + $0x3f8] sm:$0xff]
    %v2696 = vld [vmem:[%s14] sm:$0xf]
    %v2697 = vpack.c.bf16 %v2564, %v2560
    %v2698 = vpack.c.bf16 %v2565, %v2561
    %v2699 = vpack.c.bf16 %v2566, %v2562
    %v2700 = vpack.c.bf16 %v2567, %v2563
    %v2702 = vlaneseq
    %v2703 = vshrl.u32 %v2702, 7
    %v2704 = vsub.s32 0, %v2703
    %v2705 = vrot.slane %v2696, %v2704
    %v2706 = vlaneseq
    %v2707 = vshrl.u32 %v2706, 7
    %v2708 = vsub.s32 1, %v2707
    %v2709 = vrot.slane %v2696, %v2708
    %v2710 = vlaneseq
    %v2711 = vshrl.u32 %v2710, 7
    %v2712 = vsub.s32 2, %v2711
    %v2713 = vrot.slane %v2696, %v2712
    %v2714 = vlaneseq
    %v2715 = vshrl.u32 %v2714, 7
    %v2716 = vsub.s32 3, %v2715
    %v2717 = vrot.slane %v2696, %v2716
    %v2850 = vunpack.c.l.b16 %v2568
    %v2851 = vunpack.c.h.b16 %v2568
    %v2852 = vunpack.c.l.b16 %v2569
    %v2853 = vunpack.c.h.b16 %v2569
    %v2854 = vunpack.c.l.b16 %v2570
    %v2855 = vunpack.c.h.b16 %v2570
    %v2856 = vunpack.c.l.b16 %v2571
    %v2857 = vunpack.c.h.b16 %v2571
    %v2858 = vunpack.c.l.b16 %v2572
    %v2859 = vunpack.c.h.b16 %v2572
    %v2860 = vunpack.c.l.b16 %v2573
    %v2861 = vunpack.c.h.b16 %v2573
    %v2862 = vunpack.c.l.b16 %v2574
    %v2863 = vunpack.c.h.b16 %v2574
    %v2864 = vunpack.c.l.b16 %v2575
    %v2865 = vunpack.c.h.b16 %v2575
    %v2866 = vunpack.c.l.b16 %v2576
    %v2867 = vunpack.c.h.b16 %v2576
    %v2868 = vunpack.c.l.b16 %v2577
    %v2869 = vunpack.c.h.b16 %v2577
    %v2870 = vunpack.c.l.b16 %v2578
    %v2871 = vunpack.c.h.b16 %v2578
    %v2872 = vunpack.c.l.b16 %v2579
    %v2873 = vunpack.c.h.b16 %v2579
    %v2874 = vunpack.c.l.b16 %v2580
    %v2875 = vunpack.c.h.b16 %v2580
    %v2876 = vunpack.c.l.b16 %v2581
    %v2877 = vunpack.c.h.b16 %v2581
    %v2878 = vunpack.c.l.b16 %v2582
    %v2879 = vunpack.c.h.b16 %v2582
    %v2880 = vunpack.c.l.b16 %v2583
    %v2881 = vunpack.c.h.b16 %v2583
    %v2882 = vunpack.c.l.b16 %v2584
    %v2883 = vunpack.c.h.b16 %v2584
    %v2884 = vunpack.c.l.b16 %v2585
    %v2885 = vunpack.c.h.b16 %v2585
    %v2886 = vunpack.c.l.b16 %v2586
    %v2887 = vunpack.c.h.b16 %v2586
    %v2888 = vunpack.c.l.b16 %v2587
    %v2889 = vunpack.c.h.b16 %v2587
    %v2890 = vunpack.c.l.b16 %v2588
    %v2891 = vunpack.c.h.b16 %v2588
    %v2892 = vunpack.c.l.b16 %v2589
    %v2893 = vunpack.c.h.b16 %v2589
    %v2894 = vunpack.c.l.b16 %v2590
    %v2895 = vunpack.c.h.b16 %v2590
    %v2896 = vunpack.c.l.b16 %v2591
    %v2897 = vunpack.c.h.b16 %v2591
    %v2898 = vunpack.c.l.b16 %v2592
    %v2899 = vunpack.c.h.b16 %v2592
    %v2900 = vunpack.c.l.b16 %v2593
    %v2901 = vunpack.c.h.b16 %v2593
    %v2902 = vunpack.c.l.b16 %v2594
    %v2903 = vunpack.c.h.b16 %v2594
    %v2904 = vunpack.c.l.b16 %v2595
    %v2905 = vunpack.c.h.b16 %v2595
    %v2906 = vunpack.c.l.b16 %v2596
    %v2907 = vunpack.c.h.b16 %v2596
    %v2908 = vunpack.c.l.b16 %v2597
    %v2909 = vunpack.c.h.b16 %v2597
    %v2910 = vunpack.c.l.b16 %v2598
    %v2911 = vunpack.c.h.b16 %v2598
    %v2912 = vunpack.c.l.b16 %v2599
    %v2913 = vunpack.c.h.b16 %v2599
    %v2914 = vunpack.c.l.b16 %v2600
    %v2915 = vunpack.c.h.b16 %v2600
    %v2916 = vunpack.c.l.b16 %v2601
    %v2917 = vunpack.c.h.b16 %v2601
    %v2918 = vunpack.c.l.b16 %v2602
    %v2919 = vunpack.c.h.b16 %v2602
    %v2920 = vunpack.c.l.b16 %v2603
    %v2921 = vunpack.c.h.b16 %v2603
    %v2922 = vunpack.c.l.b16 %v2604
    %v2923 = vunpack.c.h.b16 %v2604
    %v2924 = vunpack.c.l.b16 %v2605
    %v2925 = vunpack.c.h.b16 %v2605
    %v2926 = vunpack.c.l.b16 %v2606
    %v2927 = vunpack.c.h.b16 %v2606
    %v2928 = vunpack.c.l.b16 %v2607
    %v2929 = vunpack.c.h.b16 %v2607
    %v2930 = vunpack.c.l.b16 %v2608
    %v2931 = vunpack.c.h.b16 %v2608
    %v2932 = vunpack.c.l.b16 %v2609
    %v2933 = vunpack.c.h.b16 %v2609
    %v2934 = vunpack.c.l.b16 %v2610
    %v2935 = vunpack.c.h.b16 %v2610
    %v2936 = vunpack.c.l.b16 %v2611
    %v2937 = vunpack.c.h.b16 %v2611
    %v2938 = vunpack.c.l.b16 %v2612
    %v2939 = vunpack.c.h.b16 %v2612
    %v2940 = vunpack.c.l.b16 %v2613
    %v2941 = vunpack.c.h.b16 %v2613
    %v2942 = vunpack.c.l.b16 %v2614
    %v2943 = vunpack.c.h.b16 %v2614
    %v2944 = vunpack.c.l.b16 %v2615
    %v2945 = vunpack.c.h.b16 %v2615
    %v2946 = vunpack.c.l.b16 %v2616
    %v2947 = vunpack.c.h.b16 %v2616
    %v2948 = vunpack.c.l.b16 %v2617
    %v2949 = vunpack.c.h.b16 %v2617
    %v2950 = vunpack.c.l.b16 %v2618
    %v2951 = vunpack.c.h.b16 %v2618
    %v2952 = vunpack.c.l.b16 %v2619
    %v2953 = vunpack.c.h.b16 %v2619
    %v2954 = vunpack.c.l.b16 %v2620
    %v2955 = vunpack.c.h.b16 %v2620
    %v2956 = vunpack.c.l.b16 %v2621
    %v2957 = vunpack.c.h.b16 %v2621
    %v2958 = vunpack.c.l.b16 %v2622
    %v2959 = vunpack.c.h.b16 %v2622
    %v2960 = vunpack.c.l.b16 %v2623
    %v2961 = vunpack.c.h.b16 %v2623
    %v2962 = vunpack.c.l.b16 %v2624
    %v2963 = vunpack.c.h.b16 %v2624
    %v2964 = vunpack.c.l.b16 %v2625
    %v2965 = vunpack.c.h.b16 %v2625
    %v2966 = vunpack.c.l.b16 %v2626
    %v2967 = vunpack.c.h.b16 %v2626
    %v2968 = vunpack.c.l.b16 %v2627
    %v2969 = vunpack.c.h.b16 %v2627
    %v2970 = vunpack.c.l.b16 %v2628
    %v2971 = vunpack.c.h.b16 %v2628
    %v2972 = vunpack.c.l.b16 %v2629
    %v2973 = vunpack.c.h.b16 %v2629
    %v2974 = vunpack.c.l.b16 %v2630
    %v2975 = vunpack.c.h.b16 %v2630
    %v2976 = vunpack.c.l.b16 %v2631
    %v2977 = vunpack.c.h.b16 %v2631
    %v2978 = vunpack.c.l.b16 %v2632
    %v2979 = vunpack.c.h.b16 %v2632
    %v2980 = vunpack.c.l.b16 %v2633
    %v2981 = vunpack.c.h.b16 %v2633
    %v2982 = vunpack.c.l.b16 %v2634
    %v2983 = vunpack.c.h.b16 %v2634
    %v2984 = vunpack.c.l.b16 %v2635
    %v2985 = vunpack.c.h.b16 %v2635
    %v2986 = vunpack.c.l.b16 %v2636
    %v2987 = vunpack.c.h.b16 %v2636
    %v2988 = vunpack.c.l.b16 %v2637
    %v2989 = vunpack.c.h.b16 %v2637
    %v2990 = vunpack.c.l.b16 %v2638
    %v2991 = vunpack.c.h.b16 %v2638
    %v2992 = vunpack.c.l.b16 %v2639
    %v2993 = vunpack.c.h.b16 %v2639
    %v2994 = vunpack.c.l.b16 %v2640
    %v2995 = vunpack.c.h.b16 %v2640
    %v2996 = vunpack.c.l.b16 %v2641
    %v2997 = vunpack.c.h.b16 %v2641
    %v2998 = vunpack.c.l.b16 %v2642
    %v2999 = vunpack.c.h.b16 %v2642
    %v3000 = vunpack.c.l.b16 %v2643
    %v3001 = vunpack.c.h.b16 %v2643
    %v3002 = vunpack.c.l.b16 %v2644
    %v3003 = vunpack.c.h.b16 %v2644
    %v3004 = vunpack.c.l.b16 %v2645
    %v3005 = vunpack.c.h.b16 %v2645
    %v3006 = vunpack.c.l.b16 %v2646
    %v3007 = vunpack.c.h.b16 %v2646
    %v3008 = vunpack.c.l.b16 %v2647
    %v3009 = vunpack.c.h.b16 %v2647
    %v3010 = vunpack.c.l.b16 %v2648
    %v3011 = vunpack.c.h.b16 %v2648
    %v3012 = vunpack.c.l.b16 %v2649
    %v3013 = vunpack.c.h.b16 %v2649
    %v3014 = vunpack.c.l.b16 %v2650
    %v3015 = vunpack.c.h.b16 %v2650
    %v3016 = vunpack.c.l.b16 %v2651
    %v3017 = vunpack.c.h.b16 %v2651
    %v3018 = vunpack.c.l.b16 %v2652
    %v3019 = vunpack.c.h.b16 %v2652
    %v3020 = vunpack.c.l.b16 %v2653
    %v3021 = vunpack.c.h.b16 %v2653
    %v3022 = vunpack.c.l.b16 %v2654
    %v3023 = vunpack.c.h.b16 %v2654
    %v3024 = vunpack.c.l.b16 %v2655
    %v3025 = vunpack.c.h.b16 %v2655
    %v3026 = vunpack.c.l.b16 %v2656
    %v3027 = vunpack.c.h.b16 %v2656
    %v3028 = vunpack.c.l.b16 %v2657
    %v3029 = vunpack.c.h.b16 %v2657
    %v3030 = vunpack.c.l.b16 %v2658
    %v3031 = vunpack.c.h.b16 %v2658
    %v3032 = vunpack.c.l.b16 %v2659
    %v3033 = vunpack.c.h.b16 %v2659
    %v3034 = vunpack.c.l.b16 %v2660
    %v3035 = vunpack.c.h.b16 %v2660
    %v3036 = vunpack.c.l.b16 %v2661
    %v3037 = vunpack.c.h.b16 %v2661
    %v3038 = vunpack.c.l.b16 %v2662
    %v3039 = vunpack.c.h.b16 %v2662
    %v3040 = vunpack.c.l.b16 %v2663
    %v3041 = vunpack.c.h.b16 %v2663
    %v3042 = vunpack.c.l.b16 %v2664
    %v3043 = vunpack.c.h.b16 %v2664
    %v3044 = vunpack.c.l.b16 %v2665
    %v3045 = vunpack.c.h.b16 %v2665
    %v3046 = vunpack.c.l.b16 %v2666
    %v3047 = vunpack.c.h.b16 %v2666
    %v3048 = vunpack.c.l.b16 %v2667
    %v3049 = vunpack.c.h.b16 %v2667
    %v3050 = vunpack.c.l.b16 %v2668
    %v3051 = vunpack.c.h.b16 %v2668
    %v3052 = vunpack.c.l.b16 %v2669
    %v3053 = vunpack.c.h.b16 %v2669
    %v3054 = vunpack.c.l.b16 %v2670
    %v3055 = vunpack.c.h.b16 %v2670
    %v3056 = vunpack.c.l.b16 %v2671
    %v3057 = vunpack.c.h.b16 %v2671
    %v3058 = vunpack.c.l.b16 %v2672
    %v3059 = vunpack.c.h.b16 %v2672
    %v3060 = vunpack.c.l.b16 %v2673
    %v3061 = vunpack.c.h.b16 %v2673
    %v3062 = vunpack.c.l.b16 %v2674
    %v3063 = vunpack.c.h.b16 %v2674
    %v3064 = vunpack.c.l.b16 %v2675
    %v3065 = vunpack.c.h.b16 %v2675
    %v3066 = vunpack.c.l.b16 %v2676
    %v3067 = vunpack.c.h.b16 %v2676
    %v3068 = vunpack.c.l.b16 %v2677
    %v3069 = vunpack.c.h.b16 %v2677
    %v3070 = vunpack.c.l.b16 %v2678
    %v3071 = vunpack.c.h.b16 %v2678
    %v3072 = vunpack.c.l.b16 %v2679
    %v3073 = vunpack.c.h.b16 %v2679
    %v3074 = vunpack.c.l.b16 %v2680
    %v3075 = vunpack.c.h.b16 %v2680
    %v3076 = vunpack.c.l.b16 %v2681
    %v3077 = vunpack.c.h.b16 %v2681
    %v3078 = vunpack.c.l.b16 %v2682
    %v3079 = vunpack.c.h.b16 %v2682
    %v3080 = vunpack.c.l.b16 %v2683
    %v3081 = vunpack.c.h.b16 %v2683
    %v3082 = vunpack.c.l.b16 %v2684
    %v3083 = vunpack.c.h.b16 %v2684
    %v3084 = vunpack.c.l.b16 %v2685
    %v3085 = vunpack.c.h.b16 %v2685
    %v3086 = vunpack.c.l.b16 %v2686
    %v3087 = vunpack.c.h.b16 %v2686
    %v3088 = vunpack.c.l.b16 %v2687
    %v3089 = vunpack.c.h.b16 %v2687
    %v3090 = vunpack.c.l.b16 %v2688
    %v3091 = vunpack.c.h.b16 %v2688
    %v3092 = vunpack.c.l.b16 %v2689
    %v3093 = vunpack.c.h.b16 %v2689
    %v3094 = vunpack.c.l.b16 %v2690
    %v3095 = vunpack.c.h.b16 %v2690
    %v3096 = vunpack.c.l.b16 %v2691
    %v3097 = vunpack.c.h.b16 %v2691
    %v3098 = vunpack.c.l.b16 %v2692
    %v3099 = vunpack.c.h.b16 %v2692
    %v3100 = vunpack.c.l.b16 %v2693
    %v3101 = vunpack.c.h.b16 %v2693
    %v3102 = vunpack.c.l.b16 %v2694
    %v3103 = vunpack.c.h.b16 %v2694
    %v3104 = vunpack.c.l.b16 %v2695
    %v3105 = vunpack.c.h.b16 %v2695
    %v3106 = vpack.c.b16 %v2854, %v2850
    %v3107 = vpack.c.b16 %v2855, %v2851
    %v3108 = vpack.c.b16 %v2856, %v2852
    %v3109 = vpack.c.b16 %v2857, %v2853
    %v3110 = vpack.c.b16 %v2862, %v2858
    %v3111 = vpack.c.b16 %v2863, %v2859
    %v3112 = vpack.c.b16 %v2864, %v2860
    %v3113 = vpack.c.b16 %v2865, %v2861
    %v3114 = vpack.c.b16 %v2870, %v2866
    %v3115 = vpack.c.b16 %v2871, %v2867
    %v3116 = vpack.c.b16 %v2872, %v2868
    %v3117 = vpack.c.b16 %v2873, %v2869
    %v3118 = vpack.c.b16 %v2878, %v2874
    %v3119 = vpack.c.b16 %v2879, %v2875
    %v3120 = vpack.c.b16 %v2880, %v2876
    %v3121 = vpack.c.b16 %v2881, %v2877
    %v3122 = vpack.c.b16 %v2886, %v2882
    %v3123 = vpack.c.b16 %v2887, %v2883
    %v3124 = vpack.c.b16 %v2888, %v2884
    %v3125 = vpack.c.b16 %v2889, %v2885
    %v3126 = vpack.c.b16 %v2894, %v2890
    %v3127 = vpack.c.b16 %v2895, %v2891
    %v3128 = vpack.c.b16 %v2896, %v2892
    %v3129 = vpack.c.b16 %v2897, %v2893
    %v3130 = vpack.c.b16 %v2902, %v2898
    %v3131 = vpack.c.b16 %v2903, %v2899
    %v3132 = vpack.c.b16 %v2904, %v2900
    %v3133 = vpack.c.b16 %v2905, %v2901
    %v3134 = vpack.c.b16 %v2910, %v2906
    %v3135 = vpack.c.b16 %v2911, %v2907
    %v3136 = vpack.c.b16 %v2912, %v2908
    %v3137 = vpack.c.b16 %v2913, %v2909
    %v3138 = vpack.c.b16 %v2918, %v2914
    %v3139 = vpack.c.b16 %v2919, %v2915
    %v3140 = vpack.c.b16 %v2920, %v2916
    %v3141 = vpack.c.b16 %v2921, %v2917
    %v3142 = vpack.c.b16 %v2926, %v2922
    %v3143 = vpack.c.b16 %v2927, %v2923
    %v3144 = vpack.c.b16 %v2928, %v2924
    %v3145 = vpack.c.b16 %v2929, %v2925
    %v3146 = vpack.c.b16 %v2934, %v2930
    %v3147 = vpack.c.b16 %v2935, %v2931
    %v3148 = vpack.c.b16 %v2936, %v2932
    %v3149 = vpack.c.b16 %v2937, %v2933
    %v3150 = vpack.c.b16 %v2942, %v2938
    %v3151 = vpack.c.b16 %v2943, %v2939
    %v3152 = vpack.c.b16 %v2944, %v2940
    %v3153 = vpack.c.b16 %v2945, %v2941
    %v3154 = vpack.c.b16 %v2950, %v2946
    %v3155 = vpack.c.b16 %v2951, %v2947
    %v3156 = vpack.c.b16 %v2952, %v2948
    %v3157 = vpack.c.b16 %v2953, %v2949
    %v3158 = vpack.c.b16 %v2958, %v2954
    %v3159 = vpack.c.b16 %v2959, %v2955
    %v3160 = vpack.c.b16 %v2960, %v2956
    %v3161 = vpack.c.b16 %v2961, %v2957
    %v3162 = vpack.c.b16 %v2966, %v2962
    %v3163 = vpack.c.b16 %v2967, %v2963
    %v3164 = vpack.c.b16 %v2968, %v2964
    %v3165 = vpack.c.b16 %v2969, %v2965
    %v3166 = vpack.c.b16 %v2974, %v2970
    %v3167 = vpack.c.b16 %v2975, %v2971
    %v3168 = vpack.c.b16 %v2976, %v2972
    %v3169 = vpack.c.b16 %v2977, %v2973
    %v3170 = vpack.c.b16 %v2982, %v2978
    %v3171 = vpack.c.b16 %v2983, %v2979
    %v3172 = vpack.c.b16 %v2984, %v2980
    %v3173 = vpack.c.b16 %v2985, %v2981
    %v3174 = vpack.c.b16 %v2990, %v2986
    %v3175 = vpack.c.b16 %v2991, %v2987
    %v3176 = vpack.c.b16 %v2992, %v2988
    %v3177 = vpack.c.b16 %v2993, %v2989
    %v3178 = vpack.c.b16 %v2998, %v2994
    %v3179 = vpack.c.b16 %v2999, %v2995
    %v3180 = vpack.c.b16 %v3000, %v2996
    %v3181 = vpack.c.b16 %v3001, %v2997
    %v3182 = vpack.c.b16 %v3006, %v3002
    %v3183 = vpack.c.b16 %v3007, %v3003
    %v3184 = vpack.c.b16 %v3008, %v3004
    %v3185 = vpack.c.b16 %v3009, %v3005
    %v3186 = vpack.c.b16 %v3014, %v3010
    %v3187 = vpack.c.b16 %v3015, %v3011
    %v3188 = vpack.c.b16 %v3016, %v3012
    %v3189 = vpack.c.b16 %v3017, %v3013
    %v3190 = vpack.c.b16 %v3022, %v3018
    %v3191 = vpack.c.b16 %v3023, %v3019
    %v3192 = vpack.c.b16 %v3024, %v3020
    %v3193 = vpack.c.b16 %v3025, %v3021
    %v3194 = vpack.c.b16 %v3030, %v3026
    %v3195 = vpack.c.b16 %v3031, %v3027
    %v3196 = vpack.c.b16 %v3032, %v3028
    %v3197 = vpack.c.b16 %v3033, %v3029
    %v3198 = vpack.c.b16 %v3038, %v3034
    %v3199 = vpack.c.b16 %v3039, %v3035
    %v3200 = vpack.c.b16 %v3040, %v3036
    %v3201 = vpack.c.b16 %v3041, %v3037
    %v3202 = vpack.c.b16 %v3046, %v3042
    %v3203 = vpack.c.b16 %v3047, %v3043
    %v3204 = vpack.c.b16 %v3048, %v3044
    %v3205 = vpack.c.b16 %v3049, %v3045
    %v3206 = vpack.c.b16 %v3054, %v3050
    %v3207 = vpack.c.b16 %v3055, %v3051
    %v3208 = vpack.c.b16 %v3056, %v3052
    %v3209 = vpack.c.b16 %v3057, %v3053
    %v3210 = vpack.c.b16 %v3062, %v3058
    %v3211 = vpack.c.b16 %v3063, %v3059
    %v3212 = vpack.c.b16 %v3064, %v3060
    %v3213 = vpack.c.b16 %v3065, %v3061
    %v3214 = vpack.c.b16 %v3070, %v3066
    %v3215 = vpack.c.b16 %v3071, %v3067
    %v3216 = vpack.c.b16 %v3072, %v3068
    %v3217 = vpack.c.b16 %v3073, %v3069
    %v3218 = vpack.c.b16 %v3078, %v3074
    %v3219 = vpack.c.b16 %v3079, %v3075
    %v3220 = vpack.c.b16 %v3080, %v3076
    %v3221 = vpack.c.b16 %v3081, %v3077
    %v3222 = vpack.c.b16 %v3086, %v3082
    %v3223 = vpack.c.b16 %v3087, %v3083
    %v3224 = vpack.c.b16 %v3088, %v3084
    %v3225 = vpack.c.b16 %v3089, %v3085
    %v3226 = vpack.c.b16 %v3094, %v3090
    %v3227 = vpack.c.b16 %v3095, %v3091
    %v3228 = vpack.c.b16 %v3096, %v3092
    %v3229 = vpack.c.b16 %v3097, %v3093
    %v3230 = vpack.c.b16 %v3102, %v3098
    %v3231 = vpack.c.b16 %v3103, %v3099
    %v3232 = vpack.c.b16 %v3104, %v3100
    %v3233 = vpack.c.b16 %v3105, %v3101
    %3362 = vmatprep.subr.bf16.mxu0 %v3107
    %3363 = vmatpush1.bf16.msra.mxu0 %v3106
    %3364 = vmatprep.subr.bf16.mxu0 %v3111
    %3365 = vmatpush1.bf16.msra.mxu0 %v3110
    %3366 = vmatprep.subr.bf16.mxu0 %v3115
    %3367 = vmatpush1.bf16.msra.mxu0 %v3114
    %3368 = vmatprep.subr.bf16.mxu0 %v3119
    %3369 = vmatpush1.bf16.msra.mxu0 %v3118
    %3370 = vmatprep.subr.bf16.mxu0 %v3123
    %3371 = vmatpush1.bf16.msra.mxu0 %v3122
    %3372 = vmatprep.subr.bf16.mxu0 %v3127
    %3373 = vmatpush1.bf16.msra.mxu0 %v3126
    %3374 = vmatprep.subr.bf16.mxu0 %v3131
    %3375 = vmatpush1.bf16.msra.mxu0 %v3130
    %3376 = vmatprep.subr.bf16.mxu0 %v3135
    %3377 = vmatpush1.bf16.msra.mxu0 %v3134
    %3378 = vmatprep.subr.bf16.mxu0 %v3139
    %3379 = vmatpush1.bf16.msra.mxu0 %v3138
    %3380 = vmatprep.subr.bf16.mxu0 %v3143
    %3381 = vmatpush1.bf16.msra.mxu0 %v3142
    %3382 = vmatprep.subr.bf16.mxu0 %v3147
    %3383 = vmatpush1.bf16.msra.mxu0 %v3146
    %3384 = vmatprep.subr.bf16.mxu0 %v3151
    %3385 = vmatpush1.bf16.msra.mxu0 %v3150
    %3386 = vmatprep.subr.bf16.mxu0 %v3155
    %3387 = vmatpush1.bf16.msra.mxu0 %v3154
    %3388 = vmatprep.subr.bf16.mxu0 %v3159
    %3389 = vmatpush1.bf16.msra.mxu0 %v3158
    %3390 = vmatprep.subr.bf16.mxu0 %v3163
    %3391 = vmatpush1.bf16.msra.mxu0 %v3162
    %3392 = vmatprep.subr.bf16.mxu0 %v3167
    %3393 = vmatpush1.bf16.msra.mxu0 %v3166
    %3394 = vmatprep.mubr.bf16.mxu0 %v2698
    %3395 = vmatmul.mubr.bf16.gmra.mrb[0].mxu0 %v2697
    %v3396 = vpop.f32.mrb[0].mxu0
    %v3397 = vadd.f32 %v2705, %v3396
    %v3398 = vpop.f32.mrb[0].mxu0
    %v3399 = vadd.f32 %v2709, %v3398
    %v3400 = vpop.f32.mrb[0].mxu0
    %v3401 = vadd.f32 %v2705, %v3400
    %v3402 = vpop.f32.mrb[0].mxu0
    %v3403 = vadd.f32 %v2709, %v3402
    %3404 = vdwg.mxu0
    %3405 = vmatprep.subr.bf16.mxu0 %v3171
    %3406 = vmatpush1.bf16.msra.mxu0 %v3170
    %3407 = vmatprep.subr.bf16.mxu0 %v3175
    %3408 = vmatpush1.bf16.msra.mxu0 %v3174
    %3409 = vmatprep.subr.bf16.mxu0 %v3179
    %3410 = vmatpush1.bf16.msra.mxu0 %v3178
    %3411 = vmatprep.subr.bf16.mxu0 %v3183
    %3412 = vmatpush1.bf16.msra.mxu0 %v3182
    %3413 = vmatprep.subr.bf16.mxu0 %v3187
    %3414 = vmatpush1.bf16.msra.mxu0 %v3186
    %3415 = vmatprep.subr.bf16.mxu0 %v3191
    %3416 = vmatpush1.bf16.msra.mxu0 %v3190
    %3417 = vmatprep.subr.bf16.mxu0 %v3195
    %3418 = vmatpush1.bf16.msra.mxu0 %v3194
    %3419 = vmatprep.subr.bf16.mxu0 %v3199
    %3420 = vmatpush1.bf16.msra.mxu0 %v3198
    %3421 = vmatprep.subr.bf16.mxu0 %v3203
    %3422 = vmatpush1.bf16.msra.mxu0 %v3202
    %3423 = vmatprep.subr.bf16.mxu0 %v3207
    %3424 = vmatpush1.bf16.msra.mxu0 %v3206
    %3425 = vmatprep.subr.bf16.mxu0 %v3211
    %3426 = vmatpush1.bf16.msra.mxu0 %v3210
    %3427 = vmatprep.subr.bf16.mxu0 %v3215
    %3428 = vmatpush1.bf16.msra.mxu0 %v3214
    %3429 = vmatprep.subr.bf16.mxu0 %v3219
    %3430 = vmatpush1.bf16.msra.mxu0 %v3218
    %3431 = vmatprep.subr.bf16.mxu0 %v3223
    %3432 = vmatpush1.bf16.msra.mxu0 %v3222
    %3433 = vmatprep.subr.bf16.mxu0 %v3227
    %3434 = vmatpush1.bf16.msra.mxu0 %v3226
    %3435 = vmatprep.subr.bf16.mxu0 %v3231
    %3436 = vmatpush1.bf16.msra.mxu0 %v3230
    %3437 = vmatprep.mubr.bf16.mxu0 %v2700
    %3438 = vmatmul.mubr.bf16.gmra.mrb[0].mxu0 %v2699
    %v3439 = vpop.f32.mrb[0].mxu0
    %v3440 = vadd.f32 %v3397, %v3439
    %v3441 = vpop.f32.mrb[0].mxu0
    %v3442 = vadd.f32 %v3399, %v3441
    %v3443 = vpop.f32.mrb[0].mxu0
    %v3444 = vadd.f32 %v3401, %v3443
    %v3445 = vpop.f32.mrb[0].mxu0
    %v3446 = vadd.f32 %v3403, %v3445
    %3447 = vdwg.mxu0
    %3448 = vmatprep.subr.bf16.mxu0 %v3109
    %3449 = vmatpush1.bf16.msra.mxu0 %v3108
    %3450 = vmatprep.subr.bf16.mxu0 %v3113
    %3451 = vmatpush1.bf16.msra.mxu0 %v3112
    %3452 = vmatprep.subr.bf16.mxu0 %v3117
    %3453 = vmatpush1.bf16.msra.mxu0 %v3116
    %3454 = vmatprep.subr.bf16.mxu0 %v3121
    %3455 = vmatpush1.bf16.msra.mxu0 %v3120
    %3456 = vmatprep.subr.bf16.mxu0 %v3125
    %3457 = vmatpush1.bf16.msra.mxu0 %v3124
    %3458 = vmatprep.subr.bf16.mxu0 %v3129
    %3459 = vmatpush1.bf16.msra.mxu0 %v3128
    %3460 = vmatprep.subr.bf16.mxu0 %v3133
    %3461 = vmatpush1.bf16.msra.mxu0 %v3132
    %3462 = vmatprep.subr.bf16.mxu0 %v3137
    %3463 = vmatpush1.bf16.msra.mxu0 %v3136
    %3464 = vmatprep.subr.bf16.mxu0 %v3141
    %3465 = vmatpush1.bf16.msra.mxu0 %v3140
    %3466 = vmatprep.subr.bf16.mxu0 %v3145
    %3467 = vmatpush1.bf16.msra.mxu0 %v3144
    %3468 = vmatprep.subr.bf16.mxu0 %v3149
    %3469 = vmatpush1.bf16.msra.mxu0 %v3148
    %3470 = vmatprep.subr.bf16.mxu0 %v3153
    %3471 = vmatpush1.bf16.msra.mxu0 %v3152
    %3472 = vmatprep.subr.bf16.mxu0 %v3157
    %3473 = vmatpush1.bf16.msra.mxu0 %v3156
    %3474 = vmatprep.subr.bf16.mxu0 %v3161
    %3475 = vmatpush1.bf16.msra.mxu0 %v3160
    %3476 = vmatprep.subr.bf16.mxu0 %v3165
    %3477 = vmatpush1.bf16.msra.mxu0 %v3164
    %3478 = vmatprep.subr.bf16.mxu0 %v3169
    %3479 = vmatpush1.bf16.msra.mxu0 %v3168
    %3480 = vmatprep.mubr.bf16.mxu0 %v2698
    %3481 = vmatmul.mubr.bf16.gmra.mrb[0].mxu0 %v2697
    %v3482 = vpop.f32.mrb[0].mxu0
    %v3483 = vadd.f32 %v2713, %v3482
    %v3484 = vpop.f32.mrb[0].mxu0
    %v3485 = vadd.f32 %v2717, %v3484
    %v3486 = vpop.f32.mrb[0].mxu0
    %v3487 = vadd.f32 %v2713, %v3486
    %v3488 = vpop.f32.mrb[0].mxu0
    %v3489 = vadd.f32 %v2717, %v3488
    %3490 = vdwg.mxu0
    %3491 = vmatprep.subr.bf16.mxu0 %v3173
    %3492 = vmatpush1.bf16.msra.mxu0 %v3172
    %3493 = vmatprep.subr.bf16.mxu0 %v3177
    %3494 = vmatpush1.bf16.msra.mxu0 %v3176
    %3495 = vmatprep.subr.bf16.mxu0 %v3181
    %3496 = vmatpush1.bf16.msra.mxu0 %v3180
    %3497 = vmatprep.subr.bf16.mxu0 %v3185
    %3498 = vmatpush1.bf16.msra.mxu0 %v3184
    %3499 = vmatprep.subr.bf16.mxu0 %v3189
    %3500 = vmatpush1.bf16.msra.mxu0 %v3188
    %3501 = vmatprep.subr.bf16.mxu0 %v3193
    %3502 = vmatpush1.bf16.msra.mxu0 %v3192
    %3503 = vmatprep.subr.bf16.mxu0 %v3197
    %3504 = vmatpush1.bf16.msra.mxu0 %v3196
    %3505 = vmatprep.subr.bf16.mxu0 %v3201
    %3506 = vmatpush1.bf16.msra.mxu0 %v3200
    %3507 = vmatprep.subr.bf16.mxu0 %v3205
    %3508 = vmatpush1.bf16.msra.mxu0 %v3204
    %3509 = vmatprep.subr.bf16.mxu0 %v3209
    %3510 = vmatpush1.bf16.msra.mxu0 %v3208
    %3511 = vmatprep.subr.bf16.mxu0 %v3213
    %3512 = vmatpush1.bf16.msra.mxu0 %v3212
    %3513 = vmatprep.subr.bf16.mxu0 %v3217
    %3514 = vmatpush1.bf16.msra.mxu0 %v3216
    %3515 = vmatprep.subr.bf16.mxu0 %v3221
    %3516 = vmatpush1.bf16.msra.mxu0 %v3220
    %3517 = vmatprep.subr.bf16.mxu0 %v3225
    %3518 = vmatpush1.bf16.msra.mxu0 %v3224
    %3519 = vmatprep.subr.bf16.mxu0 %v3229
    %3520 = vmatpush1.bf16.msra.mxu0 %v3228
    %3521 = vmatprep.subr.bf16.mxu0 %v3233
    %3522 = vmatpush1.bf16.msra.mxu0 %v3232
    %3523 = vmatprep.mubr.bf16.mxu0 %v2700
    %3524 = vmatmul.mubr.bf16.gmra.mrb[0].mxu0 %v2699
    %v3525 = vpop.f32.mrb[0].mxu0
    %v3526 = vadd.f32 %v3483, %v3525
    %v3527 = vpop.f32.mrb[0].mxu0
    %v3528 = vadd.f32 %v3485, %v3527
    %v3529 = vpop.f32.mrb[0].mxu0
    %v3530 = vadd.f32 %v3487, %v3529
    %v3531 = vpop.f32.mrb[0].mxu0
    %v3532 = vadd.f32 %v3489, %v3531
    %3533 = vdwg.mxu0
    %vm3534 = vcmp.gt.f32.partialorder %v3440, 0.0
    %vm3535 = vcmp.gt.f32.partialorder %v3442, 0.0
    %vm3536 = vcmp.gt.f32.partialorder %v3526, 0.0
    %vm3537 = vcmp.gt.f32.partialorder %v3528, 0.0
    %vm3538 = vcmp.gt.f32.partialorder %v3444, 0.0
    %vm3539 = vcmp.gt.f32.partialorder %v3446, 0.0
    %vm3540 = vcmp.gt.f32.partialorder %v3530, 0.0
    %vm3541 = vcmp.gt.f32.partialorder %v3532, 0.0
    %v3542 = vmul.f32 %v3440, 0.01
    %v3543 = vmul.f32 %v3442, 0.01
    %v3544 = vmul.f32 %v3526, 0.01
    %v3545 = vmul.f32 %v3528, 0.01
    %v3546 = vmul.f32 %v3444, 0.01
    %v3547 = vmul.f32 %v3446, 0.01
    %v3548 = vmul.f32 %v3530, 0.01
    %v3549 = vmul.f32 %v3532, 0.01
    %v3550 = vsel %vm3534, %v3440, %v3542
    %v3551 = vsel %vm3535, %v3442, %v3543
    %v3552 = vsel %vm3536, %v3526, %v3544
    %v3553 = vsel %vm3537, %v3528, %v3545
    %v3554 = vsel %vm3538, %v3444, %v3546
    %v3555 = vsel %vm3539, %v3446, %v3547
    %v3556 = vsel %vm3540, %v3530, %v3548
    %v3557 = vsel %vm3541, %v3532, %v3549
    %v3558 = vld [vmem:[#allocation13] sm:$0xff]
    %v3559 = vld [vmem:[#allocation13 + $0x8] sm:$0xff]
    %v3560 = vld [vmem:[#allocation13 + $0x10] sm:$0xff]
    %v3561 = vld [vmem:[#allocation13 + $0x18] sm:$0xff]
    %v3562 = vld [vmem:[#allocation13 + $0x20] sm:$0xff]
    %v3563 = vld [vmem:[#allocation13 + $0x28] sm:$0xff]
    %v3564 = vld [vmem:[#allocation13 + $0x30] sm:$0xff]
    %v3565 = vld [vmem:[#allocation13 + $0x38] sm:$0xff]
    %v3566 = vld [vmem:[#allocation13 + $0x40] sm:$0xff]
    %v3567 = vld [vmem:[#allocation13 + $0x48] sm:$0xff]
    %v3568 = vld [vmem:[#allocation13 + $0x50] sm:$0xff]
    %v3569 = vld [vmem:[#allocation13 + $0x58] sm:$0xff]
    %v3570 = vld [vmem:[#allocation13 + $0x60] sm:$0xff]
    %v3571 = vld [vmem:[#allocation13 + $0x68] sm:$0xff]
    %v3572 = vld [vmem:[#allocation13 + $0x70] sm:$0xff]
    %v3573 = vld [vmem:[#allocation13 + $0x78] sm:$0xff]
    %v3574 = vld [vmem:[#allocation13 + $0x80] sm:$0xff]
    %v3575 = vld [vmem:[#allocation13 + $0x88] sm:$0xff]
    %v3576 = vld [vmem:[#allocation13 + $0x90] sm:$0xff]
    %v3577 = vld [vmem:[#allocation13 + $0x98] sm:$0xff]
    %v3578 = vld [vmem:[#allocation13 + $0xa0] sm:$0xff]
    %v3579 = vld [vmem:[#allocation13 + $0xa8] sm:$0xff]
    %v3580 = vld [vmem:[#allocation13 + $0xb0] sm:$0xff]
    %v3581 = vld [vmem:[#allocation13 + $0xb8] sm:$0xff]
    %v3582 = vld [vmem:[#allocation13 + $0xc0] sm:$0xff]
    %v3583 = vld [vmem:[#allocation13 + $0xc8] sm:$0xff]
    %v3584 = vld [vmem:[#allocation13 + $0xd0] sm:$0xff]
    %v3585 = vld [vmem:[#allocation13 + $0xd8] sm:$0xff]
    %v3586 = vld [vmem:[#allocation13 + $0xe0] sm:$0xff]
    %v3587 = vld [vmem:[#allocation13 + $0xe8] sm:$0xff]
    %v3588 = vld [vmem:[#allocation13 + $0xf0] sm:$0xff]
    %v3589 = vld [vmem:[#allocation13 + $0xf8] sm:$0xff]
    %v3590 = vld [vmem:[#allocation13 + $0x100] sm:$0xff]
    %v3591 = vld [vmem:[#allocation13 + $0x108] sm:$0xff]
    %v3592 = vld [vmem:[#allocation13 + $0x110] sm:$0xff]
    %v3593 = vld [vmem:[#allocation13 + $0x118] sm:$0xff]
    %v3594 = vld [vmem:[#allocation13 + $0x120] sm:$0xff]
    %v3595 = vld [vmem:[#allocation13 + $0x128] sm:$0xff]
    %v3596 = vld [vmem:[#allocation13 + $0x130] sm:$0xff]
    %v3597 = vld [vmem:[#allocation13 + $0x138] sm:$0xff]
    %v3598 = vld [vmem:[#allocation13 + $0x140] sm:$0xff]
    %v3599 = vld [vmem:[#allocation13 + $0x148] sm:$0xff]
    %v3600 = vld [vmem:[#allocation13 + $0x150] sm:$0xff]
    %v3601 = vld [vmem:[#allocation13 + $0x158] sm:$0xff]
    %v3602 = vld [vmem:[#allocation13 + $0x160] sm:$0xff]
    %v3603 = vld [vmem:[#allocation13 + $0x168] sm:$0xff]
    %v3604 = vld [vmem:[#allocation13 + $0x170] sm:$0xff]
    %v3605 = vld [vmem:[#allocation13 + $0x178] sm:$0xff]
    %v3606 = vld [vmem:[#allocation13 + $0x180] sm:$0xff]
    %v3607 = vld [vmem:[#allocation13 + $0x188] sm:$0xff]
    %v3608 = vld [vmem:[#allocation13 + $0x190] sm:$0xff]
    %v3609 = vld [vmem:[#allocation13 + $0x198] sm:$0xff]
    %v3610 = vld [vmem:[#allocation13 + $0x1a0] sm:$0xff]
    %v3611 = vld [vmem:[#allocation13 + $0x1a8] sm:$0xff]
    %v3612 = vld [vmem:[#allocation13 + $0x1b0] sm:$0xff]
    %v3613 = vld [vmem:[#allocation13 + $0x1b8] sm:$0xff]
    %v3614 = vld [vmem:[#allocation13 + $0x1c0] sm:$0xff]
    %v3615 = vld [vmem:[#allocation13 + $0x1c8] sm:$0xff]
    %v3616 = vld [vmem:[#allocation13 + $0x1d0] sm:$0xff]
    %v3617 = vld [vmem:[#allocation13 + $0x1d8] sm:$0xff]
    %v3618 = vld [vmem:[#allocation13 + $0x1e0] sm:$0xff]
    %v3619 = vld [vmem:[#allocation13 + $0x1e8] sm:$0xff]
    %v3620 = vld [vmem:[#allocation13 + $0x1f0] sm:$0xff]
    %v3621 = vld [vmem:[#allocation13 + $0x1f8] sm:$0xff]
    %v3622 = vld [vmem:[#allocation13 + $0x200] sm:$0xff]
    %v3623 = vld [vmem:[#allocation13 + $0x208] sm:$0xff]
    %v3624 = vld [vmem:[#allocation13 + $0x210] sm:$0xff]
    %v3625 = vld [vmem:[#allocation13 + $0x218] sm:$0xff]
    %v3626 = vld [vmem:[#allocation13 + $0x220] sm:$0xff]
    %v3627 = vld [vmem:[#allocation13 + $0x228] sm:$0xff]
    %v3628 = vld [vmem:[#allocation13 + $0x230] sm:$0xff]
    %v3629 = vld [vmem:[#allocation13 + $0x238] sm:$0xff]
    %v3630 = vld [vmem:[#allocation13 + $0x240] sm:$0xff]
    %v3631 = vld [vmem:[#allocation13 + $0x248] sm:$0xff]
    %v3632 = vld [vmem:[#allocation13 + $0x250] sm:$0xff]
    %v3633 = vld [vmem:[#allocation13 + $0x258] sm:$0xff]
    %v3634 = vld [vmem:[#allocation13 + $0x260] sm:$0xff]
    %v3635 = vld [vmem:[#allocation13 + $0x268] sm:$0xff]
    %v3636 = vld [vmem:[#allocation13 + $0x270] sm:$0xff]
    %v3637 = vld [vmem:[#allocation13 + $0x278] sm:$0xff]
    %v3638 = vld [vmem:[#allocation13 + $0x280] sm:$0xff]
    %v3639 = vld [vmem:[#allocation13 + $0x288] sm:$0xff]
    %v3640 = vld [vmem:[#allocation13 + $0x290] sm:$0xff]
    %v3641 = vld [vmem:[#allocation13 + $0x298] sm:$0xff]
    %v3642 = vld [vmem:[#allocation13 + $0x2a0] sm:$0xff]
    %v3643 = vld [vmem:[#allocation13 + $0x2a8] sm:$0xff]
    %v3644 = vld [vmem:[#allocation13 + $0x2b0] sm:$0xff]
    %v3645 = vld [vmem:[#allocation13 + $0x2b8] sm:$0xff]
    %v3646 = vld [vmem:[#allocation13 + $0x2c0] sm:$0xff]
    %v3647 = vld [vmem:[#allocation13 + $0x2c8] sm:$0xff]
    %v3648 = vld [vmem:[#allocation13 + $0x2d0] sm:$0xff]
    %v3649 = vld [vmem:[#allocation13 + $0x2d8] sm:$0xff]
    %v3650 = vld [vmem:[#allocation13 + $0x2e0] sm:$0xff]
    %v3651 = vld [vmem:[#allocation13 + $0x2e8] sm:$0xff]
    %v3652 = vld [vmem:[#allocation13 + $0x2f0] sm:$0xff]
    %v3653 = vld [vmem:[#allocation13 + $0x2f8] sm:$0xff]
    %v3654 = vld [vmem:[#allocation13 + $0x300] sm:$0xff]
    %v3655 = vld [vmem:[#allocation13 + $0x308] sm:$0xff]
    %v3656 = vld [vmem:[#allocation13 + $0x310] sm:$0xff]
    %v3657 = vld [vmem:[#allocation13 + $0x318] sm:$0xff]
    %v3658 = vld [vmem:[#allocation13 + $0x320] sm:$0xff]
    %v3659 = vld [vmem:[#allocation13 + $0x328] sm:$0xff]
    %v3660 = vld [vmem:[#allocation13 + $0x330] sm:$0xff]
    %v3661 = vld [vmem:[#allocation13 + $0x338] sm:$0xff]
    %v3662 = vld [vmem:[#allocation13 + $0x340] sm:$0xff]
    %v3663 = vld [vmem:[#allocation13 + $0x348] sm:$0xff]
    %v3664 = vld [vmem:[#allocation13 + $0x350] sm:$0xff]
    %v3665 = vld [vmem:[#allocation13 + $0x358] sm:$0xff]
    %v3666 = vld [vmem:[#allocation13 + $0x360] sm:$0xff]
    %v3667 = vld [vmem:[#allocation13 + $0x368] sm:$0xff]
    %v3668 = vld [vmem:[#allocation13 + $0x370] sm:$0xff]
    %v3669 = vld [vmem:[#allocation13 + $0x378] sm:$0xff]
    %v3670 = vld [vmem:[#allocation13 + $0x380] sm:$0xff]
    %v3671 = vld [vmem:[#allocation13 + $0x388] sm:$0xff]
    %v3672 = vld [vmem:[#allocation13 + $0x390] sm:$0xff]
    %v3673 = vld [vmem:[#allocation13 + $0x398] sm:$0xff]
    %v3674 = vld [vmem:[#allocation13 + $0x3a0] sm:$0xff]
    %v3675 = vld [vmem:[#allocation13 + $0x3a8] sm:$0xff]
    %v3676 = vld [vmem:[#allocation13 + $0x3b0] sm:$0xff]
    %v3677 = vld [vmem:[#allocation13 + $0x3b8] sm:$0xff]
    %v3678 = vld [vmem:[#allocation13 + $0x3c0] sm:$0xff]
    %v3679 = vld [vmem:[#allocation13 + $0x3c8] sm:$0xff]
    %v3680 = vld [vmem:[#allocation13 + $0x3d0] sm:$0xff]
    %v3681 = vld [vmem:[#allocation13 + $0x3d8] sm:$0xff]
    %v3682 = vld [vmem:[#allocation13 + $0x3e0] sm:$0xff]
    %v3683 = vld [vmem:[#allocation13 + $0x3e8] sm:$0xff]
    %v3684 = vld [vmem:[#allocation13 + $0x3f0] sm:$0xff]
    %v3685 = vld [vmem:[#allocation13 + $0x3f8] sm:$0xff]
    %v3686 = vld [vmem:[%s16] sm:$0xf]
    %v3687 = vpack.c.bf16 %v3554, %v3550
    %v3688 = vpack.c.bf16 %v3555, %v3551
    %v3689 = vpack.c.bf16 %v3556, %v3552
    %v3690 = vpack.c.bf16 %v3557, %v3553
    %v3692 = vlaneseq
    %v3693 = vshrl.u32 %v3692, 7
    %v3694 = vsub.s32 0, %v3693
    %v3695 = vrot.slane %v3686, %v3694
    %v3696 = vlaneseq
    %v3697 = vshrl.u32 %v3696, 7
    %v3698 = vsub.s32 1, %v3697
    %v3699 = vrot.slane %v3686, %v3698
    %v3700 = vlaneseq
    %v3701 = vshrl.u32 %v3700, 7
    %v3702 = vsub.s32 2, %v3701
    %v3703 = vrot.slane %v3686, %v3702
    %v3704 = vlaneseq
    %v3705 = vshrl.u32 %v3704, 7
    %v3706 = vsub.s32 3, %v3705
    %v3707 = vrot.slane %v3686, %v3706
    %v3840 = vunpack.c.l.b16 %v3558
    %v3841 = vunpack.c.h.b16 %v3558
    %v3842 = vunpack.c.l.b16 %v3559
    %v3843 = vunpack.c.h.b16 %v3559
    %v3844 = vunpack.c.l.b16 %v3560
    %v3845 = vunpack.c.h.b16 %v3560
    %v3846 = vunpack.c.l.b16 %v3561
    %v3847 = vunpack.c.h.b16 %v3561
    %v3848 = vunpack.c.l.b16 %v3562
    %v3849 = vunpack.c.h.b16 %v3562
    %v3850 = vunpack.c.l.b16 %v3563
    %v3851 = vunpack.c.h.b16 %v3563
    %v3852 = vunpack.c.l.b16 %v3564
    %v3853 = vunpack.c.h.b16 %v3564
    %v3854 = vunpack.c.l.b16 %v3565
    %v3855 = vunpack.c.h.b16 %v3565
    %v3856 = vunpack.c.l.b16 %v3566
    %v3857 = vunpack.c.h.b16 %v3566
    %v3858 = vunpack.c.l.b16 %v3567
    %v3859 = vunpack.c.h.b16 %v3567
    %v3860 = vunpack.c.l.b16 %v3568
    %v3861 = vunpack.c.h.b16 %v3568
    %v3862 = vunpack.c.l.b16 %v3569
    %v3863 = vunpack.c.h.b16 %v3569
    %v3864 = vunpack.c.l.b16 %v3570
    %v3865 = vunpack.c.h.b16 %v3570
    %v3866 = vunpack.c.l.b16 %v3571
    %v3867 = vunpack.c.h.b16 %v3571
    %v3868 = vunpack.c.l.b16 %v3572
    %v3869 = vunpack.c.h.b16 %v3572
    %v3870 = vunpack.c.l.b16 %v3573
    %v3871 = vunpack.c.h.b16 %v3573
    %v3872 = vunpack.c.l.b16 %v3574
    %v3873 = vunpack.c.h.b16 %v3574
    %v3874 = vunpack.c.l.b16 %v3575
    %v3875 = vunpack.c.h.b16 %v3575
    %v3876 = vunpack.c.l.b16 %v3576
    %v3877 = vunpack.c.h.b16 %v3576
    %v3878 = vunpack.c.l.b16 %v3577
    %v3879 = vunpack.c.h.b16 %v3577
    %v3880 = vunpack.c.l.b16 %v3578
    %v3881 = vunpack.c.h.b16 %v3578
    %v3882 = vunpack.c.l.b16 %v3579
    %v3883 = vunpack.c.h.b16 %v3579
    %v3884 = vunpack.c.l.b16 %v3580
    %v3885 = vunpack.c.h.b16 %v3580
    %v3886 = vunpack.c.l.b16 %v3581
    %v3887 = vunpack.c.h.b16 %v3581
    %v3888 = vunpack.c.l.b16 %v3582
    %v3889 = vunpack.c.h.b16 %v3582
    %v3890 = vunpack.c.l.b16 %v3583
    %v3891 = vunpack.c.h.b16 %v3583
    %v3892 = vunpack.c.l.b16 %v3584
    %v3893 = vunpack.c.h.b16 %v3584
    %v3894 = vunpack.c.l.b16 %v3585
    %v3895 = vunpack.c.h.b16 %v3585
    %v3896 = vunpack.c.l.b16 %v3586
    %v3897 = vunpack.c.h.b16 %v3586
    %v3898 = vunpack.c.l.b16 %v3587
    %v3899 = vunpack.c.h.b16 %v3587
    %v3900 = vunpack.c.l.b16 %v3588
    %v3901 = vunpack.c.h.b16 %v3588
    %v3902 = vunpack.c.l.b16 %v3589
    %v3903 = vunpack.c.h.b16 %v3589
    %v3904 = vunpack.c.l.b16 %v3590
    %v3905 = vunpack.c.h.b16 %v3590
    %v3906 = vunpack.c.l.b16 %v3591
    %v3907 = vunpack.c.h.b16 %v3591
    %v3908 = vunpack.c.l.b16 %v3592
    %v3909 = vunpack.c.h.b16 %v3592
    %v3910 = vunpack.c.l.b16 %v3593
    %v3911 = vunpack.c.h.b16 %v3593
    %v3912 = vunpack.c.l.b16 %v3594
    %v3913 = vunpack.c.h.b16 %v3594
    %v3914 = vunpack.c.l.b16 %v3595
    %v3915 = vunpack.c.h.b16 %v3595
    %v3916 = vunpack.c.l.b16 %v3596
    %v3917 = vunpack.c.h.b16 %v3596
    %v3918 = vunpack.c.l.b16 %v3597
    %v3919 = vunpack.c.h.b16 %v3597
    %v3920 = vunpack.c.l.b16 %v3598
    %v3921 = vunpack.c.h.b16 %v3598
    %v3922 = vunpack.c.l.b16 %v3599
    %v3923 = vunpack.c.h.b16 %v3599
    %v3924 = vunpack.c.l.b16 %v3600
    %v3925 = vunpack.c.h.b16 %v3600
    %v3926 = vunpack.c.l.b16 %v3601
    %v3927 = vunpack.c.h.b16 %v3601
    %v3928 = vunpack.c.l.b16 %v3602
    %v3929 = vunpack.c.h.b16 %v3602
    %v3930 = vunpack.c.l.b16 %v3603
    %v3931 = vunpack.c.h.b16 %v3603
    %v3932 = vunpack.c.l.b16 %v3604
    %v3933 = vunpack.c.h.b16 %v3604
    %v3934 = vunpack.c.l.b16 %v3605
    %v3935 = vunpack.c.h.b16 %v3605
    %v3936 = vunpack.c.l.b16 %v3606
    %v3937 = vunpack.c.h.b16 %v3606
    %v3938 = vunpack.c.l.b16 %v3607
    %v3939 = vunpack.c.h.b16 %v3607
    %v3940 = vunpack.c.l.b16 %v3608
    %v3941 = vunpack.c.h.b16 %v3608
    %v3942 = vunpack.c.l.b16 %v3609
    %v3943 = vunpack.c.h.b16 %v3609
    %v3944 = vunpack.c.l.b16 %v3610
    %v3945 = vunpack.c.h.b16 %v3610
    %v3946 = vunpack.c.l.b16 %v3611
    %v3947 = vunpack.c.h.b16 %v3611
    %v3948 = vunpack.c.l.b16 %v3612
    %v3949 = vunpack.c.h.b16 %v3612
    %v3950 = vunpack.c.l.b16 %v3613
    %v3951 = vunpack.c.h.b16 %v3613
    %v3952 = vunpack.c.l.b16 %v3614
    %v3953 = vunpack.c.h.b16 %v3614
    %v3954 = vunpack.c.l.b16 %v3615
    %v3955 = vunpack.c.h.b16 %v3615
    %v3956 = vunpack.c.l.b16 %v3616
    %v3957 = vunpack.c.h.b16 %v3616
    %v3958 = vunpack.c.l.b16 %v3617
    %v3959 = vunpack.c.h.b16 %v3617
    %v3960 = vunpack.c.l.b16 %v3618
    %v3961 = vunpack.c.h.b16 %v3618
    %v3962 = vunpack.c.l.b16 %v3619
    %v3963 = vunpack.c.h.b16 %v3619
    %v3964 = vunpack.c.l.b16 %v3620
    %v3965 = vunpack.c.h.b16 %v3620
    %v3966 = vunpack.c.l.b16 %v3621
    %v3967 = vunpack.c.h.b16 %v3621
    %v3968 = vunpack.c.l.b16 %v3622
    %v3969 = vunpack.c.h.b16 %v3622
    %v3970 = vunpack.c.l.b16 %v3623
    %v3971 = vunpack.c.h.b16 %v3623
    %v3972 = vunpack.c.l.b16 %v3624
    %v3973 = vunpack.c.h.b16 %v3624
    %v3974 = vunpack.c.l.b16 %v3625
    %v3975 = vunpack.c.h.b16 %v3625
    %v3976 = vunpack.c.l.b16 %v3626
    %v3977 = vunpack.c.h.b16 %v3626
    %v3978 = vunpack.c.l.b16 %v3627
    %v3979 = vunpack.c.h.b16 %v3627
    %v3980 = vunpack.c.l.b16 %v3628
    %v3981 = vunpack.c.h.b16 %v3628
    %v3982 = vunpack.c.l.b16 %v3629
    %v3983 = vunpack.c.h.b16 %v3629
    %v3984 = vunpack.c.l.b16 %v3630
    %v3985 = vunpack.c.h.b16 %v3630
    %v3986 = vunpack.c.l.b16 %v3631
    %v3987 = vunpack.c.h.b16 %v3631
    %v3988 = vunpack.c.l.b16 %v3632
    %v3989 = vunpack.c.h.b16 %v3632
    %v3990 = vunpack.c.l.b16 %v3633
    %v3991 = vunpack.c.h.b16 %v3633
    %v3992 = vunpack.c.l.b16 %v3634
    %v3993 = vunpack.c.h.b16 %v3634
    %v3994 = vunpack.c.l.b16 %v3635
    %v3995 = vunpack.c.h.b16 %v3635
    %v3996 = vunpack.c.l.b16 %v3636
    %v3997 = vunpack.c.h.b16 %v3636
    %v3998 = vunpack.c.l.b16 %v3637
    %v3999 = vunpack.c.h.b16 %v3637
    %v4000 = vunpack.c.l.b16 %v3638
    %v4001 = vunpack.c.h.b16 %v3638
    %v4002 = vunpack.c.l.b16 %v3639
    %v4003 = vunpack.c.h.b16 %v3639
    %v4004 = vunpack.c.l.b16 %v3640
    %v4005 = vunpack.c.h.b16 %v3640
    %v4006 = vunpack.c.l.b16 %v3641
    %v4007 = vunpack.c.h.b16 %v3641
    %v4008 = vunpack.c.l.b16 %v3642
    %v4009 = vunpack.c.h.b16 %v3642
    %v4010 = vunpack.c.l.b16 %v3643
    %v4011 = vunpack.c.h.b16 %v3643
    %v4012 = vunpack.c.l.b16 %v3644
    %v4013 = vunpack.c.h.b16 %v3644
    %v4014 = vunpack.c.l.b16 %v3645
    %v4015 = vunpack.c.h.b16 %v3645
    %v4016 = vunpack.c.l.b16 %v3646
    %v4017 = vunpack.c.h.b16 %v3646
    %v4018 = vunpack.c.l.b16 %v3647
    %v4019 = vunpack.c.h.b16 %v3647
    %v4020 = vunpack.c.l.b16 %v3648
    %v4021 = vunpack.c.h.b16 %v3648
    %v4022 = vunpack.c.l.b16 %v3649
    %v4023 = vunpack.c.h.b16 %v3649
    %v4024 = vunpack.c.l.b16 %v3650
    %v4025 = vunpack.c.h.b16 %v3650
    %v4026 = vunpack.c.l.b16 %v3651
    %v4027 = vunpack.c.h.b16 %v3651
    %v4028 = vunpack.c.l.b16 %v3652
    %v4029 = vunpack.c.h.b16 %v3652
    %v4030 = vunpack.c.l.b16 %v3653
    %v4031 = vunpack.c.h.b16 %v3653
    %v4032 = vunpack.c.l.b16 %v3654
    %v4033 = vunpack.c.h.b16 %v3654
    %v4034 = vunpack.c.l.b16 %v3655
    %v4035 = vunpack.c.h.b16 %v3655
    %v4036 = vunpack.c.l.b16 %v3656
    %v4037 = vunpack.c.h.b16 %v3656
    %v4038 = vunpack.c.l.b16 %v3657
    %v4039 = vunpack.c.h.b16 %v3657
    %v4040 = vunpack.c.l.b16 %v3658
    %v4041 = vunpack.c.h.b16 %v3658
    %v4042 = vunpack.c.l.b16 %v3659
    %v4043 = vunpack.c.h.b16 %v3659
    %v4044 = vunpack.c.l.b16 %v3660
    %v4045 = vunpack.c.h.b16 %v3660
    %v4046 = vunpack.c.l.b16 %v3661
    %v4047 = vunpack.c.h.b16 %v3661
    %v4048 = vunpack.c.l.b16 %v3662
    %v4049 = vunpack.c.h.b16 %v3662
    %v4050 = vunpack.c.l.b16 %v3663
    %v4051 = vunpack.c.h.b16 %v3663
    %v4052 = vunpack.c.l.b16 %v3664
    %v4053 = vunpack.c.h.b16 %v3664
    %v4054 = vunpack.c.l.b16 %v3665
    %v4055 = vunpack.c.h.b16 %v3665
    %v4056 = vunpack.c.l.b16 %v3666
    %v4057 = vunpack.c.h.b16 %v3666
    %v4058 = vunpack.c.l.b16 %v3667
    %v4059 = vunpack.c.h.b16 %v3667
    %v4060 = vunpack.c.l.b16 %v3668
    %v4061 = vunpack.c.h.b16 %v3668
    %v4062 = vunpack.c.l.b16 %v3669
    %v4063 = vunpack.c.h.b16 %v3669
    %v4064 = vunpack.c.l.b16 %v3670
    %v4065 = vunpack.c.h.b16 %v3670
    %v4066 = vunpack.c.l.b16 %v3671
    %v4067 = vunpack.c.h.b16 %v3671
    %v4068 = vunpack.c.l.b16 %v3672
    %v4069 = vunpack.c.h.b16 %v3672
    %v4070 = vunpack.c.l.b16 %v3673
    %v4071 = vunpack.c.h.b16 %v3673
    %v4072 = vunpack.c.l.b16 %v3674
    %v4073 = vunpack.c.h.b16 %v3674
    %v4074 = vunpack.c.l.b16 %v3675
    %v4075 = vunpack.c.h.b16 %v3675
    %v4076 = vunpack.c.l.b16 %v3676
    %v4077 = vunpack.c.h.b16 %v3676
    %v4078 = vunpack.c.l.b16 %v3677
    %v4079 = vunpack.c.h.b16 %v3677
    %v4080 = vunpack.c.l.b16 %v3678
    %v4081 = vunpack.c.h.b16 %v3678
    %v4082 = vunpack.c.l.b16 %v3679
    %v4083 = vunpack.c.h.b16 %v3679
    %v4084 = vunpack.c.l.b16 %v3680
    %v4085 = vunpack.c.h.b16 %v3680
    %v4086 = vunpack.c.l.b16 %v3681
    %v4087 = vunpack.c.h.b16 %v3681
    %v4088 = vunpack.c.l.b16 %v3682
    %v4089 = vunpack.c.h.b16 %v3682
    %v4090 = vunpack.c.l.b16 %v3683
    %v4091 = vunpack.c.h.b16 %v3683
    %v4092 = vunpack.c.l.b16 %v3684
    %v4093 = vunpack.c.h.b16 %v3684
    %v4094 = vunpack.c.l.b16 %v3685
    %v4095 = vunpack.c.h.b16 %v3685
    %v4096 = vpack.c.b16 %v3844, %v3840
    %v4097 = vpack.c.b16 %v3845, %v3841
    %v4098 = vpack.c.b16 %v3846, %v3842
    %v4099 = vpack.c.b16 %v3847, %v3843
    %v4100 = vpack.c.b16 %v3852, %v3848
    %v4101 = vpack.c.b16 %v3853, %v3849
    %v4102 = vpack.c.b16 %v3854, %v3850
    %v4103 = vpack.c.b16 %v3855, %v3851
    %v4104 = vpack.c.b16 %v3860, %v3856
    %v4105 = vpack.c.b16 %v3861, %v3857
    %v4106 = vpack.c.b16 %v3862, %v3858
    %v4107 = vpack.c.b16 %v3863, %v3859
    %v4108 = vpack.c.b16 %v3868, %v3864
    %v4109 = vpack.c.b16 %v3869, %v3865
    %v4110 = vpack.c.b16 %v3870, %v3866
    %v4111 = vpack.c.b16 %v3871, %v3867
    %v4112 = vpack.c.b16 %v3876, %v3872
    %v4113 = vpack.c.b16 %v3877, %v3873
    %v4114 = vpack.c.b16 %v3878, %v3874
    %v4115 = vpack.c.b16 %v3879, %v3875
    %v4116 = vpack.c.b16 %v3884, %v3880
    %v4117 = vpack.c.b16 %v3885, %v3881
    %v4118 = vpack.c.b16 %v3886, %v3882
    %v4119 = vpack.c.b16 %v3887, %v3883
    %v4120 = vpack.c.b16 %v3892, %v3888
    %v4121 = vpack.c.b16 %v3893, %v3889
    %v4122 = vpack.c.b16 %v3894, %v3890
    %v4123 = vpack.c.b16 %v3895, %v3891
    %v4124 = vpack.c.b16 %v3900, %v3896
    %v4125 = vpack.c.b16 %v3901, %v3897
    %v4126 = vpack.c.b16 %v3902, %v3898
    %v4127 = vpack.c.b16 %v3903, %v3899
    %v4128 = vpack.c.b16 %v3908, %v3904
    %v4129 = vpack.c.b16 %v3909, %v3905
    %v4130 = vpack.c.b16 %v3910, %v3906
    %v4131 = vpack.c.b16 %v3911, %v3907
    %v4132 = vpack.c.b16 %v3916, %v3912
    %v4133 = vpack.c.b16 %v3917, %v3913
    %v4134 = vpack.c.b16 %v3918, %v3914
    %v4135 = vpack.c.b16 %v3919, %v3915
    %v4136 = vpack.c.b16 %v3924, %v3920
    %v4137 = vpack.c.b16 %v3925, %v3921
    %v4138 = vpack.c.b16 %v3926, %v3922
    %v4139 = vpack.c.b16 %v3927, %v3923
    %v4140 = vpack.c.b16 %v3932, %v3928
    %v4141 = vpack.c.b16 %v3933, %v3929
    %v4142 = vpack.c.b16 %v3934, %v3930
    %v4143 = vpack.c.b16 %v3935, %v3931
    %v4144 = vpack.c.b16 %v3940, %v3936
    %v4145 = vpack.c.b16 %v3941, %v3937
    %v4146 = vpack.c.b16 %v3942, %v3938
    %v4147 = vpack.c.b16 %v3943, %v3939
    %v4148 = vpack.c.b16 %v3948, %v3944
    %v4149 = vpack.c.b16 %v3949, %v3945
    %v4150 = vpack.c.b16 %v3950, %v3946
    %v4151 = vpack.c.b16 %v3951, %v3947
    %v4152 = vpack.c.b16 %v3956, %v3952
    %v4153 = vpack.c.b16 %v3957, %v3953
    %v4154 = vpack.c.b16 %v3958, %v3954
    %v4155 = vpack.c.b16 %v3959, %v3955
    %v4156 = vpack.c.b16 %v3964, %v3960
    %v4157 = vpack.c.b16 %v3965, %v3961
    %v4158 = vpack.c.b16 %v3966, %v3962
    %v4159 = vpack.c.b16 %v3967, %v3963
    %v4160 = vpack.c.b16 %v3972, %v3968
    %v4161 = vpack.c.b16 %v3973, %v3969
    %v4162 = vpack.c.b16 %v3974, %v3970
    %v4163 = vpack.c.b16 %v3975, %v3971
    %v4164 = vpack.c.b16 %v3980, %v3976
    %v4165 = vpack.c.b16 %v3981, %v3977
    %v4166 = vpack.c.b16 %v3982, %v3978
    %v4167 = vpack.c.b16 %v3983, %v3979
    %v4168 = vpack.c.b16 %v3988, %v3984
    %v4169 = vpack.c.b16 %v3989, %v3985
    %v4170 = vpack.c.b16 %v3990, %v3986
    %v4171 = vpack.c.b16 %v3991, %v3987
    %v4172 = vpack.c.b16 %v3996, %v3992
    %v4173 = vpack.c.b16 %v3997, %v3993
    %v4174 = vpack.c.b16 %v3998, %v3994
    %v4175 = vpack.c.b16 %v3999, %v3995
    %v4176 = vpack.c.b16 %v4004, %v4000
    %v4177 = vpack.c.b16 %v4005, %v4001
    %v4178 = vpack.c.b16 %v4006, %v4002
    %v4179 = vpack.c.b16 %v4007, %v4003
    %v4180 = vpack.c.b16 %v4012, %v4008
    %v4181 = vpack.c.b16 %v4013, %v4009
    %v4182 = vpack.c.b16 %v4014, %v4010
    %v4183 = vpack.c.b16 %v4015, %v4011
    %v4184 = vpack.c.b16 %v4020, %v4016
    %v4185 = vpack.c.b16 %v4021, %v4017
    %v4186 = vpack.c.b16 %v4022, %v4018
    %v4187 = vpack.c.b16 %v4023, %v4019
    %v4188 = vpack.c.b16 %v4028, %v4024
    %v4189 = vpack.c.b16 %v4029, %v4025
    %v4190 = vpack.c.b16 %v4030, %v4026
    %v4191 = vpack.c.b16 %v4031, %v4027
    %v4192 = vpack.c.b16 %v4036, %v4032
    %v4193 = vpack.c.b16 %v4037, %v4033
    %v4194 = vpack.c.b16 %v4038, %v4034
    %v4195 = vpack.c.b16 %v4039, %v4035
    %v4196 = vpack.c.b16 %v4044, %v4040
    %v4197 = vpack.c.b16 %v4045, %v4041
    %v4198 = vpack.c.b16 %v4046, %v4042
    %v4199 = vpack.c.b16 %v4047, %v4043
    %v4200 = vpack.c.b16 %v4052, %v4048
    %v4201 = vpack.c.b16 %v4053, %v4049
    %v4202 = vpack.c.b16 %v4054, %v4050
    %v4203 = vpack.c.b16 %v4055, %v4051
    %v4204 = vpack.c.b16 %v4060, %v4056
    %v4205 = vpack.c.b16 %v4061, %v4057
    %v4206 = vpack.c.b16 %v4062, %v4058
    %v4207 = vpack.c.b16 %v4063, %v4059
    %v4208 = vpack.c.b16 %v4068, %v4064
    %v4209 = vpack.c.b16 %v4069, %v4065
    %v4210 = vpack.c.b16 %v4070, %v4066
    %v4211 = vpack.c.b16 %v4071, %v4067
    %v4212 = vpack.c.b16 %v4076, %v4072
    %v4213 = vpack.c.b16 %v4077, %v4073
    %v4214 = vpack.c.b16 %v4078, %v4074
    %v4215 = vpack.c.b16 %v4079, %v4075
    %v4216 = vpack.c.b16 %v4084, %v4080
    %v4217 = vpack.c.b16 %v4085, %v4081
    %v4218 = vpack.c.b16 %v4086, %v4082
    %v4219 = vpack.c.b16 %v4087, %v4083
    %v4220 = vpack.c.b16 %v4092, %v4088
    %v4221 = vpack.c.b16 %v4093, %v4089
    %v4222 = vpack.c.b16 %v4094, %v4090
    %v4223 = vpack.c.b16 %v4095, %v4091
    %4352 = vmatprep.subr.bf16.mxu0 %v4097
    %4353 = vmatpush1.bf16.msra.mxu0 %v4096
    %4354 = vmatprep.subr.bf16.mxu0 %v4101
    %4355 = vmatpush1.bf16.msra.mxu0 %v4100
    %4356 = vmatprep.subr.bf16.mxu0 %v4105
    %4357 = vmatpush1.bf16.msra.mxu0 %v4104
    %4358 = vmatprep.subr.bf16.mxu0 %v4109
    %4359 = vmatpush1.bf16.msra.mxu0 %v4108
    %4360 = vmatprep.subr.bf16.mxu0 %v4113
    %4361 = vmatpush1.bf16.msra.mxu0 %v4112
    %4362 = vmatprep.subr.bf16.mxu0 %v4117
    %4363 = vmatpush1.bf16.msra.mxu0 %v4116
    %4364 = vmatprep.subr.bf16.mxu0 %v4121
    %4365 = vmatpush1.bf16.msra.mxu0 %v4120
    %4366 = vmatprep.subr.bf16.mxu0 %v4125
    %4367 = vmatpush1.bf16.msra.mxu0 %v4124
    %4368 = vmatprep.subr.bf16.mxu0 %v4129
    %4369 = vmatpush1.bf16.msra.mxu0 %v4128
    %4370 = vmatprep.subr.bf16.mxu0 %v4133
    %4371 = vmatpush1.bf16.msra.mxu0 %v4132
    %4372 = vmatprep.subr.bf16.mxu0 %v4137
    %4373 = vmatpush1.bf16.msra.mxu0 %v4136
    %4374 = vmatprep.subr.bf16.mxu0 %v4141
    %4375 = vmatpush1.bf16.msra.mxu0 %v4140
    %4376 = vmatprep.subr.bf16.mxu0 %v4145
    %4377 = vmatpush1.bf16.msra.mxu0 %v4144
    %4378 = vmatprep.subr.bf16.mxu0 %v4149
    %4379 = vmatpush1.bf16.msra.mxu0 %v4148
    %4380 = vmatprep.subr.bf16.mxu0 %v4153
    %4381 = vmatpush1.bf16.msra.mxu0 %v4152
    %4382 = vmatprep.subr.bf16.mxu0 %v4157
    %4383 = vmatpush1.bf16.msra.mxu0 %v4156
    %4384 = vmatprep.mubr.bf16.mxu0 %v3688
    %4385 = vmatmul.mubr.bf16.gmra.mrb[0].mxu0 %v3687
    %v4386 = vpop.f32.mrb[0].mxu0
    %v4387 = vadd.f32 %v3695, %v4386
    %v4388 = vpop.f32.mrb[0].mxu0
    %v4389 = vadd.f32 %v3699, %v4388
    %v4390 = vpop.f32.mrb[0].mxu0
    %v4391 = vadd.f32 %v3695, %v4390
    %v4392 = vpop.f32.mrb[0].mxu0
    %v4393 = vadd.f32 %v3699, %v4392
    %4394 = vdwg.mxu0
    %4395 = vmatprep.subr.bf16.mxu0 %v4161
    %4396 = vmatpush1.bf16.msra.mxu0 %v4160
    %4397 = vmatprep.subr.bf16.mxu0 %v4165
    %4398 = vmatpush1.bf16.msra.mxu0 %v4164
    %4399 = vmatprep.subr.bf16.mxu0 %v4169
    %4400 = vmatpush1.bf16.msra.mxu0 %v4168
    %4401 = vmatprep.subr.bf16.mxu0 %v4173
    %4402 = vmatpush1.bf16.msra.mxu0 %v4172
    %4403 = vmatprep.subr.bf16.mxu0 %v4177
    %4404 = vmatpush1.bf16.msra.mxu0 %v4176
    %4405 = vmatprep.subr.bf16.mxu0 %v4181
    %4406 = vmatpush1.bf16.msra.mxu0 %v4180
    %4407 = vmatprep.subr.bf16.mxu0 %v4185
    %4408 = vmatpush1.bf16.msra.mxu0 %v4184
    %4409 = vmatprep.subr.bf16.mxu0 %v4189
    %4410 = vmatpush1.bf16.msra.mxu0 %v4188
    %4411 = vmatprep.subr.bf16.mxu0 %v4193
    %4412 = vmatpush1.bf16.msra.mxu0 %v4192
    %4413 = vmatprep.subr.bf16.mxu0 %v4197
    %4414 = vmatpush1.bf16.msra.mxu0 %v4196
    %4415 = vmatprep.subr.bf16.mxu0 %v4201
    %4416 = vmatpush1.bf16.msra.mxu0 %v4200
    %4417 = vmatprep.subr.bf16.mxu0 %v4205
    %4418 = vmatpush1.bf16.msra.mxu0 %v4204
    %4419 = vmatprep.subr.bf16.mxu0 %v4209
    %4420 = vmatpush1.bf16.msra.mxu0 %v4208
    %4421 = vmatprep.subr.bf16.mxu0 %v4213
    %4422 = vmatpush1.bf16.msra.mxu0 %v4212
    %4423 = vmatprep.subr.bf16.mxu0 %v4217
    %4424 = vmatpush1.bf16.msra.mxu0 %v4216
    %4425 = vmatprep.subr.bf16.mxu0 %v4221
    %4426 = vmatpush1.bf16.msra.mxu0 %v4220
    %4427 = vmatprep.mubr.bf16.mxu0 %v3690
    %4428 = vmatmul.mubr.bf16.gmra.mrb[0].mxu0 %v3689
    %v4429 = vpop.f32.mrb[0].mxu0
    %v4430 = vadd.f32 %v4387, %v4429
    %v4431 = vpop.f32.mrb[0].mxu0
    %v4432 = vadd.f32 %v4389, %v4431
    %v4433 = vpop.f32.mrb[0].mxu0
    %v4434 = vadd.f32 %v4391, %v4433
    %v4435 = vpop.f32.mrb[0].mxu0
    %v4436 = vadd.f32 %v4393, %v4435
    %4437 = vdwg.mxu0
    %4438 = vmatprep.subr.bf16.mxu0 %v4099
    %4439 = vmatpush1.bf16.msra.mxu0 %v4098
    %4440 = vmatprep.subr.bf16.mxu0 %v4103
    %4441 = vmatpush1.bf16.msra.mxu0 %v4102
    %4442 = vmatprep.subr.bf16.mxu0 %v4107
    %4443 = vmatpush1.bf16.msra.mxu0 %v4106
    %4444 = vmatprep.subr.bf16.mxu0 %v4111
    %4445 = vmatpush1.bf16.msra.mxu0 %v4110
    %4446 = vmatprep.subr.bf16.mxu0 %v4115
    %4447 = vmatpush1.bf16.msra.mxu0 %v4114
    %4448 = vmatprep.subr.bf16.mxu0 %v4119
    %4449 = vmatpush1.bf16.msra.mxu0 %v4118
    %4450 = vmatprep.subr.bf16.mxu0 %v4123
    %4451 = vmatpush1.bf16.msra.mxu0 %v4122
    %4452 = vmatprep.subr.bf16.mxu0 %v4127
    %4453 = vmatpush1.bf16.msra.mxu0 %v4126
    %4454 = vmatprep.subr.bf16.mxu0 %v4131
    %4455 = vmatpush1.bf16.msra.mxu0 %v4130
    %4456 = vmatprep.subr.bf16.mxu0 %v4135
    %4457 = vmatpush1.bf16.msra.mxu0 %v4134
    %4458 = vmatprep.subr.bf16.mxu0 %v4139
    %4459 = vmatpush1.bf16.msra.mxu0 %v4138
    %4460 = vmatprep.subr.bf16.mxu0 %v4143
    %4461 = vmatpush1.bf16.msra.mxu0 %v4142
    %4462 = vmatprep.subr.bf16.mxu0 %v4147
    %4463 = vmatpush1.bf16.msra.mxu0 %v4146
    %4464 = vmatprep.subr.bf16.mxu0 %v4151
    %4465 = vmatpush1.bf16.msra.mxu0 %v4150
    %4466 = vmatprep.subr.bf16.mxu0 %v4155
    %4467 = vmatpush1.bf16.msra.mxu0 %v4154
    %4468 = vmatprep.subr.bf16.mxu0 %v4159
    %4469 = vmatpush1.bf16.msra.mxu0 %v4158
    %4470 = vmatprep.mubr.bf16.mxu0 %v3688
    %4471 = vmatmul.mubr.bf16.gmra.mrb[0].mxu0 %v3687
    %v4472 = vpop.f32.mrb[0].mxu0
    %v4473 = vadd.f32 %v3703, %v4472
    %v4474 = vpop.f32.mrb[0].mxu0
    %v4475 = vadd.f32 %v3707, %v4474
    %v4476 = vpop.f32.mrb[0].mxu0
    %v4477 = vadd.f32 %v3703, %v4476
    %v4478 = vpop.f32.mrb[0].mxu0
    %v4479 = vadd.f32 %v3707, %v4478
    %4480 = vdwg.mxu0
    %4481 = vmatprep.subr.bf16.mxu0 %v4163
    %4482 = vmatpush1.bf16.msra.mxu0 %v4162
    %4483 = vmatprep.subr.bf16.mxu0 %v4167
    %4484 = vmatpush1.bf16.msra.mxu0 %v4166
    %4485 = vmatprep.subr.bf16.mxu0 %v4171
    %4486 = vmatpush1.bf16.msra.mxu0 %v4170
    %4487 = vmatprep.subr.bf16.mxu0 %v4175
    %4488 = vmatpush1.bf16.msra.mxu0 %v4174
    %4489 = vmatprep.subr.bf16.mxu0 %v4179
    %4490 = vmatpush1.bf16.msra.mxu0 %v4178
    %4491 = vmatprep.subr.bf16.mxu0 %v4183
    %4492 = vmatpush1.bf16.msra.mxu0 %v4182
    %4493 = vmatprep.subr.bf16.mxu0 %v4187
    %4494 = vmatpush1.bf16.msra.mxu0 %v4186
    %4495 = vmatprep.subr.bf16.mxu0 %v4191
    %4496 = vmatpush1.bf16.msra.mxu0 %v4190
    %4497 = vmatprep.subr.bf16.mxu0 %v4195
    %4498 = vmatpush1.bf16.msra.mxu0 %v4194
    %4499 = vmatprep.subr.bf16.mxu0 %v4199
    %4500 = vmatpush1.bf16.msra.mxu0 %v4198
    %4501 = vmatprep.subr.bf16.mxu0 %v4203
    %4502 = vmatpush1.bf16.msra.mxu0 %v4202
    %4503 = vmatprep.subr.bf16.mxu0 %v4207
    %4504 = vmatpush1.bf16.msra.mxu0 %v4206
    %4505 = vmatprep.subr.bf16.mxu0 %v4211
    %4506 = vmatpush1.bf16.msra.mxu0 %v4210
    %4507 = vmatprep.subr.bf16.mxu0 %v4215
    %4508 = vmatpush1.bf16.msra.mxu0 %v4214
    %4509 = vmatprep.subr.bf16.mxu0 %v4219
    %4510 = vmatpush1.bf16.msra.mxu0 %v4218
    %4511 = vmatprep.subr.bf16.mxu0 %v4223
    %4512 = vmatpush1.bf16.msra.mxu0 %v4222
    %4513 = vmatprep.mubr.bf16.mxu0 %v3690
    %4514 = vmatmul.mubr.bf16.gmra.mrb[0].mxu0 %v3689
    %v4515 = vpop.f32.mrb[0].mxu0
    %v4516 = vadd.f32 %v4473, %v4515
    %v4517 = vpop.f32.mrb[0].mxu0
    %v4518 = vadd.f32 %v4475, %v4517
    %v4519 = vpop.f32.mrb[0].mxu0
    %v4520 = vadd.f32 %v4477, %v4519
    %v4521 = vpop.f32.mrb[0].mxu0
    %v4522 = vadd.f32 %v4479, %v4521
    %4523 = vdwg.mxu0
    %4524 = vst [vmem:[#allocation14] sm:$0xff] %v4430
    %4525 = vst [vmem:[#allocation14 + $0x8] sm:$0xff] %v4432
    %4526 = vst [vmem:[#allocation14 + $0x10] sm:$0xff] %v4516
    %4527 = vst [vmem:[#allocation14 + $0x18] sm:$0xff] %v4518
    %4528 = vst [vmem:[#allocation14 + $0x20] sm:$0xff] %v4434
    %4529 = vst [vmem:[#allocation14 + $0x28] sm:$0xff] %v4436
    %4530 = vst [vmem:[#allocation14 + $0x30] sm:$0xff] %v4520
    %4531 = vst [vmem:[#allocation14 + $0x38] sm:$0xff] %v4522
    // Predicated region
    $region98: #{tpu_custom_call.1} parent=1 // pred_check
      _
    $region99: #{tpu_custom_call.1} parent=1 // pred_check_branch
      %4533 = sbr.rel (0) target = $region101
    $region100: #{tpu_custom_call.1} parent=1 // pred_region
      %s4535 = ssub.s32 1024, 1024
      %4536 = vsyncadd [#allocation4], %s4535
      %s4537 = sshll.u32 [#allocation14], 4
      %s4538 = int_to_ptr.vmem [resolvable:$true] %s4537
      %4543 = dma.vmem_to_hbm [thread:$0]  %s4538, 1024, %s17, [#allocation4], 512, 512, 32
    $region101: #{tpu_custom_call.1} parent=1 // pred_fallthru
      _
    // Predicated region
    $region102: #{tpu_custom_call.1} parent=1 // pred_check
      _
    $region103: #{tpu_custom_call.1} parent=1 // pred_check_branch
      %4545 = sbr.rel (0) target = $region105
    $region104: #{tpu_custom_call.1} parent=1 // pred_region
      %4546 = dma.done [#allocation4], 1024
    $region105: #{tpu_custom_call.1} parent=1 // pred_fallthru
      _
    %4547 = vsyncpa [#allocation3], 1
    %4548 = vsyncpa [#allocation6], 1
    %4549 = vsyncpa [#allocation9], 1
    %4550 = vsyncpa [#allocation12], 1
    %4551 = vsyncpa [#allocation4], 1

</llo_original>
